<compile_context>
chip_gen: v7x
topology: tpu7x:2x2x1
jax: 0.10.0
libtpu: 0.0.40
codegen_flags: <defaults>
</compile_context>

<pallas_src>
import functools

import numpy as np
import jax
import jax.numpy as jnp
from jax import lax
from jax.experimental import pallas as pl
from jax.experimental.pallas import tpu as pltpu


# ----------------------------------------------------------------------------
# Host-side weight preprocessing: banded (block-Toeplitz) conv weights
# ----------------------------------------------------------------------------
def _band_conv_w(w_oihw, w_in, in_stride):
    """3x3 'same' conv -> 3 band matrices (one per dy).

    Input row layout (lanes): lane = x*in_stride + ci  (ci < Cin valid).
    Output col layout (lanes): lane = x*Cout + co.
    Returns float32 array of shape (3, (w_in-1)*in_stride + Cin, w_in*Cout).
    dx taps and x-padding are encoded in the band structure.
    """
    w = np.asarray(w_oihw, np.float32)
    cout, cin = w.shape[0], w.shape[1]
    k_in = (w_in - 1) * in_stride + cin
    band = np.zeros((3, k_in, w_in * cout), np.float32)
    for dy in range(3):
        for dx in range(3):
            tap = w[:, :, dy, dx].T                      # (cin, cout)
            for xo in range(w_in):
                xi = xo + dx - 1
                if 0 <= xi < w_in:
                    band[dy,
                         xi * in_stride:xi * in_stride + cin,
                         xo * cout:(xo + 1) * cout] = tap
    return band


def _band_fc_w(fc_w, c, hp, wp, in_stride):
    """Per-row-of-pooled-map fc weights matching the dilated pooled layout.

    fc_w: (O, c*hp*wp) in PyTorch NCHW-flatten order (c*hp*wp + y*wp + x).
    Pooled lane layout: lane = x*in_stride + ci.
    Returns (hp, (wp-1)*in_stride + c, O) float32.
    """
    fc_w = np.asarray(fc_w, np.float32)
    o = fc_w.shape[0]
    k_in = (wp - 1) * in_stride + c
    out = np.zeros((hp, k_in, o), np.float32)
    for yo in range(hp):
        for xo in range(wp):
            for ci in range(c):
                out[yo, xo * in_stride + ci, :] = fc_w[:, ci * hp * wp + yo * wp + xo]
    return out


def prepare_params(p):
    """One-time weight preprocessing (hoisted out of the per-forward path)."""
    H = W = 28                                   # classifier requires 28x28 input
    c = int(p["c1a_w"].shape[0])                 # hidden_units
    cin = int(p["c1a_w"].shape[1])

    def tile_bias(b, width):
        return jnp.asarray(np.tile(np.asarray(b, np.float32), width)[None, :])

    return {
        "w1a": jnp.asarray(_band_conv_w(p["c1a_w"], W, cin)),
        "b1a": tile_bias(p["c1a_b"], W),
        "w1b": jnp.asarray(_band_conv_w(p["c1b_w"], W, c)),
        "b1b": tile_bias(p["c1b_b"], W),
        "w2a": jnp.asarray(_band_conv_w(p["c2a_w"], W // 2, 2 * c)),   # dilated in
        "b2a": tile_bias(p["c2a_b"], W // 2),
        "w2b": jnp.asarray(_band_conv_w(p["c2b_w"], W // 2, c)),
        "b2b": tile_bias(p["c2b_b"], W // 2),
        "fc_w": jnp.asarray(_band_fc_w(p["fc_w"], c, 7, 7, 2 * c)),
        "fc_b": jnp.asarray(np.asarray(p["fc_b"], np.float32)[None, :]),
    }


# ----------------------------------------------------------------------------
# Fused kernel: whole forward pass for one batch tile
# ----------------------------------------------------------------------------
def _fused_forward_kernel(x_ref,
                          w1a, b1a, w1b, b1b, w2a, b2a, w2b, b2b, fcw, fcb,
                          o_ref,
                          slab1, slab2, slab3,
                          *, H, W, C):
    bt = x_ref.shape[1]
    H2, W2 = H // 2, W // 2
    H4 = H2 // 2
    f32 = jnp.float32

    def conv3x3_relu(src_ref, h_out, w_ref, bias_ref):
        # 3 accumulated band matmuls (dy taps); dx taps + x-padding are in w.
        k_in = src_ref.shape[2]
        acc = None
        for dy in range(3):                      # static unroll
            lhs = src_ref[pl.ds(dy, h_out), :, :].reshape(h_out * bt, k_in)
            part = jnp.dot(lhs, w_ref[dy], preferred_element_type=f32)
            acc = part if acc is None else acc + part
        return jnp.maximum(acc + bias_ref[...], 0.0)       # (h_out*bt, W_out*C)

    def pool2x2(y, h_in):
        # y: (h_in*bt, lane).  Row (y) pooling via aligned group max; column (x)
        # pooling via a lane-shifted max, result kept x-dilated (valid values at
        # even-x lane groups; odd-x groups are ignored by the next band matrix).
        lane = y.shape[-1]
        y4 = y.reshape(h_in // 2, 2, bt, lane)
        py = jnp.maximum(y4[:, 0], y4[:, 1])                # (h_in//2, bt, lane)
        return jnp.maximum(py[:, :, : lane - C], py[:, :, C:])

    def fill_slab(slab_ref, interior, h_out):
        # Interior rows [1 : h_out+1]; zero the 2 border rows every step (cheap
        # and megacore-safe; no full-buffer memset).
        lane = slab_ref.shape[2]
        zrow = jnp.zeros((1, bt, lane), f32)
        slab_ref[pl.ds(0, 1), :, :] = zrow
        slab_ref[pl.ds(h_out + 1, 1), :, :] = zrow
        slab_ref[pl.ds(1, h_out), :, :] = interior

    # ---------------- conv_block_1 ----------------
    y = conv3x3_relu(x_ref, H, w1a, b1a)                    # (H*bt, W*C)
    fill_slab(slab1, y.reshape(H, bt, -1), H)
    y = conv3x3_relu(slab1, H, w1b, b1b)                    # (H*bt, W*C)
    p = pool2x2(y, H)                                       # (H2, bt, (W-1)*C)

    # ---------------- conv_block_2 ----------------
    fill_slab(slab2, p, H2)
    y = conv3x3_relu(slab2, H2, w2a, b2a)                   # (H2*bt, W2*C)
    fill_slab(slab3, y.reshape(H2, bt, -1), H2)
    y = conv3x3_relu(slab3, H2, w2b, b2b)                   # (H2*bt, W2*C)
    p = pool2x2(y, H2)                                      # (H4, bt, (W2-1)*C)

    # ---------------- classifier (folded, no flatten loop) ----------------
    acc = jnp.dot(p[0], fcw[0], preferred_element_type=f32)
    for yo in range(1, H4):
        acc = acc + jnp.dot(p[yo], fcw[yo], preferred_element_type=f32)
    o_ref[...] = acc + fcb[...]


# ----------------------------------------------------------------------------
# Host-side wrapper
# ----------------------------------------------------------------------------
@functools.partial(jax.jit, static_argnames=("b_tile",))
def forward(prep, x_nchw, *, b_tile=64):
    N, Cin, H, W = x_nchw.shape
    C = prep["b1a"].shape[-1] // W
    O = prep["fc_b"].shape[-1]

    bt = min(b_tile, max(8, -(-N // 8) * 8))
    bt = max(8, (bt // 8) * 8)                   # multiple of 8 (sublane alignment)
    n_pad = -(-N // bt) * bt

    # NCHW -> (H, N, W*Cin) with lane = x*Cin + ci; y-pad by 1 row top/bottom;
    # pad batch to a multiple of the tile.
    x = jnp.transpose(x_nchw.astype(jnp.float32), (2, 0, 3, 1)).reshape(H, N, W * Cin)
    x = jnp.pad(x, ((1, 1), (0, n_pad - N), (0, 0)))        # (H+2, n_pad, W*Cin)

    kernel = functools.partial(_fused_forward_kernel, H=H, W=W, C=C)

    def wspec(a):
        return pl.BlockSpec(a.shape, lambda n, _nd=a.ndim: (0,) * _nd)

    out = pl.pallas_call(
        kernel,
        out_shape=jax.ShapeDtypeStruct((n_pad, O), jnp.float32),
        grid=(n_pad // bt,),
        in_specs=[
            pl.BlockSpec((H + 2, bt, W * Cin), lambda n: (0, n, 0)),
            wspec(prep["w1a"]), wspec(prep["b1a"]),
            wspec(prep["w1b"]), wspec(prep["b1b"]),
            wspec(prep["w2a"]), wspec(prep["b2a"]),
            wspec(prep["w2b"]), wspec(prep["b2b"]),
            wspec(prep["fc_w"]), wspec(prep["fc_b"]),
        ],
        out_specs=pl.BlockSpec((bt, O), lambda n: (n, 0)),
        scratch_shapes=[
            pltpu.VMEM((H + 2, bt, W * C), jnp.float32),              # slab1 (y-pad)
            pltpu.VMEM((H // 2 + 2, bt, (W - 1) * C), jnp.float32),   # slab2 (dilated)
            pltpu.VMEM((H // 2 + 2, bt, (W // 2) * C), jnp.float32),  # slab3
        ],
        compiler_params=pltpu.CompilerParams(
            dimension_semantics=("parallel",),
            vmem_limit_bytes=48 * 1024 * 1024),
    )(x, prep["w1a"], prep["b1a"], prep["w1b"], prep["b1b"],
      prep["w2a"], prep["b2a"], prep["w2b"], prep["b2b"],
      prep["fc_w"], prep["fc_b"])
    return out[:N]


# ----------------------------------------------------------------------------
# Parameter init (torch shapes) and pure-JAX reference
# ----------------------------------------------------------------------------
def init_params(key, input_shape, hidden_units, output_shape):
    ks = jax.random.split(key, 10)

    def conv_p(kw, kb, cin, cout):
        bound = 1.0 / jnp.sqrt(cin * 9)
        w = jax.random.uniform(kw, (cout, cin, 3, 3), jnp.float32, -bound, bound)
        b = jax.random.uniform(kb, (cout,), jnp.float32, -bound, bound)
        return w, b

    p = {}
    p["c1a_w"], p["c1a_b"] = conv_p(ks[0], ks[1], input_shape, hidden_units)
    p["c1b_w"], p["c1b_b"] = conv_p(ks[2], ks[3], hidden_units, hidden_units)
    p["c2a_w"], p["c2a_b"] = conv_p(ks[4], ks[5], hidden_units, hidden_units)
    p["c2b_w"], p["c2b_b"] = conv_p(ks[6], ks[7], hidden_units, hidden_units)
    fin = hidden_units * 7 * 7
    bound = 1.0 / jnp.sqrt(fin)
    p["fc_w"] = jax.random.uniform(ks[8], (output_shape, fin), jnp.float32,
                                   -bound, bound)
    p["fc_b"] = jax.random.uniform(ks[9], (output_shape,), jnp.float32,
                                   -bound, bound)
    return p


def reference_forward(params, x_nchw):
    def conv(x, w, b):
        y = lax.conv_general_dilated(
            x, w, window_strides=(1, 1), padding="SAME",
            dimension_numbers=("NCHW", "OIHW", "NCHW"),
            precision=lax.Precision.HIGHEST)
        return jnp.maximum(y + b[None, :, None, None], 0.0)

    def pool(x):
        return lax.reduce_window(x, -jnp.inf, lax.max,
                                 (1, 1, 2, 2), (1, 1, 2, 2), "VALID")

    x = x_nchw.astype(jnp.float32)
    x = pool(conv(conv(x, params["c1a_w"], params["c1a_b"]),
                  params["c1b_w"], params["c1b_b"]))
    x = pool(conv(conv(x, params["c2a_w"], params["c2a_b"]),
                  params["c2b_w"], params["c2b_b"]))
    flat = x.reshape(x.shape[0], -1)
    return jnp.dot(flat, params["fc_w"].T,
                   precision=lax.Precision.HIGHEST) + params["fc_b"]


# ----------------------------------------------------------------------------
if __name__ == "__main__":
    INPUT_CH = 1        # FashionMNIST is single-channel
    HIDDEN = 8
    OUT = 10
    BATCH = 2
    H = W = 28          # classifier expects hidden_units * 7 * 7 -> 28x28 input

    key = jax.random.PRNGKey(0)
    k_param, k_x = jax.random.split(key)
    params = init_params(k_param, INPUT_CH, HIDDEN, OUT)
    x = jax.random.normal(k_x, (BATCH, INPUT_CH, H, W), jnp.float32)

    prep = prepare_params(params)
    logits = forward(prep, x)
    jax.block_until_ready(logits)

    ref = reference_forward(params, x)
    assert logits.shape == (BATCH, OUT)
    max_err = jnp.max(jnp.abs(logits - ref))
    assert jnp.allclose(logits, ref, atol=1e-3, rtol=1e-3), f"mismatch {max_err}"

    print("KERNEL_OK")
</pallas_src>

<mosaic_0001>
module attributes {stable_mosaic.version = 11 : i64} {
  func.func @_fused_forward_kernel(%arg0: i32, %arg1: memref<30x8x28xf32, #tpu.memory_space<vmem>>, %arg2: memref<3x28x224xf32, #tpu.memory_space<vmem>>, %arg3: memref<1x224xf32, #tpu.memory_space<vmem>>, %arg4: memref<3x224x224xf32, #tpu.memory_space<vmem>>, %arg5: memref<1x224xf32, #tpu.memory_space<vmem>>, %arg6: memref<3x216x112xf32, #tpu.memory_space<vmem>>, %arg7: memref<1x112xf32, #tpu.memory_space<vmem>>, %arg8: memref<3x112x112xf32, #tpu.memory_space<vmem>>, %arg9: memref<1x112xf32, #tpu.memory_space<vmem>>, %arg10: memref<7x104x10xf32, #tpu.memory_space<vmem>>, %arg11: memref<1x10xf32, #tpu.memory_space<vmem>>, %arg12: memref<8x10xf32, #tpu.memory_space<vmem>>, %arg13: memref<30x8x224xf32, #tpu.memory_space<vmem>>, %arg14: memref<16x8x216xf32, #tpu.memory_space<vmem>>, %arg15: memref<16x8x112xf32, #tpu.memory_space<vmem>>) attributes {dimension_semantics = [#tpu.dimension_semantics<parallel>], iteration_bounds = array<i64: 1>, scalar_prefetch = 0 : i64, scratch_operands = 3 : i64, tpu.core_type = #tpu.core_type<tc>, window_params = [{transform_indices = @transform_0, window_bounds = array<i64: 30, 8, 28>}, {pipeline_mode = #tpu.pipeline_mode<synchronous>, transform_indices = @transform_1, window_bounds = array<i64: 3, 28, 224>}, {pipeline_mode = #tpu.pipeline_mode<synchronous>, transform_indices = @transform_2, window_bounds = array<i64: 1, 224>}, {pipeline_mode = #tpu.pipeline_mode<synchronous>, transform_indices = @transform_3, window_bounds = array<i64: 3, 224, 224>}, {pipeline_mode = #tpu.pipeline_mode<synchronous>, transform_indices = @transform_4, window_bounds = array<i64: 1, 224>}, {pipeline_mode = #tpu.pipeline_mode<synchronous>, transform_indices = @transform_5, window_bounds = array<i64: 3, 216, 112>}, {pipeline_mode = #tpu.pipeline_mode<synchronous>, transform_indices = @transform_6, window_bounds = array<i64: 1, 112>}, {pipeline_mode = #tpu.pipeline_mode<synchronous>, transform_indices = @transform_7, window_bounds = array<i64: 3, 112, 112>}, {pipeline_mode = #tpu.pipeline_mode<synchronous>, transform_indices = @transform_8, window_bounds = array<i64: 1, 112>}, {pipeline_mode = #tpu.pipeline_mode<synchronous>, transform_indices = @transform_9, window_bounds = array<i64: 7, 104, 10>}, {pipeline_mode = #tpu.pipeline_mode<synchronous>, transform_indices = @transform_10, window_bounds = array<i64: 1, 10>}, {transform_indices = @transform_11, window_bounds = array<i64: 8, 10>}]} {
    %c0 = arith.constant 0 : index
    %c0_0 = arith.constant 0 : index
    %c0_1 = arith.constant 0 : index
    %0 = vector.load %arg1[%c0, %c0_0, %c0_1] : memref<30x8x28xf32, #tpu.memory_space<vmem>>, vector<28x8x28xf32>
    %1 = vector.shape_cast %0 : vector<28x8x28xf32> to vector<224x28xf32>
    %c0_2 = arith.constant 0 : index
    %c0_3 = arith.constant 0 : index
    %c0_4 = arith.constant 0 : index
    %2 = vector.load %arg2[%c0_2, %c0_3, %c0_4] : memref<3x28x224xf32, #tpu.memory_space<vmem>>, vector<1x28x224xf32>
    %3 = vector.shape_cast %2 : vector<1x28x224xf32> to vector<28x224xf32>
    %cst = arith.constant dense<0.000000e+00> : vector<224x224xf32>
    %4 = tpu.matmul %1, %3, %cst {dimension_numbers = #tpu.dot_dimension_numbers<[1], [0], [0], [1], [0, 0, 1, 1], [], []>} : vector<224x28xf32>, vector<28x224xf32>, vector<224x224xf32> -> vector<224x224xf32>
    %c1 = arith.constant 1 : index
    %c0_5 = arith.constant 0 : index
    %c0_6 = arith.constant 0 : index
    %5 = vector.load %arg1[%c1, %c0_5, %c0_6] : memref<30x8x28xf32, #tpu.memory_space<vmem>>, vector<28x8x28xf32>
    %6 = vector.shape_cast %5 : vector<28x8x28xf32> to vector<224x28xf32>
    %c1_7 = arith.constant 1 : index
    %c0_8 = arith.constant 0 : index
    %c0_9 = arith.constant 0 : index
    %7 = vector.load %arg2[%c1_7, %c0_8, %c0_9] : memref<3x28x224xf32, #tpu.memory_space<vmem>>, vector<1x28x224xf32>
    %8 = vector.shape_cast %7 : vector<1x28x224xf32> to vector<28x224xf32>
    %cst_10 = arith.constant dense<0.000000e+00> : vector<224x224xf32>
    %9 = tpu.matmul %6, %8, %cst_10 {dimension_numbers = #tpu.dot_dimension_numbers<[1], [0], [0], [1], [0, 0, 1, 1], [], []>} : vector<224x28xf32>, vector<28x224xf32>, vector<224x224xf32> -> vector<224x224xf32>
    %10 = arith.addf %4, %9 : vector<224x224xf32>
    %c2 = arith.constant 2 : index
    %c0_11 = arith.constant 0 : index
    %c0_12 = arith.constant 0 : index
    %11 = vector.load %arg1[%c2, %c0_11, %c0_12] : memref<30x8x28xf32, #tpu.memory_space<vmem>>, vector<28x8x28xf32>
    %12 = vector.shape_cast %11 : vector<28x8x28xf32> to vector<224x28xf32>
    %c2_13 = arith.constant 2 : index
    %c0_14 = arith.constant 0 : index
    %c0_15 = arith.constant 0 : index
    %13 = vector.load %arg2[%c2_13, %c0_14, %c0_15] : memref<3x28x224xf32, #tpu.memory_space<vmem>>, vector<1x28x224xf32>
    %14 = vector.shape_cast %13 : vector<1x28x224xf32> to vector<28x224xf32>
    %cst_16 = arith.constant dense<0.000000e+00> : vector<224x224xf32>
    %15 = tpu.matmul %12, %14, %cst_16 {dimension_numbers = #tpu.dot_dimension_numbers<[1], [0], [0], [1], [0, 0, 1, 1], [], []>} : vector<224x28xf32>, vector<28x224xf32>, vector<224x224xf32> -> vector<224x224xf32>
    %16 = arith.addf %10, %15 : vector<224x224xf32>
    %c0_17 = arith.constant 0 : index
    %c0_18 = arith.constant 0 : index
    %17 = vector.load %arg3[%c0_17, %c0_18] : memref<1x224xf32, #tpu.memory_space<vmem>>, vector<1x224xf32>
    %18 = vector.broadcast %17 : vector<1x224xf32> to vector<224x224xf32>
    %19 = arith.addf %16, %18 : vector<224x224xf32>
    %cst_19 = arith.constant 0.000000e+00 : f32
    %20 = vector.broadcast %cst_19 : f32 to vector<224x224xf32>
    %21 = arith.maximumf %19, %20 : vector<224x224xf32>
    %22 = vector.shape_cast %21 : vector<224x224xf32> to vector<28x8x224xf32>
    %cst_20 = arith.constant 0.000000e+00 : f32
    %23 = vector.broadcast %cst_20 : f32 to vector<1x8x224xf32>
    %c0_21 = arith.constant 0 : index
    %c0_22 = arith.constant 0 : index
    %c0_23 = arith.constant 0 : index
    %24 = vector.load %arg13[%c0_21, %c0_22, %c0_23] : memref<30x8x224xf32, #tpu.memory_space<vmem>>, vector<1x8x224xf32>
    tpu.vector_store %arg13[%c0_21, %c0_22, %c0_23], %23 {strides = array<i32>} : memref<30x8x224xf32, #tpu.memory_space<vmem>>, vector<1x8x224xf32>,
    %c29 = arith.constant 29 : index
    %c0_24 = arith.constant 0 : index
    %c0_25 = arith.constant 0 : index
    %25 = vector.load %arg13[%c29, %c0_24, %c0_25] : memref<30x8x224xf32, #tpu.memory_space<vmem>>, vector<1x8x224xf32>
    tpu.vector_store %arg13[%c29, %c0_24, %c0_25], %23 {strides = array<i32>} : memref<30x8x224xf32, #tpu.memory_space<vmem>>, vector<1x8x224xf32>,
    %c1_26 = arith.constant 1 : index
    %c0_27 = arith.constant 0 : index
    %c0_28 = arith.constant 0 : index
    %26 = vector.load %arg13[%c1_26, %c0_27, %c0_28] : memref<30x8x224xf32, #tpu.memory_space<vmem>>, vector<28x8x224xf32>
    tpu.vector_store %arg13[%c1_26, %c0_27, %c0_28], %22 {strides = array<i32>} : memref<30x8x224xf32, #tpu.memory_space<vmem>>, vector<28x8x224xf32>,
    %c0_29 = arith.constant 0 : index
    %c0_30 = arith.constant 0 : index
    %c0_31 = arith.constant 0 : index
    %27 = vector.load %arg13[%c0_29, %c0_30, %c0_31] : memref<30x8x224xf32, #tpu.memory_space<vmem>>, vector<28x8x224xf32>
    %28 = vector.shape_cast %27 : vector<28x8x224xf32> to vector<224x224xf32>
    %c0_32 = arith.constant 0 : index
    %c0_33 = arith.constant 0 : index
    %c0_34 = arith.constant 0 : index
    %29 = vector.load %arg4[%c0_32, %c0_33, %c0_34] : memref<3x224x224xf32, #tpu.memory_space<vmem>>, vector<1x224x224xf32>
    %30 = vector.shape_cast %29 : vector<1x224x224xf32> to vector<224x224xf32>
    %cst_35 = arith.constant dense<0.000000e+00> : vector<224x224xf32>
    %31 = tpu.matmul %28, %30, %cst_35 {dimension_numbers = #tpu.dot_dimension_numbers<[1], [0], [0], [1], [0, 0, 1, 1], [], []>} : vector<224x224xf32>, vector<224x224xf32>, vector<224x224xf32> -> vector<224x224xf32>
    %c1_36 = arith.constant 1 : index
    %c0_37 = arith.constant 0 : index
    %c0_38 = arith.constant 0 : index
    %32 = vector.load %arg13[%c1_36, %c0_37, %c0_38] : memref<30x8x224xf32, #tpu.memory_space<vmem>>, vector<28x8x224xf32>
    %33 = vector.shape_cast %32 : vector<28x8x224xf32> to vector<224x224xf32>
    %c1_39 = arith.constant 1 : index
    %c0_40 = arith.constant 0 : index
    %c0_41 = arith.constant 0 : index
    %34 = vector.load %arg4[%c1_39, %c0_40, %c0_41] : memref<3x224x224xf32, #tpu.memory_space<vmem>>, vector<1x224x224xf32>
    %35 = vector.shape_cast %34 : vector<1x224x224xf32> to vector<224x224xf32>
    %cst_42 = arith.constant dense<0.000000e+00> : vector<224x224xf32>
    %36 = tpu.matmul %33, %35, %cst_42 {dimension_numbers = #tpu.dot_dimension_numbers<[1], [0], [0], [1], [0, 0, 1, 1], [], []>} : vector<224x224xf32>, vector<224x224xf32>, vector<224x224xf32> -> vector<224x224xf32>
    %37 = arith.addf %31, %36 : vector<224x224xf32>
    %c2_43 = arith.constant 2 : index
    %c0_44 = arith.constant 0 : index
    %c0_45 = arith.constant 0 : index
    %38 = vector.load %arg13[%c2_43, %c0_44, %c0_45] : memref<30x8x224xf32, #tpu.memory_space<vmem>>, vector<28x8x224xf32>
    %39 = vector.shape_cast %38 : vector<28x8x224xf32> to vector<224x224xf32>
    %c2_46 = arith.constant 2 : index
    %c0_47 = arith.constant 0 : index
    %c0_48 = arith.constant 0 : index
    %40 = vector.load %arg4[%c2_46, %c0_47, %c0_48] : memref<3x224x224xf32, #tpu.memory_space<vmem>>, vector<1x224x224xf32>
    %41 = vector.shape_cast %40 : vector<1x224x224xf32> to vector<224x224xf32>
    %cst_49 = arith.constant dense<0.000000e+00> : vector<224x224xf32>
    %42 = tpu.matmul %39, %41, %cst_49 {dimension_numbers = #tpu.dot_dimension_numbers<[1], [0], [0], [1], [0, 0, 1, 1], [], []>} : vector<224x224xf32>, vector<224x224xf32>, vector<224x224xf32> -> vector<224x224xf32>
    %43 = arith.addf %37, %42 : vector<224x224xf32>
    %c0_50 = arith.constant 0 : index
    %c0_51 = arith.constant 0 : index
    %44 = vector.load %arg5[%c0_50, %c0_51] : memref<1x224xf32, #tpu.memory_space<vmem>>, vector<1x224xf32>
    %45 = vector.broadcast %44 : vector<1x224xf32> to vector<224x224xf32>
    %46 = arith.addf %43, %45 : vector<224x224xf32>
    %cst_52 = arith.constant 0.000000e+00 : f32
    %47 = vector.broadcast %cst_52 : f32 to vector<224x224xf32>
    %48 = arith.maximumf %46, %47 : vector<224x224xf32>
    %49 = vector.shape_cast %48 : vector<224x224xf32> to vector<14x2x8x224xf32>
    %50 = vector.extract_strided_slice %49 {offsets = [0, 0, 0, 0], sizes = [14, 1, 8, 224], strides = [1, 1, 1, 1]} : vector<14x2x8x224xf32> to vector<14x1x8x224xf32>
    %51 = vector.shape_cast %50 : vector<14x1x8x224xf32> to vector<14x8x224xf32>
    %52 = vector.extract_strided_slice %49 {offsets = [0, 1, 0, 0], sizes = [14, 1, 8, 224], strides = [1, 1, 1, 1]} : vector<14x2x8x224xf32> to vector<14x1x8x224xf32>
    %53 = vector.shape_cast %52 : vector<14x1x8x224xf32> to vector<14x8x224xf32>
    %54 = arith.maximumf %51, %53 : vector<14x8x224xf32>
    %55 = vector.extract_strided_slice %54 {offsets = [0, 0, 0], sizes = [14, 8, 216], strides = [1, 1, 1]} : vector<14x8x224xf32> to vector<14x8x216xf32>
    %56 = vector.extract_strided_slice %54 {offsets = [0, 0, 8], sizes = [14, 8, 216], strides = [1, 1, 1]} : vector<14x8x224xf32> to vector<14x8x216xf32>
    %57 = arith.maximumf %55, %56 : vector<14x8x216xf32>
    %cst_53 = arith.constant 0.000000e+00 : f32
    %58 = vector.broadcast %cst_53 : f32 to vector<1x8x216xf32>
    %c0_54 = arith.constant 0 : index
    %c0_55 = arith.constant 0 : index
    %c0_56 = arith.constant 0 : index
    %59 = vector.load %arg14[%c0_54, %c0_55, %c0_56] : memref<16x8x216xf32, #tpu.memory_space<vmem>>, vector<1x8x216xf32>
    tpu.vector_store %arg14[%c0_54, %c0_55, %c0_56], %58 {strides = array<i32>} : memref<16x8x216xf32, #tpu.memory_space<vmem>>, vector<1x8x216xf32>,
    %c15 = arith.constant 15 : index
    %c0_57 = arith.constant 0 : index
    %c0_58 = arith.constant 0 : index
    %60 = vector.load %arg14[%c15, %c0_57, %c0_58] : memref<16x8x216xf32, #tpu.memory_space<vmem>>, vector<1x8x216xf32>
    tpu.vector_store %arg14[%c15, %c0_57, %c0_58], %58 {strides = array<i32>} : memref<16x8x216xf32, #tpu.memory_space<vmem>>, vector<1x8x216xf32>,
    %c1_59 = arith.constant 1 : index
    %c0_60 = arith.constant 0 : index
    %c0_61 = arith.constant 0 : index
    %61 = vector.load %arg14[%c1_59, %c0_60, %c0_61] : memref<16x8x216xf32, #tpu.memory_space<vmem>>, vector<14x8x216xf32>
    tpu.vector_store %arg14[%c1_59, %c0_60, %c0_61], %57 {strides = array<i32>} : memref<16x8x216xf32, #tpu.memory_space<vmem>>, vector<14x8x216xf32>,
    %c0_62 = arith.constant 0 : index
    %c0_63 = arith.constant 0 : index
    %c0_64 = arith.constant 0 : index
    %62 = vector.load %arg14[%c0_62, %c0_63, %c0_64] : memref<16x8x216xf32, #tpu.memory_space<vmem>>, vector<14x8x216xf32>
    %63 = vector.shape_cast %62 : vector<14x8x216xf32> to vector<112x216xf32>
    %c0_65 = arith.constant 0 : index
    %c0_66 = arith.constant 0 : index
    %c0_67 = arith.constant 0 : index
    %64 = vector.load %arg6[%c0_65, %c0_66, %c0_67] : memref<3x216x112xf32, #tpu.memory_space<vmem>>, vector<1x216x112xf32>
    %65 = vector.shape_cast %64 : vector<1x216x112xf32> to vector<216x112xf32>
    %cst_68 = arith.constant dense<0.000000e+00> : vector<112x112xf32>
    %66 = tpu.matmul %63, %65, %cst_68 {dimension_numbers = #tpu.dot_dimension_numbers<[1], [0], [0], [1], [0, 0, 1, 1], [], []>} : vector<112x216xf32>, vector<216x112xf32>, vector<112x112xf32> -> vector<112x112xf32>
    %c1_69 = arith.constant 1 : index
    %c0_70 = arith.constant 0 : index
    %c0_71 = arith.constant 0 : index
    %67 = vector.load %arg14[%c1_69, %c0_70, %c0_71] : memref<16x8x216xf32, #tpu.memory_space<vmem>>, vector<14x8x216xf32>
    %68 = vector.shape_cast %67 : vector<14x8x216xf32> to vector<112x216xf32>
    %c1_72 = arith.constant 1 : index
    %c0_73 = arith.constant 0 : index
    %c0_74 = arith.constant 0 : index
    %69 = vector.load %arg6[%c1_72, %c0_73, %c0_74] : memref<3x216x112xf32, #tpu.memory_space<vmem>>, vector<1x216x112xf32>
    %70 = vector.shape_cast %69 : vector<1x216x112xf32> to vector<216x112xf32>
    %cst_75 = arith.constant dense<0.000000e+00> : vector<112x112xf32>
    %71 = tpu.matmul %68, %70, %cst_75 {dimension_numbers = #tpu.dot_dimension_numbers<[1], [0], [0], [1], [0, 0, 1, 1], [], []>} : vector<112x216xf32>, vector<216x112xf32>, vector<112x112xf32> -> vector<112x112xf32>
    %72 = arith.addf %66, %71 : vector<112x112xf32>
    %c2_76 = arith.constant 2 : index
    %c0_77 = arith.constant 0 : index
    %c0_78 = arith.constant 0 : index
    %73 = vector.load %arg14[%c2_76, %c0_77, %c0_78] : memref<16x8x216xf32, #tpu.memory_space<vmem>>, vector<14x8x216xf32>
    %74 = vector.shape_cast %73 : vector<14x8x216xf32> to vector<112x216xf32>
    %c2_79 = arith.constant 2 : index
    %c0_80 = arith.constant 0 : index
    %c0_81 = arith.constant 0 : index
    %75 = vector.load %arg6[%c2_79, %c0_80, %c0_81] : memref<3x216x112xf32, #tpu.memory_space<vmem>>, vector<1x216x112xf32>
    %76 = vector.shape_cast %75 : vector<1x216x112xf32> to vector<216x112xf32>
    %cst_82 = arith.constant dense<0.000000e+00> : vector<112x112xf32>
    %77 = tpu.matmul %74, %76, %cst_82 {dimension_numbers = #tpu.dot_dimension_numbers<[1], [0], [0], [1], [0, 0, 1, 1], [], []>} : vector<112x216xf32>, vector<216x112xf32>, vector<112x112xf32> -> vector<112x112xf32>
    %78 = arith.addf %72, %77 : vector<112x112xf32>
    %c0_83 = arith.constant 0 : index
    %c0_84 = arith.constant 0 : index
    %79 = vector.load %arg7[%c0_83, %c0_84] : memref<1x112xf32, #tpu.memory_space<vmem>>, vector<1x112xf32>
    %80 = vector.broadcast %79 : vector<1x112xf32> to vector<112x112xf32>
    %81 = arith.addf %78, %80 : vector<112x112xf32>
    %cst_85 = arith.constant 0.000000e+00 : f32
    %82 = vector.broadcast %cst_85 : f32 to vector<112x112xf32>
    %83 = arith.maximumf %81, %82 : vector<112x112xf32>
    %84 = vector.shape_cast %83 : vector<112x112xf32> to vector<14x8x112xf32>
    %cst_86 = arith.constant 0.000000e+00 : f32
    %85 = vector.broadcast %cst_86 : f32 to vector<1x8x112xf32>
    %c0_87 = arith.constant 0 : index
    %c0_88 = arith.constant 0 : index
    %c0_89 = arith.constant 0 : index
    %86 = vector.load %arg15[%c0_87, %c0_88, %c0_89] : memref<16x8x112xf32, #tpu.memory_space<vmem>>, vector<1x8x112xf32>
    tpu.vector_store %arg15[%c0_87, %c0_88, %c0_89], %85 {strides = array<i32>} : memref<16x8x112xf32, #tpu.memory_space<vmem>>, vector<1x8x112xf32>,
    %c15_90 = arith.constant 15 : index
    %c0_91 = arith.constant 0 : index
    %c0_92 = arith.constant 0 : index
    %87 = vector.load %arg15[%c15_90, %c0_91, %c0_92] : memref<16x8x112xf32, #tpu.memory_space<vmem>>, vector<1x8x112xf32>
    tpu.vector_store %arg15[%c15_90, %c0_91, %c0_92], %85 {strides = array<i32>} : memref<16x8x112xf32, #tpu.memory_space<vmem>>, vector<1x8x112xf32>,
    %c1_93 = arith.constant 1 : index
    %c0_94 = arith.constant 0 : index
    %c0_95 = arith.constant 0 : index
    %88 = vector.load %arg15[%c1_93, %c0_94, %c0_95] : memref<16x8x112xf32, #tpu.memory_space<vmem>>, vector<14x8x112xf32>
    tpu.vector_store %arg15[%c1_93, %c0_94, %c0_95], %84 {strides = array<i32>} : memref<16x8x112xf32, #tpu.memory_space<vmem>>, vector<14x8x112xf32>,
    %c0_96 = arith.constant 0 : index
    %c0_97 = arith.constant 0 : index
    %c0_98 = arith.constant 0 : index
    %89 = vector.load %arg15[%c0_96, %c0_97, %c0_98] : memref<16x8x112xf32, #tpu.memory_space<vmem>>, vector<14x8x112xf32>
    %90 = vector.shape_cast %89 : vector<14x8x112xf32> to vector<112x112xf32>
    %c0_99 = arith.constant 0 : index
    %c0_100 = arith.constant 0 : index
    %c0_101 = arith.constant 0 : index
    %91 = vector.load %arg8[%c0_99, %c0_100, %c0_101] : memref<3x112x112xf32, #tpu.memory_space<vmem>>, vector<1x112x112xf32>
    %92 = vector.shape_cast %91 : vector<1x112x112xf32> to vector<112x112xf32>
    %cst_102 = arith.constant dense<0.000000e+00> : vector<112x112xf32>
    %93 = tpu.matmul %90, %92, %cst_102 {dimension_numbers = #tpu.dot_dimension_numbers<[1], [0], [0], [1], [0, 0, 1, 1], [], []>} : vector<112x112xf32>, vector<112x112xf32>, vector<112x112xf32> -> vector<112x112xf32>
    %c1_103 = arith.constant 1 : index
    %c0_104 = arith.constant 0 : index
    %c0_105 = arith.constant 0 : index
    %94 = vector.load %arg15[%c1_103, %c0_104, %c0_105] : memref<16x8x112xf32, #tpu.memory_space<vmem>>, vector<14x8x112xf32>
    %95 = vector.shape_cast %94 : vector<14x8x112xf32> to vector<112x112xf32>
    %c1_106 = arith.constant 1 : index
    %c0_107 = arith.constant 0 : index
    %c0_108 = arith.constant 0 : index
    %96 = vector.load %arg8[%c1_106, %c0_107, %c0_108] : memref<3x112x112xf32, #tpu.memory_space<vmem>>, vector<1x112x112xf32>
    %97 = vector.shape_cast %96 : vector<1x112x112xf32> to vector<112x112xf32>
    %cst_109 = arith.constant dense<0.000000e+00> : vector<112x112xf32>
    %98 = tpu.matmul %95, %97, %cst_109 {dimension_numbers = #tpu.dot_dimension_numbers<[1], [0], [0], [1], [0, 0, 1, 1], [], []>} : vector<112x112xf32>, vector<112x112xf32>, vector<112x112xf32> -> vector<112x112xf32>
    %99 = arith.addf %93, %98 : vector<112x112xf32>
    %c2_110 = arith.constant 2 : index
    %c0_111 = arith.constant 0 : index
    %c0_112 = arith.constant 0 : index
    %100 = vector.load %arg15[%c2_110, %c0_111, %c0_112] : memref<16x8x112xf32, #tpu.memory_space<vmem>>, vector<14x8x112xf32>
    %101 = vector.shape_cast %100 : vector<14x8x112xf32> to vector<112x112xf32>
    %c2_113 = arith.constant 2 : index
    %c0_114 = arith.constant 0 : index
    %c0_115 = arith.constant 0 : index
    %102 = vector.load %arg8[%c2_113, %c0_114, %c0_115] : memref<3x112x112xf32, #tpu.memory_space<vmem>>, vector<1x112x112xf32>
    %103 = vector.shape_cast %102 : vector<1x112x112xf32> to vector<112x112xf32>
    %cst_116 = arith.constant dense<0.000000e+00> : vector<112x112xf32>
    %104 = tpu.matmul %101, %103, %cst_116 {dimension_numbers = #tpu.dot_dimension_numbers<[1], [0], [0], [1], [0, 0, 1, 1], [], []>} : vector<112x112xf32>, vector<112x112xf32>, vector<112x112xf32> -> vector<112x112xf32>
    %105 = arith.addf %99, %104 : vector<112x112xf32>
    %c0_117 = arith.constant 0 : index
    %c0_118 = arith.constant 0 : index
    %106 = vector.load %arg9[%c0_117, %c0_118] : memref<1x112xf32, #tpu.memory_space<vmem>>, vector<1x112xf32>
    %107 = vector.broadcast %106 : vector<1x112xf32> to vector<112x112xf32>
    %108 = arith.addf %105, %107 : vector<112x112xf32>
    %cst_119 = arith.constant 0.000000e+00 : f32
    %109 = vector.broadcast %cst_119 : f32 to vector<112x112xf32>
    %110 = arith.maximumf %108, %109 : vector<112x112xf32>
    %111 = vector.shape_cast %110 : vector<112x112xf32> to vector<7x2x8x112xf32>
    %112 = vector.extract_strided_slice %111 {offsets = [0, 0, 0, 0], sizes = [7, 1, 8, 112], strides = [1, 1, 1, 1]} : vector<7x2x8x112xf32> to vector<7x1x8x112xf32>
    %113 = vector.shape_cast %112 : vector<7x1x8x112xf32> to vector<7x8x112xf32>
    %114 = vector.extract_strided_slice %111 {offsets = [0, 1, 0, 0], sizes = [7, 1, 8, 112], strides = [1, 1, 1, 1]} : vector<7x2x8x112xf32> to vector<7x1x8x112xf32>
    %115 = vector.shape_cast %114 : vector<7x1x8x112xf32> to vector<7x8x112xf32>
    %116 = arith.maximumf %113, %115 : vector<7x8x112xf32>
    %117 = vector.extract_strided_slice %116 {offsets = [0, 0, 0], sizes = [7, 8, 104], strides = [1, 1, 1]} : vector<7x8x112xf32> to vector<7x8x104xf32>
    %118 = vector.extract_strided_slice %116 {offsets = [0, 0, 8], sizes = [7, 8, 104], strides = [1, 1, 1]} : vector<7x8x112xf32> to vector<7x8x104xf32>
    %119 = arith.maximumf %117, %118 : vector<7x8x104xf32>
    %120 = vector.extract_strided_slice %119 {offsets = [0, 0, 0], sizes = [1, 8, 104], strides = [1, 1, 1]} : vector<7x8x104xf32> to vector<1x8x104xf32>
    %121 = vector.shape_cast %120 : vector<1x8x104xf32> to vector<8x104xf32>
    %c0_120 = arith.constant 0 : index
    %c0_121 = arith.constant 0 : index
    %c0_122 = arith.constant 0 : index
    %122 = vector.load %arg10[%c0_120, %c0_121, %c0_122] : memref<7x104x10xf32, #tpu.memory_space<vmem>>, vector<1x104x10xf32>
    %123 = vector.shape_cast %122 : vector<1x104x10xf32> to vector<104x10xf32>
    %cst_123 = arith.constant dense<0.000000e+00> : vector<8x10xf32>
    %124 = tpu.matmul %121, %123, %cst_123 {dimension_numbers = #tpu.dot_dimension_numbers<[1], [0], [0], [1], [0, 0, 1, 1], [], []>} : vector<8x104xf32>, vector<104x10xf32>, vector<8x10xf32> -> vector<8x10xf32>
    %125 = vector.extract_strided_slice %119 {offsets = [1, 0, 0], sizes = [1, 8, 104], strides = [1, 1, 1]} : vector<7x8x104xf32> to vector<1x8x104xf32>
    %126 = vector.shape_cast %125 : vector<1x8x104xf32> to vector<8x104xf32>
    %c1_124 = arith.constant 1 : index
    %c0_125 = arith.constant 0 : index
    %c0_126 = arith.constant 0 : index
    %127 = vector.load %arg10[%c1_124, %c0_125, %c0_126] : memref<7x104x10xf32, #tpu.memory_space<vmem>>, vector<1x104x10xf32>
    %128 = vector.shape_cast %127 : vector<1x104x10xf32> to vector<104x10xf32>
    %cst_127 = arith.constant dense<0.000000e+00> : vector<8x10xf32>
    %129 = tpu.matmul %126, %128, %cst_127 {dimension_numbers = #tpu.dot_dimension_numbers<[1], [0], [0], [1], [0, 0, 1, 1], [], []>} : vector<8x104xf32>, vector<104x10xf32>, vector<8x10xf32> -> vector<8x10xf32>
    %130 = arith.addf %124, %129 : vector<8x10xf32>
    %131 = vector.extract_strided_slice %119 {offsets = [2, 0, 0], sizes = [1, 8, 104], strides = [1, 1, 1]} : vector<7x8x104xf32> to vector<1x8x104xf32>
    %132 = vector.shape_cast %131 : vector<1x8x104xf32> to vector<8x104xf32>
    %c2_128 = arith.constant 2 : index
    %c0_129 = arith.constant 0 : index
    %c0_130 = arith.constant 0 : index
    %133 = vector.load %arg10[%c2_128, %c0_129, %c0_130] : memref<7x104x10xf32, #tpu.memory_space<vmem>>, vector<1x104x10xf32>
    %134 = vector.shape_cast %133 : vector<1x104x10xf32> to vector<104x10xf32>
    %cst_131 = arith.constant dense<0.000000e+00> : vector<8x10xf32>
    %135 = tpu.matmul %132, %134, %cst_131 {dimension_numbers = #tpu.dot_dimension_numbers<[1], [0], [0], [1], [0, 0, 1, 1], [], []>} : vector<8x104xf32>, vector<104x10xf32>, vector<8x10xf32> -> vector<8x10xf32>
    %136 = arith.addf %130, %135 : vector<8x10xf32>
    %137 = vector.extract_strided_slice %119 {offsets = [3, 0, 0], sizes = [1, 8, 104], strides = [1, 1, 1]} : vector<7x8x104xf32> to vector<1x8x104xf32>
    %138 = vector.shape_cast %137 : vector<1x8x104xf32> to vector<8x104xf32>
    %c3 = arith.constant 3 : index
    %c0_132 = arith.constant 0 : index
    %c0_133 = arith.constant 0 : index
    %139 = vector.load %arg10[%c3, %c0_132, %c0_133] : memref<7x104x10xf32, #tpu.memory_space<vmem>>, vector<1x104x10xf32>
    %140 = vector.shape_cast %139 : vector<1x104x10xf32> to vector<104x10xf32>
    %cst_134 = arith.constant dense<0.000000e+00> : vector<8x10xf32>
    %141 = tpu.matmul %138, %140, %cst_134 {dimension_numbers = #tpu.dot_dimension_numbers<[1], [0], [0], [1], [0, 0, 1, 1], [], []>} : vector<8x104xf32>, vector<104x10xf32>, vector<8x10xf32> -> vector<8x10xf32>
    %142 = arith.addf %136, %141 : vector<8x10xf32>
    %143 = vector.extract_strided_slice %119 {offsets = [4, 0, 0], sizes = [1, 8, 104], strides = [1, 1, 1]} : vector<7x8x104xf32> to vector<1x8x104xf32>
    %144 = vector.shape_cast %143 : vector<1x8x104xf32> to vector<8x104xf32>
    %c4 = arith.constant 4 : index
    %c0_135 = arith.constant 0 : index
    %c0_136 = arith.constant 0 : index
    %145 = vector.load %arg10[%c4, %c0_135, %c0_136] : memref<7x104x10xf32, #tpu.memory_space<vmem>>, vector<1x104x10xf32>
    %146 = vector.shape_cast %145 : vector<1x104x10xf32> to vector<104x10xf32>
    %cst_137 = arith.constant dense<0.000000e+00> : vector<8x10xf32>
    %147 = tpu.matmul %144, %146, %cst_137 {dimension_numbers = #tpu.dot_dimension_numbers<[1], [0], [0], [1], [0, 0, 1, 1], [], []>} : vector<8x104xf32>, vector<104x10xf32>, vector<8x10xf32> -> vector<8x10xf32>
    %148 = arith.addf %142, %147 : vector<8x10xf32>
    %149 = vector.extract_strided_slice %119 {offsets = [5, 0, 0], sizes = [1, 8, 104], strides = [1, 1, 1]} : vector<7x8x104xf32> to vector<1x8x104xf32>
    %150 = vector.shape_cast %149 : vector<1x8x104xf32> to vector<8x104xf32>
    %c5 = arith.constant 5 : index
    %c0_138 = arith.constant 0 : index
    %c0_139 = arith.constant 0 : index
    %151 = vector.load %arg10[%c5, %c0_138, %c0_139] : memref<7x104x10xf32, #tpu.memory_space<vmem>>, vector<1x104x10xf32>
    %152 = vector.shape_cast %151 : vector<1x104x10xf32> to vector<104x10xf32>
    %cst_140 = arith.constant dense<0.000000e+00> : vector<8x10xf32>
    %153 = tpu.matmul %150, %152, %cst_140 {dimension_numbers = #tpu.dot_dimension_numbers<[1], [0], [0], [1], [0, 0, 1, 1], [], []>} : vector<8x104xf32>, vector<104x10xf32>, vector<8x10xf32> -> vector<8x10xf32>
    %154 = arith.addf %148, %153 : vector<8x10xf32>
    %155 = vector.extract_strided_slice %119 {offsets = [6, 0, 0], sizes = [1, 8, 104], strides = [1, 1, 1]} : vector<7x8x104xf32> to vector<1x8x104xf32>
    %156 = vector.shape_cast %155 : vector<1x8x104xf32> to vector<8x104xf32>
    %c6 = arith.constant 6 : index
    %c0_141 = arith.constant 0 : index
    %c0_142 = arith.constant 0 : index
    %157 = vector.load %arg10[%c6, %c0_141, %c0_142] : memref<7x104x10xf32, #tpu.memory_space<vmem>>, vector<1x104x10xf32>
    %158 = vector.shape_cast %157 : vector<1x104x10xf32> to vector<104x10xf32>
    %cst_143 = arith.constant dense<0.000000e+00> : vector<8x10xf32>
    %159 = tpu.matmul %156, %158, %cst_143 {dimension_numbers = #tpu.dot_dimension_numbers<[1], [0], [0], [1], [0, 0, 1, 1], [], []>} : vector<8x104xf32>, vector<104x10xf32>, vector<8x10xf32> -> vector<8x10xf32>
    %160 = arith.addf %154, %159 : vector<8x10xf32>
    %c0_144 = arith.constant 0 : index
    %c0_145 = arith.constant 0 : index
    %161 = vector.load %arg11[%c0_144, %c0_145] : memref<1x10xf32, #tpu.memory_space<vmem>>, vector<1x10xf32>
    %162 = vector.broadcast %161 : vector<1x10xf32> to vector<8x10xf32>
    %163 = arith.addf %160, %162 : vector<8x10xf32>
    %c0_146 = arith.constant 0 : index
    %c0_147 = arith.constant 0 : index
    %164 = vector.load %arg12[%c0_146, %c0_147] : memref<8x10xf32, #tpu.memory_space<vmem>>, vector<8x10xf32>
    tpu.vector_store %arg12[%c0_146, %c0_147], %163 {strides = array<i32>} : memref<8x10xf32, #tpu.memory_space<vmem>>, vector<8x10xf32>,
    return
  }
  func.func @transform_0(%arg0: i32) -> (i32, i32, i32) {
    %c0_i32 = arith.constant 0 : i32
    %c0_i32_0 = arith.constant 0 : i32
    %c0_i32_1 = arith.constant 0 : i32
    return %c0_i32, %arg0, %c0_i32_0 : i32, i32, i32
  }
  func.func @transform_1(%arg0: i32) -> (i32, i32, i32) {
    %c0_i32 = arith.constant 0 : i32
    %c0_i32_0 = arith.constant 0 : i32
    %c0_i32_1 = arith.constant 0 : i32
    %c0_i32_2 = arith.constant 0 : i32
    return %c0_i32, %c0_i32_0, %c0_i32_1 : i32, i32, i32
  }
  func.func @transform_2(%arg0: i32) -> (i32, i32) {
    %c0_i32 = arith.constant 0 : i32
    %c0_i32_0 = arith.constant 0 : i32
    %c0_i32_1 = arith.constant 0 : i32
    return %c0_i32, %c0_i32_0 : i32, i32
  }
  func.func @transform_3(%arg0: i32) -> (i32, i32, i32) {
    %c0_i32 = arith.constant 0 : i32
    %c0_i32_0 = arith.constant 0 : i32
    %c0_i32_1 = arith.constant 0 : i32
    %c0_i32_2 = arith.constant 0 : i32
    return %c0_i32, %c0_i32_0, %c0_i32_1 : i32, i32, i32
  }
  func.func @transform_4(%arg0: i32) -> (i32, i32) {
    %c0_i32 = arith.constant 0 : i32
    %c0_i32_0 = arith.constant 0 : i32
    %c0_i32_1 = arith.constant 0 : i32
    return %c0_i32, %c0_i32_0 : i32, i32
  }
  func.func @transform_5(%arg0: i32) -> (i32, i32, i32) {
    %c0_i32 = arith.constant 0 : i32
    %c0_i32_0 = arith.constant 0 : i32
    %c0_i32_1 = arith.constant 0 : i32
    %c0_i32_2 = arith.constant 0 : i32
    return %c0_i32, %c0_i32_0, %c0_i32_1 : i32, i32, i32
  }
  func.func @transform_6(%arg0: i32) -> (i32, i32) {
    %c0_i32 = arith.constant 0 : i32
    %c0_i32_0 = arith.constant 0 : i32
    %c0_i32_1 = arith.constant 0 : i32
    return %c0_i32, %c0_i32_0 : i32, i32
  }
  func.func @transform_7(%arg0: i32) -> (i32, i32, i32) {
    %c0_i32 = arith.constant 0 : i32
    %c0_i32_0 = arith.constant 0 : i32
    %c0_i32_1 = arith.constant 0 : i32
    %c0_i32_2 = arith.constant 0 : i32
    return %c0_i32, %c0_i32_0, %c0_i32_1 : i32, i32, i32
  }
  func.func @transform_8(%arg0: i32) -> (i32, i32) {
    %c0_i32 = arith.constant 0 : i32
    %c0_i32_0 = arith.constant 0 : i32
    %c0_i32_1 = arith.constant 0 : i32
    return %c0_i32, %c0_i32_0 : i32, i32
  }
  func.func @transform_9(%arg0: i32) -> (i32, i32, i32) {
    %c0_i32 = arith.constant 0 : i32
    %c0_i32_0 = arith.constant 0 : i32
    %c0_i32_1 = arith.constant 0 : i32
    %c0_i32_2 = arith.constant 0 : i32
    return %c0_i32, %c0_i32_0, %c0_i32_1 : i32, i32, i32
  }
  func.func @transform_10(%arg0: i32) -> (i32, i32) {
    %c0_i32 = arith.constant 0 : i32
    %c0_i32_0 = arith.constant 0 : i32
    %c0_i32_1 = arith.constant 0 : i32
    return %c0_i32, %c0_i32_0 : i32, i32
  }
  func.func @transform_11(%arg0: i32) -> (i32, i32) {
    %c0_i32 = arith.constant 0 : i32
    %c0_i32_0 = arith.constant 0 : i32
    return %arg0, %c0_i32 : i32, i32
  }
}

</mosaic_0001>

<llo_original>
// kernel: forward.1
$region0: #{forward.1}
  #allocation0 [shape = 'u32[]', space=smem, size = 0x4, offset = 0x4, fixed_abs, tag = 'smem constant byte address 0x4 - core index']
  #allocation1 [shape = 'u32[144,128]{1,0:T(1,128)}', space=vmem, size = 0x12000, scoped, tag = 'internal scratch']
  #allocation2 [shape = 'f32[30,8,224]{2,1,0:T(8,128)}', space=vmem, size = 0x3c000, scoped, tag = 'scratch operand']
  #allocation3 [shape = 'f32[16,8,216]{2,1,0:T(8,128)}', space=vmem, size = 0x20000, scoped, tag = 'scratch operand']
  #allocation4 [shape = 'f32[16,8,112]{2,1,0:T(8,128)}', space=vmem, size = 0x10000, scoped, tag = 'scratch operand']
  %s0 = inlined_call_operand.vmem [shape: f32[30,8,28], index: 0, kind: input, shape index: {}]
  %s1 = inlined_call_operand.vmem [shape: f32[3,28,224], index: 1, kind: input, shape index: {}]
  %s2 = inlined_call_operand.vmem [shape: f32[1,224], index: 2, kind: input, shape index: {}]
  %s3 = inlined_call_operand.hbm [shape: f32[3,224,224], index: 3, kind: input, shape index: {}]
  %s4 = inlined_call_operand.vmem [shape: f32[1,224], index: 4, kind: input, shape index: {}]
  %s5 = inlined_call_operand.vmem [shape: f32[3,216,112], index: 5, kind: input, shape index: {}]
  %s6 = inlined_call_operand.vmem [shape: f32[1,112], index: 6, kind: input, shape index: {}]
  %s7 = inlined_call_operand.vmem [shape: f32[3,112,112], index: 7, kind: input, shape index: {}]
  %s8 = inlined_call_operand.vmem [shape: f32[1,112], index: 8, kind: input, shape index: {}]
  %s9 = inlined_call_operand.vmem [shape: f32[7,104,10], index: 9, kind: input, shape index: {}]
  %s10 = inlined_call_operand.vmem [shape: f32[1,10], index: 10, kind: input, shape index: {}]
  %s11 = inlined_call_operand.vmem [shape: f32[8,10], index: 11, kind: output, shape index: {}]
  %s12 = sld [smem:[#allocation0]]
  $region58: #{forward.1} parent=0
    _
  %s14 = ssub.s32 1, %s12
  %s15 = scalar_select 0, %s14, %s12
  $region1: #{forward.1} parent=0
    #allocation5 [shape = 'u8[688128]{0}', space=vmem, size = 0xa8000, scoped, tag = 'input window, operand 3, single buffered']
    #allocation6 [shape = 's32[1]{0}', space=sflag, size = 0x4, scoped, tag = 'scoped memory for forward.1']
    %16 = vsyncpa [#allocation6], 0
    // Predicated region
    $region2: #{forward.1} parent=1 // pred_check
      _
    $region3: #{forward.1} parent=1 // pred_check_branch
      %18 = sbr.rel (0) target = $region5
    $region4: #{forward.1} parent=1 // pred_region
      _
    $region5: #{forward.1} parent=1 // pred_fallthru
      _
    // Predicated region
    $region6: #{forward.1} parent=1 // pred_check
      _
    $region7: #{forward.1} parent=1 // pred_check_branch
      %20 = sbr.rel (0) target = $region9
    $region8: #{forward.1} parent=1 // pred_region
      _
    $region9: #{forward.1} parent=1 // pred_fallthru
      _
    // Predicated region
    $region10: #{forward.1} parent=1 // pred_check
      _
    $region11: #{forward.1} parent=1 // pred_check_branch
      %22 = sbr.rel (0) target = $region13
    $region12: #{forward.1} parent=1 // pred_region
      _
    $region13: #{forward.1} parent=1 // pred_fallthru
      _
    // Predicated region
    $region14: #{forward.1} parent=1 // pred_check
      _
    $region15: #{forward.1} parent=1 // pred_check_branch
      %24 = sbr.rel (0) target = $region17
    $region16: #{forward.1} parent=1 // pred_region
      %s26 = ssub.s32 21504, 21504
      %27 = vsyncadd [#allocation6], %s26
      %s28 = sshll.u32 [#allocation5], 4
      %s29 = int_to_ptr.vmem [resolvable:$true] %s28
      %34 = dma.hbm_to_vmem [thread:$0]  %s3, 21504, %s29, [#allocation6], 256, 256, 16
    $region17: #{forward.1} parent=1 // pred_fallthru
      _
    // Predicated region
    $region18: #{forward.1} parent=1 // pred_check
      _
    $region19: #{forward.1} parent=1 // pred_check_branch
      %36 = sbr.rel (0) target = $region21
    $region20: #{forward.1} parent=1 // pred_region
      _
    $region21: #{forward.1} parent=1 // pred_fallthru
      _
    // Predicated region
    $region22: #{forward.1} parent=1 // pred_check
      _
    $region23: #{forward.1} parent=1 // pred_check_branch
      %38 = sbr.rel (0) target = $region25
    $region24: #{forward.1} parent=1 // pred_region
      _
    $region25: #{forward.1} parent=1 // pred_fallthru
      _
    // Predicated region
    $region26: #{forward.1} parent=1 // pred_check
      _
    $region27: #{forward.1} parent=1 // pred_check_branch
      %40 = sbr.rel (0) target = $region29
    $region28: #{forward.1} parent=1 // pred_region
      _
    $region29: #{forward.1} parent=1 // pred_fallthru
      _
    // Predicated region
    $region30: #{forward.1} parent=1 // pred_check
      _
    $region31: #{forward.1} parent=1 // pred_check_branch
      %42 = sbr.rel (0) target = $region33
    $region32: #{forward.1} parent=1 // pred_region
      _
    $region33: #{forward.1} parent=1 // pred_fallthru
      _
    // Predicated region
    $region34: #{forward.1} parent=1 // pred_check
      _
    $region35: #{forward.1} parent=1 // pred_check_branch
      %44 = sbr.rel (0) target = $region37
    $region36: #{forward.1} parent=1 // pred_region
      _
    $region37: #{forward.1} parent=1 // pred_fallthru
      _
    // Predicated region
    $region38: #{forward.1} parent=1 // pred_check
      _
    $region39: #{forward.1} parent=1 // pred_check_branch
      %46 = sbr.rel (0) target = $region41
    $region40: #{forward.1} parent=1 // pred_region
      _
    $region41: #{forward.1} parent=1 // pred_fallthru
      _
    // Predicated region
    $region42: #{forward.1} parent=1 // pred_check
      _
    $region43: #{forward.1} parent=1 // pred_check_branch
      %48 = sbr.rel (0) target = $region45
    $region44: #{forward.1} parent=1 // pred_region
      _
    $region45: #{forward.1} parent=1 // pred_fallthru
      _
    // Predicated region
    $region46: #{forward.1} parent=1 // pred_check
      _
    $region47: #{forward.1} parent=1 // pred_check_branch
      %50 = sbr.rel (0) target = $region49
    $region48: #{forward.1} parent=1 // pred_region
      %51 = dma.done [#allocation6], 21504
    $region49: #{forward.1} parent=1 // pred_fallthru
      _
    %v52 = vld [vmem:[%s0] sm:$0xff]
    %v53 = vld [vmem:[%s0 + $0x8] sm:$0xff]
    %v54 = vld [vmem:[%s0 + $0x10] sm:$0xff]
    %v55 = vld [vmem:[%s0 + $0x18] sm:$0xff]
    %v56 = vld [vmem:[%s0 + $0x20] sm:$0xff]
    %v57 = vld [vmem:[%s0 + $0x28] sm:$0xff]
    %v58 = vld [vmem:[%s0 + $0x30] sm:$0xff]
    %v59 = vld [vmem:[%s0 + $0x38] sm:$0xff]
    %v60 = vld [vmem:[%s0 + $0x40] sm:$0xff]
    %v61 = vld [vmem:[%s0 + $0x48] sm:$0xff]
    %v62 = vld [vmem:[%s0 + $0x50] sm:$0xff]
    %v63 = vld [vmem:[%s0 + $0x58] sm:$0xff]
    %v64 = vld [vmem:[%s0 + $0x60] sm:$0xff]
    %v65 = vld [vmem:[%s0 + $0x68] sm:$0xff]
    %v66 = vld [vmem:[%s0 + $0x70] sm:$0xff]
    %v67 = vld [vmem:[%s0 + $0x78] sm:$0xff]
    %v68 = vld [vmem:[%s0 + $0x80] sm:$0xff]
    %v69 = vld [vmem:[%s0 + $0x88] sm:$0xff]
    %v70 = vld [vmem:[%s0 + $0x90] sm:$0xff]
    %v71 = vld [vmem:[%s0 + $0x98] sm:$0xff]
    %v72 = vld [vmem:[%s0 + $0xa0] sm:$0xff]
    %v73 = vld [vmem:[%s0 + $0xa8] sm:$0xff]
    %v74 = vld [vmem:[%s0 + $0xb0] sm:$0xff]
    %v75 = vld [vmem:[%s0 + $0xb8] sm:$0xff]
    %v76 = vld [vmem:[%s0 + $0xc0] sm:$0xff]
    %v77 = vld [vmem:[%s0 + $0xc8] sm:$0xff]
    %v78 = vld [vmem:[%s0 + $0xd0] sm:$0xff]
    %v79 = vld [vmem:[%s0 + $0xd8] sm:$0xff]
    %v80 = vld [vmem:[%s1] sm:$0xff]
    %v81 = vld [vmem:[%s1 + $0x8] sm:$0xff]
    %v82 = vld [vmem:[%s1 + $0x10] sm:$0xff]
    %v83 = vld [vmem:[%s1 + $0x18] sm:$0xff]
    %v84 = vld [vmem:[%s1 + $0x20] sm:$0xff]
    %v85 = vld [vmem:[%s1 + $0x28] sm:$0xff]
    %v86 = vld [vmem:[%s1 + $0x30] sm:$0xf]
    %v87 = vld [vmem:[%s1 + $0x38] sm:$0xf]
    %s88 = scalar_lea.vmem %s0, 8
    %v89 = vld [vmem:[%s88] sm:$0xff]
    %v90 = vld [vmem:[%s88 + $0x8] sm:$0xff]
    %v91 = vld [vmem:[%s88 + $0x10] sm:$0xff]
    %v92 = vld [vmem:[%s88 + $0x18] sm:$0xff]
    %v93 = vld [vmem:[%s88 + $0x20] sm:$0xff]
    %v94 = vld [vmem:[%s88 + $0x28] sm:$0xff]
    %v95 = vld [vmem:[%s88 + $0x30] sm:$0xff]
    %v96 = vld [vmem:[%s88 + $0x38] sm:$0xff]
    %v97 = vld [vmem:[%s88 + $0x40] sm:$0xff]
    %v98 = vld [vmem:[%s88 + $0x48] sm:$0xff]
    %v99 = vld [vmem:[%s88 + $0x50] sm:$0xff]
    %v100 = vld [vmem:[%s88 + $0x58] sm:$0xff]
    %v101 = vld [vmem:[%s88 + $0x60] sm:$0xff]
    %v102 = vld [vmem:[%s88 + $0x68] sm:$0xff]
    %v103 = vld [vmem:[%s88 + $0x70] sm:$0xff]
    %v104 = vld [vmem:[%s88 + $0x78] sm:$0xff]
    %v105 = vld [vmem:[%s88 + $0x80] sm:$0xff]
    %v106 = vld [vmem:[%s88 + $0x88] sm:$0xff]
    %v107 = vld [vmem:[%s88 + $0x90] sm:$0xff]
    %v108 = vld [vmem:[%s88 + $0x98] sm:$0xff]
    %v109 = vld [vmem:[%s88 + $0xa0] sm:$0xff]
    %v110 = vld [vmem:[%s88 + $0xa8] sm:$0xff]
    %v111 = vld [vmem:[%s88 + $0xb0] sm:$0xff]
    %v112 = vld [vmem:[%s88 + $0xb8] sm:$0xff]
    %v113 = vld [vmem:[%s88 + $0xc0] sm:$0xff]
    %v114 = vld [vmem:[%s88 + $0xc8] sm:$0xff]
    %v115 = vld [vmem:[%s88 + $0xd0] sm:$0xff]
    %v116 = vld [vmem:[%s88 + $0xd8] sm:$0xff]
    %s117 = scalar_lea.vmem %s1, 64
    %v118 = vld [vmem:[%s117] sm:$0xff]
    %v119 = vld [vmem:[%s117 + $0x8] sm:$0xff]
    %v120 = vld [vmem:[%s117 + $0x10] sm:$0xff]
    %v121 = vld [vmem:[%s117 + $0x18] sm:$0xff]
    %v122 = vld [vmem:[%s117 + $0x20] sm:$0xff]
    %v123 = vld [vmem:[%s117 + $0x28] sm:$0xff]
    %v124 = vld [vmem:[%s117 + $0x30] sm:$0xf]
    %v125 = vld [vmem:[%s117 + $0x38] sm:$0xf]
    %vm126 = vcmask 228352
    %v128 = vsel %vm126, %v89, 0
    %v131 = vsel %vm126, %v90, 0
    %v134 = vsel %vm126, %v91, 0
    %v137 = vsel %vm126, %v92, 0
    %v140 = vsel %vm126, %v93, 0
    %v143 = vsel %vm126, %v94, 0
    %v146 = vsel %vm126, %v95, 0
    %v149 = vsel %vm126, %v96, 0
    %v152 = vsel %vm126, %v97, 0
    %v155 = vsel %vm126, %v98, 0
    %v158 = vsel %vm126, %v99, 0
    %v161 = vsel %vm126, %v100, 0
    %v164 = vsel %vm126, %v101, 0
    %v167 = vsel %vm126, %v102, 0
    %v170 = vsel %vm126, %v103, 0
    %v173 = vsel %vm126, %v104, 0
    %v176 = vsel %vm126, %v105, 0
    %v179 = vsel %vm126, %v106, 0
    %v182 = vsel %vm126, %v107, 0
    %v185 = vsel %vm126, %v108, 0
    %v188 = vsel %vm126, %v109, 0
    %v191 = vsel %vm126, %v110, 0
    %v194 = vsel %vm126, %v111, 0
    %v197 = vsel %vm126, %v112, 0
    %v200 = vsel %vm126, %v113, 0
    %v203 = vsel %vm126, %v114, 0
    %v206 = vsel %vm126, %v115, 0
    %v209 = vsel %vm126, %v116, 0
    %vm211 = vcmask 1043456
    %v213 = vsel %vm211, %v124, 0
    %v216 = vsel %vm211, %v125, 0
    %218 = vmatprep.subr.mxu0 %v119
    %219 = vmatpush1.msra.mxu0 %v118
    %220 = vmatprep.subr.mxu0 %v121
    %221 = vmatpush1.msra.mxu0 %v120
    %222 = vmatprep.subr.mxu0 %v123
    %223 = vmatpush1.msra.mxu0 %v122
    %224 = vmatprep.subr.mxu0 %v216
    %225 = vmatpush1.msra.mxu0 %v213
    %226 = vmatprep.subr.mxu0 0.0
    %227 = vmatpush1.msra.mxu0 0.0
    %228 = vmatprep.subr.mxu0 0.0
    %229 = vmatpush1.msra.mxu0 0.0
    %230 = vmatprep.subr.mxu0 0.0
    %231 = vmatpush1.msra.mxu0 0.0
    %232 = vmatprep.subr.mxu0 0.0
    %233 = vmatpush1.msra.mxu0 0.0
    %234 = vmatprep.subr.mxu0 0.0
    %235 = vmatpush1.msra.mxu0 0.0
    %236 = vmatprep.subr.mxu0 0.0
    %237 = vmatpush1.msra.mxu0 0.0
    %238 = vmatprep.subr.mxu0 0.0
    %239 = vmatpush1.msra.mxu0 0.0
    %240 = vmatprep.subr.mxu0 0.0
    %241 = vmatpush1.msra.mxu0 0.0
    %242 = vmatprep.subr.mxu0 0.0
    %243 = vmatpush1.msra.mxu0 0.0
    %244 = vmatprep.subr.mxu0 0.0
    %245 = vmatpush1.msra.mxu0 0.0
    %246 = vmatprep.subr.mxu0 0.0
    %247 = vmatpush1.msra.mxu0 0.0
    %248 = vmatprep.subr.mxu0 0.0
    %249 = vmatpush1.msra.mxu0 0.0
    %250 = vmatprep.subr.mxu0 0.0
    %251 = vmatpush1.msra.mxu0 0.0
    %252 = vmatprep.subr.mxu0 0.0
    %253 = vmatpush1.msra.mxu0 0.0
    %254 = vmatprep.subr.mxu0 0.0
    %255 = vmatpush1.msra.mxu0 0.0
    %256 = vmatprep.subr.mxu0 0.0
    %257 = vmatpush1.msra.mxu0 0.0
    %258 = vmatprep.subr.mxu0 0.0
    %259 = vmatpush1.msra.mxu0 0.0
    %260 = vmatprep.subr.mxu0 0.0
    %261 = vmatpush1.msra.mxu0 0.0
    %262 = vmatprep.subr.mxu0 0.0
    %263 = vmatpush1.msra.mxu0 0.0
    %264 = vmatprep.subr.mxu0 0.0
    %265 = vmatpush1.msra.mxu0 0.0
    %266 = vmatprep.subr.mxu0 0.0
    %267 = vmatpush1.msra.mxu0 0.0
    %268 = vmatprep.subr.mxu0 0.0
    %269 = vmatpush1.msra.mxu0 0.0
    %270 = vmatprep.subr.mxu0 0.0
    %271 = vmatpush1.msra.mxu0 0.0
    %272 = vmatprep.subr.mxu0 0.0
    %273 = vmatpush1.msra.mxu0 0.0
    %274 = vmatprep.subr.mxu0 0.0
    %275 = vmatpush1.msra.mxu0 0.0
    %276 = vmatprep.subr.mxu0 0.0
    %277 = vmatpush1.msra.mxu0 0.0
    %278 = vmatprep.subr.mxu0 0.0
    %279 = vmatpush1.msra.mxu0 0.0
    %280 = vmatprep.subr.mxu0 0.0
    %281 = vmatpush1.msra.mxu0 0.0
    %282 = vmatprep.mubr.f32.mxu0 0.0
    %283 = vmatmul.mubr.f32.gmra.mrb[0].mxu0 %v128
    %v284 = vpop.f32.mrb[0].mxu0
    %v285 = vadd.f32 0.0, %v284
    %v286 = vpop.f32.mrb[0].mxu0
    %v287 = vadd.f32 0.0, %v286
    %288 = vmatprep.mubr.f32.mxu0 0.0
    %289 = vmatmul.mubr.f32.gmra.mrb[0].mxu0 %v131
    %v290 = vpop.f32.mrb[0].mxu0
    %v291 = vadd.f32 0.0, %v290
    %v292 = vpop.f32.mrb[0].mxu0
    %v293 = vadd.f32 0.0, %v292
    %294 = vmatprep.mubr.f32.mxu0 0.0
    %295 = vmatmul.mubr.f32.gmra.mrb[0].mxu0 %v134
    %v296 = vpop.f32.mrb[0].mxu0
    %v297 = vadd.f32 0.0, %v296
    %v298 = vpop.f32.mrb[0].mxu0
    %v299 = vadd.f32 0.0, %v298
    %300 = vmatprep.mubr.f32.mxu0 0.0
    %301 = vmatmul.mubr.f32.gmra.mrb[0].mxu0 %v137
    %v302 = vpop.f32.mrb[0].mxu0
    %v303 = vadd.f32 0.0, %v302
    %v304 = vpop.f32.mrb[0].mxu0
    %v305 = vadd.f32 0.0, %v304
    %306 = vmatprep.mubr.f32.mxu0 0.0
    %307 = vmatmul.mubr.f32.gmra.mrb[0].mxu0 %v140
    %v308 = vpop.f32.mrb[0].mxu0
    %v309 = vadd.f32 0.0, %v308
    %v310 = vpop.f32.mrb[0].mxu0
    %v311 = vadd.f32 0.0, %v310
    %312 = vmatprep.mubr.f32.mxu0 0.0
    %313 = vmatmul.mubr.f32.gmra.mrb[0].mxu0 %v143
    %v314 = vpop.f32.mrb[0].mxu0
    %v315 = vadd.f32 0.0, %v314
    %v316 = vpop.f32.mrb[0].mxu0
    %v317 = vadd.f32 0.0, %v316
    %318 = vmatprep.mubr.f32.mxu0 0.0
    %319 = vmatmul.mubr.f32.gmra.mrb[0].mxu0 %v146
    %v320 = vpop.f32.mrb[0].mxu0
    %v321 = vadd.f32 0.0, %v320
    %v322 = vpop.f32.mrb[0].mxu0
    %v323 = vadd.f32 0.0, %v322
    %324 = vmatprep.mubr.f32.mxu0 0.0
    %325 = vmatmul.mubr.f32.gmra.mrb[0].mxu0 %v149
    %v326 = vpop.f32.mrb[0].mxu0
    %v327 = vadd.f32 0.0, %v326
    %v328 = vpop.f32.mrb[0].mxu0
    %v329 = vadd.f32 0.0, %v328
    %330 = vmatprep.mubr.f32.mxu0 0.0
    %331 = vmatmul.mubr.f32.gmra.mrb[0].mxu0 %v152
    %v332 = vpop.f32.mrb[0].mxu0
    %v333 = vadd.f32 0.0, %v332
    %v334 = vpop.f32.mrb[0].mxu0
    %v335 = vadd.f32 0.0, %v334
    %336 = vmatprep.mubr.f32.mxu0 0.0
    %337 = vmatmul.mubr.f32.gmra.mrb[0].mxu0 %v155
    %v338 = vpop.f32.mrb[0].mxu0
    %v339 = vadd.f32 0.0, %v338
    %v340 = vpop.f32.mrb[0].mxu0
    %v341 = vadd.f32 0.0, %v340
    %342 = vmatprep.mubr.f32.mxu0 0.0
    %343 = vmatmul.mubr.f32.gmra.mrb[0].mxu0 %v158
    %v344 = vpop.f32.mrb[0].mxu0
    %v345 = vadd.f32 0.0, %v344
    %v346 = vpop.f32.mrb[0].mxu0
    %v347 = vadd.f32 0.0, %v346
    %348 = vmatprep.mubr.f32.mxu0 0.0
    %349 = vmatmul.mubr.f32.gmra.mrb[0].mxu0 %v161
    %v350 = vpop.f32.mrb[0].mxu0
    %v351 = vadd.f32 0.0, %v350
    %v352 = vpop.f32.mrb[0].mxu0
    %v353 = vadd.f32 0.0, %v352
    %354 = vmatprep.mubr.f32.mxu0 0.0
    %355 = vmatmul.mubr.f32.gmra.mrb[0].mxu0 %v164
    %v356 = vpop.f32.mrb[0].mxu0
    %v357 = vadd.f32 0.0, %v356
    %v358 = vpop.f32.mrb[0].mxu0
    %v359 = vadd.f32 0.0, %v358
    %360 = vmatprep.mubr.f32.mxu0 0.0
    %361 = vmatmul.mubr.f32.gmra.mrb[0].mxu0 %v167
    %v362 = vpop.f32.mrb[0].mxu0
    %v363 = vadd.f32 0.0, %v362
    %v364 = vpop.f32.mrb[0].mxu0
    %v365 = vadd.f32 0.0, %v364
    %366 = vmatprep.mubr.f32.mxu0 0.0
    %367 = vmatmul.mubr.f32.gmra.mrb[0].mxu0 %v170
    %v368 = vpop.f32.mrb[0].mxu0
    %v369 = vadd.f32 0.0, %v368
    %v370 = vpop.f32.mrb[0].mxu0
    %v371 = vadd.f32 0.0, %v370
    %372 = vmatprep.mubr.f32.mxu0 0.0
    %373 = vmatmul.mubr.f32.gmra.mrb[0].mxu0 %v173
    %v374 = vpop.f32.mrb[0].mxu0
    %v375 = vadd.f32 0.0, %v374
    %v376 = vpop.f32.mrb[0].mxu0
    %v377 = vadd.f32 0.0, %v376
    %378 = vmatprep.mubr.f32.mxu0 0.0
    %379 = vmatmul.mubr.f32.gmra.mrb[0].mxu0 %v176
    %v380 = vpop.f32.mrb[0].mxu0
    %v381 = vadd.f32 0.0, %v380
    %v382 = vpop.f32.mrb[0].mxu0
    %v383 = vadd.f32 0.0, %v382
    %384 = vmatprep.mubr.f32.mxu0 0.0
    %385 = vmatmul.mubr.f32.gmra.mrb[0].mxu0 %v179
    %v386 = vpop.f32.mrb[0].mxu0
    %v387 = vadd.f32 0.0, %v386
    %v388 = vpop.f32.mrb[0].mxu0
    %v389 = vadd.f32 0.0, %v388
    %390 = vmatprep.mubr.f32.mxu0 0.0
    %391 = vmatmul.mubr.f32.gmra.mrb[0].mxu0 %v182
    %v392 = vpop.f32.mrb[0].mxu0
    %v393 = vadd.f32 0.0, %v392
    %v394 = vpop.f32.mrb[0].mxu0
    %v395 = vadd.f32 0.0, %v394
    %396 = vmatprep.mubr.f32.mxu0 0.0
    %397 = vmatmul.mubr.f32.gmra.mrb[0].mxu0 %v185
    %v398 = vpop.f32.mrb[0].mxu0
    %v399 = vadd.f32 0.0, %v398
    %v400 = vpop.f32.mrb[0].mxu0
    %v401 = vadd.f32 0.0, %v400
    %402 = vmatprep.mubr.f32.mxu0 0.0
    %403 = vmatmul.mubr.f32.gmra.mrb[0].mxu0 %v188
    %v404 = vpop.f32.mrb[0].mxu0
    %v405 = vadd.f32 0.0, %v404
    %v406 = vpop.f32.mrb[0].mxu0
    %v407 = vadd.f32 0.0, %v406
    %408 = vmatprep.mubr.f32.mxu0 0.0
    %409 = vmatmul.mubr.f32.gmra.mrb[0].mxu0 %v191
    %v410 = vpop.f32.mrb[0].mxu0
    %v411 = vadd.f32 0.0, %v410
    %v412 = vpop.f32.mrb[0].mxu0
    %v413 = vadd.f32 0.0, %v412
    %414 = vmatprep.mubr.f32.mxu0 0.0
    %415 = vmatmul.mubr.f32.gmra.mrb[0].mxu0 %v194
    %v416 = vpop.f32.mrb[0].mxu0
    %v417 = vadd.f32 0.0, %v416
    %v418 = vpop.f32.mrb[0].mxu0
    %v419 = vadd.f32 0.0, %v418
    %420 = vmatprep.mubr.f32.mxu0 0.0
    %421 = vmatmul.mubr.f32.gmra.mrb[0].mxu0 %v197
    %v422 = vpop.f32.mrb[0].mxu0
    %v423 = vadd.f32 0.0, %v422
    %v424 = vpop.f32.mrb[0].mxu0
    %v425 = vadd.f32 0.0, %v424
    %426 = vmatprep.mubr.f32.mxu0 0.0
    %427 = vmatmul.mubr.f32.gmra.mrb[0].mxu0 %v200
    %v428 = vpop.f32.mrb[0].mxu0
    %v429 = vadd.f32 0.0, %v428
    %v430 = vpop.f32.mrb[0].mxu0
    %v431 = vadd.f32 0.0, %v430
    %432 = vmatprep.mubr.f32.mxu0 0.0
    %433 = vmatmul.mubr.f32.gmra.mrb[0].mxu0 %v203
    %v434 = vpop.f32.mrb[0].mxu0
    %v435 = vadd.f32 0.0, %v434
    %v436 = vpop.f32.mrb[0].mxu0
    %v437 = vadd.f32 0.0, %v436
    %438 = vmatprep.mubr.f32.mxu0 0.0
    %439 = vmatmul.mubr.f32.gmra.mrb[0].mxu0 %v206
    %v440 = vpop.f32.mrb[0].mxu0
    %v441 = vadd.f32 0.0, %v440
    %v442 = vpop.f32.mrb[0].mxu0
    %v443 = vadd.f32 0.0, %v442
    %444 = vmatprep.mubr.f32.mxu0 0.0
    %445 = vmatmul.mubr.f32.gmra.mrb[0].mxu0 %v209
    %v446 = vpop.f32.mrb[0].mxu0
    %v447 = vadd.f32 0.0, %v446
    %v448 = vpop.f32.mrb[0].mxu0
    %v449 = vadd.f32 0.0, %v448
    %450 = vdwg.mxu0
    %v452 = vsel %vm126, %v52, 0
    %v455 = vsel %vm126, %v53, 0
    %v458 = vsel %vm126, %v54, 0
    %v461 = vsel %vm126, %v55, 0
    %v464 = vsel %vm126, %v56, 0
    %v467 = vsel %vm126, %v57, 0
    %v470 = vsel %vm126, %v58, 0
    %v473 = vsel %vm126, %v59, 0
    %v476 = vsel %vm126, %v60, 0
    %v479 = vsel %vm126, %v61, 0
    %v482 = vsel %vm126, %v62, 0
    %v485 = vsel %vm126, %v63, 0
    %v488 = vsel %vm126, %v64, 0
    %v491 = vsel %vm126, %v65, 0
    %v494 = vsel %vm126, %v66, 0
    %v497 = vsel %vm126, %v67, 0
    %v500 = vsel %vm126, %v68, 0
    %v503 = vsel %vm126, %v69, 0
    %v506 = vsel %vm126, %v70, 0
    %v509 = vsel %vm126, %v71, 0
    %v512 = vsel %vm126, %v72, 0
    %v515 = vsel %vm126, %v73, 0
    %v518 = vsel %vm126, %v74, 0
    %v521 = vsel %vm126, %v75, 0
    %v524 = vsel %vm126, %v76, 0
    %v527 = vsel %vm126, %v77, 0
    %v530 = vsel %vm126, %v78, 0
    %v533 = vsel %vm126, %v79, 0
    %v536 = vsel %vm211, %v86, 0
    %v539 = vsel %vm211, %v87, 0
    %541 = vmatprep.subr.mxu0 %v81
    %542 = vmatpush1.msra.mxu0 %v80
    %543 = vmatprep.subr.mxu0 %v83
    %544 = vmatpush1.msra.mxu0 %v82
    %545 = vmatprep.subr.mxu0 %v85
    %546 = vmatpush1.msra.mxu0 %v84
    %547 = vmatprep.subr.mxu0 %v539
    %548 = vmatpush1.msra.mxu0 %v536
    %549 = vmatprep.subr.mxu0 0.0
    %550 = vmatpush1.msra.mxu0 0.0
    %551 = vmatprep.subr.mxu0 0.0
    %552 = vmatpush1.msra.mxu0 0.0
    %553 = vmatprep.subr.mxu0 0.0
    %554 = vmatpush1.msra.mxu0 0.0
    %555 = vmatprep.subr.mxu0 0.0
    %556 = vmatpush1.msra.mxu0 0.0
    %557 = vmatprep.subr.mxu0 0.0
    %558 = vmatpush1.msra.mxu0 0.0
    %559 = vmatprep.subr.mxu0 0.0
    %560 = vmatpush1.msra.mxu0 0.0
    %561 = vmatprep.subr.mxu0 0.0
    %562 = vmatpush1.msra.mxu0 0.0
    %563 = vmatprep.subr.mxu0 0.0
    %564 = vmatpush1.msra.mxu0 0.0
    %565 = vmatprep.subr.mxu0 0.0
    %566 = vmatpush1.msra.mxu0 0.0
    %567 = vmatprep.subr.mxu0 0.0
    %568 = vmatpush1.msra.mxu0 0.0
    %569 = vmatprep.subr.mxu0 0.0
    %570 = vmatpush1.msra.mxu0 0.0
    %571 = vmatprep.subr.mxu0 0.0
    %572 = vmatpush1.msra.mxu0 0.0
    %573 = vmatprep.subr.mxu0 0.0
    %574 = vmatpush1.msra.mxu0 0.0
    %575 = vmatprep.subr.mxu0 0.0
    %576 = vmatpush1.msra.mxu0 0.0
    %577 = vmatprep.subr.mxu0 0.0
    %578 = vmatpush1.msra.mxu0 0.0
    %579 = vmatprep.subr.mxu0 0.0
    %580 = vmatpush1.msra.mxu0 0.0
    %581 = vmatprep.subr.mxu0 0.0
    %582 = vmatpush1.msra.mxu0 0.0
    %583 = vmatprep.subr.mxu0 0.0
    %584 = vmatpush1.msra.mxu0 0.0
    %585 = vmatprep.subr.mxu0 0.0
    %586 = vmatpush1.msra.mxu0 0.0
    %587 = vmatprep.subr.mxu0 0.0
    %588 = vmatpush1.msra.mxu0 0.0
    %589 = vmatprep.subr.mxu0 0.0
    %590 = vmatpush1.msra.mxu0 0.0
    %591 = vmatprep.subr.mxu0 0.0
    %592 = vmatpush1.msra.mxu0 0.0
    %593 = vmatprep.subr.mxu0 0.0
    %594 = vmatpush1.msra.mxu0 0.0
    %595 = vmatprep.subr.mxu0 0.0
    %596 = vmatpush1.msra.mxu0 0.0
    %597 = vmatprep.subr.mxu0 0.0
    %598 = vmatpush1.msra.mxu0 0.0
    %599 = vmatprep.subr.mxu0 0.0
    %600 = vmatpush1.msra.mxu0 0.0
    %601 = vmatprep.subr.mxu0 0.0
    %602 = vmatpush1.msra.mxu0 0.0
    %603 = vmatprep.subr.mxu0 0.0
    %604 = vmatpush1.msra.mxu0 0.0
    %605 = vmatprep.mubr.f32.mxu0 0.0
    %606 = vmatmul.mubr.f32.gmra.mrb[0].mxu0 %v452
    %v607 = vpop.f32.mrb[0].mxu0
    %v608 = vadd.f32 %v285, %v607
    %v609 = vpop.f32.mrb[0].mxu0
    %v610 = vadd.f32 %v287, %v609
    %611 = vmatprep.mubr.f32.mxu0 0.0
    %612 = vmatmul.mubr.f32.gmra.mrb[0].mxu0 %v455
    %v613 = vpop.f32.mrb[0].mxu0
    %v614 = vadd.f32 %v291, %v613
    %v615 = vpop.f32.mrb[0].mxu0
    %v616 = vadd.f32 %v293, %v615
    %617 = vmatprep.mubr.f32.mxu0 0.0
    %618 = vmatmul.mubr.f32.gmra.mrb[0].mxu0 %v458
    %v619 = vpop.f32.mrb[0].mxu0
    %v620 = vadd.f32 %v297, %v619
    %v621 = vpop.f32.mrb[0].mxu0
    %v622 = vadd.f32 %v299, %v621
    %623 = vmatprep.mubr.f32.mxu0 0.0
    %624 = vmatmul.mubr.f32.gmra.mrb[0].mxu0 %v461
    %v625 = vpop.f32.mrb[0].mxu0
    %v626 = vadd.f32 %v303, %v625
    %v627 = vpop.f32.mrb[0].mxu0
    %v628 = vadd.f32 %v305, %v627
    %629 = vmatprep.mubr.f32.mxu0 0.0
    %630 = vmatmul.mubr.f32.gmra.mrb[0].mxu0 %v464
    %v631 = vpop.f32.mrb[0].mxu0
    %v632 = vadd.f32 %v309, %v631
    %v633 = vpop.f32.mrb[0].mxu0
    %v634 = vadd.f32 %v311, %v633
    %635 = vmatprep.mubr.f32.mxu0 0.0
    %636 = vmatmul.mubr.f32.gmra.mrb[0].mxu0 %v467
    %v637 = vpop.f32.mrb[0].mxu0
    %v638 = vadd.f32 %v315, %v637
    %v639 = vpop.f32.mrb[0].mxu0
    %v640 = vadd.f32 %v317, %v639
    %641 = vmatprep.mubr.f32.mxu0 0.0
    %642 = vmatmul.mubr.f32.gmra.mrb[0].mxu0 %v470
    %v643 = vpop.f32.mrb[0].mxu0
    %v644 = vadd.f32 %v321, %v643
    %v645 = vpop.f32.mrb[0].mxu0
    %v646 = vadd.f32 %v323, %v645
    %647 = vmatprep.mubr.f32.mxu0 0.0
    %648 = vmatmul.mubr.f32.gmra.mrb[0].mxu0 %v473
    %v649 = vpop.f32.mrb[0].mxu0
    %v650 = vadd.f32 %v327, %v649
    %v651 = vpop.f32.mrb[0].mxu0
    %v652 = vadd.f32 %v329, %v651
    %653 = vmatprep.mubr.f32.mxu0 0.0
    %654 = vmatmul.mubr.f32.gmra.mrb[0].mxu0 %v476
    %v655 = vpop.f32.mrb[0].mxu0
    %v656 = vadd.f32 %v333, %v655
    %v657 = vpop.f32.mrb[0].mxu0
    %v658 = vadd.f32 %v335, %v657
    %659 = vmatprep.mubr.f32.mxu0 0.0
    %660 = vmatmul.mubr.f32.gmra.mrb[0].mxu0 %v479
    %v661 = vpop.f32.mrb[0].mxu0
    %v662 = vadd.f32 %v339, %v661
    %v663 = vpop.f32.mrb[0].mxu0
    %v664 = vadd.f32 %v341, %v663
    %665 = vmatprep.mubr.f32.mxu0 0.0
    %666 = vmatmul.mubr.f32.gmra.mrb[0].mxu0 %v482
    %v667 = vpop.f32.mrb[0].mxu0
    %v668 = vadd.f32 %v345, %v667
    %v669 = vpop.f32.mrb[0].mxu0
    %v670 = vadd.f32 %v347, %v669
    %671 = vmatprep.mubr.f32.mxu0 0.0
    %672 = vmatmul.mubr.f32.gmra.mrb[0].mxu0 %v485
    %v673 = vpop.f32.mrb[0].mxu0
    %v674 = vadd.f32 %v351, %v673
    %v675 = vpop.f32.mrb[0].mxu0
    %v676 = vadd.f32 %v353, %v675
    %677 = vmatprep.mubr.f32.mxu0 0.0
    %678 = vmatmul.mubr.f32.gmra.mrb[0].mxu0 %v488
    %v679 = vpop.f32.mrb[0].mxu0
    %v680 = vadd.f32 %v357, %v679
    %v681 = vpop.f32.mrb[0].mxu0
    %v682 = vadd.f32 %v359, %v681
    %683 = vmatprep.mubr.f32.mxu0 0.0
    %684 = vmatmul.mubr.f32.gmra.mrb[0].mxu0 %v491
    %v685 = vpop.f32.mrb[0].mxu0
    %v686 = vadd.f32 %v363, %v685
    %v687 = vpop.f32.mrb[0].mxu0
    %v688 = vadd.f32 %v365, %v687
    %689 = vmatprep.mubr.f32.mxu0 0.0
    %690 = vmatmul.mubr.f32.gmra.mrb[0].mxu0 %v494
    %v691 = vpop.f32.mrb[0].mxu0
    %v692 = vadd.f32 %v369, %v691
    %v693 = vpop.f32.mrb[0].mxu0
    %v694 = vadd.f32 %v371, %v693
    %695 = vmatprep.mubr.f32.mxu0 0.0
    %696 = vmatmul.mubr.f32.gmra.mrb[0].mxu0 %v497
    %v697 = vpop.f32.mrb[0].mxu0
    %v698 = vadd.f32 %v375, %v697
    %v699 = vpop.f32.mrb[0].mxu0
    %v700 = vadd.f32 %v377, %v699
    %701 = vmatprep.mubr.f32.mxu0 0.0
    %702 = vmatmul.mubr.f32.gmra.mrb[0].mxu0 %v500
    %v703 = vpop.f32.mrb[0].mxu0
    %v704 = vadd.f32 %v381, %v703
    %v705 = vpop.f32.mrb[0].mxu0
    %v706 = vadd.f32 %v383, %v705
    %707 = vmatprep.mubr.f32.mxu0 0.0
    %708 = vmatmul.mubr.f32.gmra.mrb[0].mxu0 %v503
    %v709 = vpop.f32.mrb[0].mxu0
    %v710 = vadd.f32 %v387, %v709
    %v711 = vpop.f32.mrb[0].mxu0
    %v712 = vadd.f32 %v389, %v711
    %713 = vmatprep.mubr.f32.mxu0 0.0
    %714 = vmatmul.mubr.f32.gmra.mrb[0].mxu0 %v506
    %v715 = vpop.f32.mrb[0].mxu0
    %v716 = vadd.f32 %v393, %v715
    %v717 = vpop.f32.mrb[0].mxu0
    %v718 = vadd.f32 %v395, %v717
    %719 = vmatprep.mubr.f32.mxu0 0.0
    %720 = vmatmul.mubr.f32.gmra.mrb[0].mxu0 %v509
    %v721 = vpop.f32.mrb[0].mxu0
    %v722 = vadd.f32 %v399, %v721
    %v723 = vpop.f32.mrb[0].mxu0
    %v724 = vadd.f32 %v401, %v723
    %725 = vmatprep.mubr.f32.mxu0 0.0
    %726 = vmatmul.mubr.f32.gmra.mrb[0].mxu0 %v512
    %v727 = vpop.f32.mrb[0].mxu0
    %v728 = vadd.f32 %v405, %v727
    %v729 = vpop.f32.mrb[0].mxu0
    %v730 = vadd.f32 %v407, %v729
    %731 = vmatprep.mubr.f32.mxu0 0.0
    %732 = vmatmul.mubr.f32.gmra.mrb[0].mxu0 %v515
    %v733 = vpop.f32.mrb[0].mxu0
    %v734 = vadd.f32 %v411, %v733
    %v735 = vpop.f32.mrb[0].mxu0
    %v736 = vadd.f32 %v413, %v735
    %737 = vmatprep.mubr.f32.mxu0 0.0
    %738 = vmatmul.mubr.f32.gmra.mrb[0].mxu0 %v518
    %v739 = vpop.f32.mrb[0].mxu0
    %v740 = vadd.f32 %v417, %v739
    %v741 = vpop.f32.mrb[0].mxu0
    %v742 = vadd.f32 %v419, %v741
    %743 = vmatprep.mubr.f32.mxu0 0.0
    %744 = vmatmul.mubr.f32.gmra.mrb[0].mxu0 %v521
    %v745 = vpop.f32.mrb[0].mxu0
    %v746 = vadd.f32 %v423, %v745
    %v747 = vpop.f32.mrb[0].mxu0
    %v748 = vadd.f32 %v425, %v747
    %749 = vmatprep.mubr.f32.mxu0 0.0
    %750 = vmatmul.mubr.f32.gmra.mrb[0].mxu0 %v524
    %v751 = vpop.f32.mrb[0].mxu0
    %v752 = vadd.f32 %v429, %v751
    %v753 = vpop.f32.mrb[0].mxu0
    %v754 = vadd.f32 %v431, %v753
    %755 = vmatprep.mubr.f32.mxu0 0.0
    %756 = vmatmul.mubr.f32.gmra.mrb[0].mxu0 %v527
    %v757 = vpop.f32.mrb[0].mxu0
    %v758 = vadd.f32 %v435, %v757
    %v759 = vpop.f32.mrb[0].mxu0
    %v760 = vadd.f32 %v437, %v759
    %761 = vmatprep.mubr.f32.mxu0 0.0
    %762 = vmatmul.mubr.f32.gmra.mrb[0].mxu0 %v530
    %v763 = vpop.f32.mrb[0].mxu0
    %v764 = vadd.f32 %v441, %v763
    %v765 = vpop.f32.mrb[0].mxu0
    %v766 = vadd.f32 %v443, %v765
    %767 = vmatprep.mubr.f32.mxu0 0.0
    %768 = vmatmul.mubr.f32.gmra.mrb[0].mxu0 %v533
    %v769 = vpop.f32.mrb[0].mxu0
    %v770 = vadd.f32 %v447, %v769
    %v771 = vpop.f32.mrb[0].mxu0
    %v772 = vadd.f32 %v449, %v771
    %773 = vdwg.mxu0
    %s774 = scalar_lea.vmem %s0, 16
    %v775 = vld [vmem:[%s774] sm:$0xff]
    %v776 = vld [vmem:[%s774 + $0x8] sm:$0xff]
    %v777 = vld [vmem:[%s774 + $0x10] sm:$0xff]
    %v778 = vld [vmem:[%s774 + $0x18] sm:$0xff]
    %v779 = vld [vmem:[%s774 + $0x20] sm:$0xff]
    %v780 = vld [vmem:[%s774 + $0x28] sm:$0xff]
    %v781 = vld [vmem:[%s774 + $0x30] sm:$0xff]
    %v782 = vld [vmem:[%s774 + $0x38] sm:$0xff]
    %v783 = vld [vmem:[%s774 + $0x40] sm:$0xff]
    %v784 = vld [vmem:[%s774 + $0x48] sm:$0xff]
    %v785 = vld [vmem:[%s774 + $0x50] sm:$0xff]
    %v786 = vld [vmem:[%s774 + $0x58] sm:$0xff]
    %v787 = vld [vmem:[%s774 + $0x60] sm:$0xff]
    %v788 = vld [vmem:[%s774 + $0x68] sm:$0xff]
    %v789 = vld [vmem:[%s774 + $0x70] sm:$0xff]
    %v790 = vld [vmem:[%s774 + $0x78] sm:$0xff]
    %v791 = vld [vmem:[%s774 + $0x80] sm:$0xff]
    %v792 = vld [vmem:[%s774 + $0x88] sm:$0xff]
    %v793 = vld [vmem:[%s774 + $0x90] sm:$0xff]
    %v794 = vld [vmem:[%s774 + $0x98] sm:$0xff]
    %v795 = vld [vmem:[%s774 + $0xa0] sm:$0xff]
    %v796 = vld [vmem:[%s774 + $0xa8] sm:$0xff]
    %v797 = vld [vmem:[%s774 + $0xb0] sm:$0xff]
    %v798 = vld [vmem:[%s774 + $0xb8] sm:$0xff]
    %v799 = vld [vmem:[%s774 + $0xc0] sm:$0xff]
    %v800 = vld [vmem:[%s774 + $0xc8] sm:$0xff]
    %v801 = vld [vmem:[%s774 + $0xd0] sm:$0xff]
    %v802 = vld [vmem:[%s774 + $0xd8] sm:$0xff]
    %s803 = scalar_lea.vmem %s1, 128
    %v804 = vld [vmem:[%s803] sm:$0xff]
    %v805 = vld [vmem:[%s803 + $0x8] sm:$0xff]
    %v806 = vld [vmem:[%s803 + $0x10] sm:$0xff]
    %v807 = vld [vmem:[%s803 + $0x18] sm:$0xff]
    %v808 = vld [vmem:[%s803 + $0x20] sm:$0xff]
    %v809 = vld [vmem:[%s803 + $0x28] sm:$0xff]
    %v810 = vld [vmem:[%s803 + $0x30] sm:$0xf]
    %v811 = vld [vmem:[%s803 + $0x38] sm:$0xf]
    %v813 = vsel %vm126, %v775, 0
    %v816 = vsel %vm126, %v776, 0
    %v819 = vsel %vm126, %v777, 0
    %v822 = vsel %vm126, %v778, 0
    %v825 = vsel %vm126, %v779, 0
    %v828 = vsel %vm126, %v780, 0
    %v831 = vsel %vm126, %v781, 0
    %v834 = vsel %vm126, %v782, 0
    %v837 = vsel %vm126, %v783, 0
    %v840 = vsel %vm126, %v784, 0
    %v843 = vsel %vm126, %v785, 0
    %v846 = vsel %vm126, %v786, 0
    %v849 = vsel %vm126, %v787, 0
    %v852 = vsel %vm126, %v788, 0
    %v855 = vsel %vm126, %v789, 0
    %v858 = vsel %vm126, %v790, 0
    %v861 = vsel %vm126, %v791, 0
    %v864 = vsel %vm126, %v792, 0
    %v867 = vsel %vm126, %v793, 0
    %v870 = vsel %vm126, %v794, 0
    %v873 = vsel %vm126, %v795, 0
    %v876 = vsel %vm126, %v796, 0
    %v879 = vsel %vm126, %v797, 0
    %v882 = vsel %vm126, %v798, 0
    %v885 = vsel %vm126, %v799, 0
    %v888 = vsel %vm126, %v800, 0
    %v891 = vsel %vm126, %v801, 0
    %v894 = vsel %vm126, %v802, 0
    %v897 = vsel %vm211, %v810, 0
    %v900 = vsel %vm211, %v811, 0
    %902 = vmatprep.subr.mxu0 %v805
    %903 = vmatpush1.msra.mxu0 %v804
    %904 = vmatprep.subr.mxu0 %v807
    %905 = vmatpush1.msra.mxu0 %v806
    %906 = vmatprep.subr.mxu0 %v809
    %907 = vmatpush1.msra.mxu0 %v808
    %908 = vmatprep.subr.mxu0 %v900
    %909 = vmatpush1.msra.mxu0 %v897
    %910 = vmatprep.subr.mxu0 0.0
    %911 = vmatpush1.msra.mxu0 0.0
    %912 = vmatprep.subr.mxu0 0.0
    %913 = vmatpush1.msra.mxu0 0.0
    %914 = vmatprep.subr.mxu0 0.0
    %915 = vmatpush1.msra.mxu0 0.0
    %916 = vmatprep.subr.mxu0 0.0
    %917 = vmatpush1.msra.mxu0 0.0
    %918 = vmatprep.subr.mxu0 0.0
    %919 = vmatpush1.msra.mxu0 0.0
    %920 = vmatprep.subr.mxu0 0.0
    %921 = vmatpush1.msra.mxu0 0.0
    %922 = vmatprep.subr.mxu0 0.0
    %923 = vmatpush1.msra.mxu0 0.0
    %924 = vmatprep.subr.mxu0 0.0
    %925 = vmatpush1.msra.mxu0 0.0
    %926 = vmatprep.subr.mxu0 0.0
    %927 = vmatpush1.msra.mxu0 0.0
    %928 = vmatprep.subr.mxu0 0.0
    %929 = vmatpush1.msra.mxu0 0.0
    %930 = vmatprep.subr.mxu0 0.0
    %931 = vmatpush1.msra.mxu0 0.0
    %932 = vmatprep.subr.mxu0 0.0
    %933 = vmatpush1.msra.mxu0 0.0
    %934 = vmatprep.subr.mxu0 0.0
    %935 = vmatpush1.msra.mxu0 0.0
    %936 = vmatprep.subr.mxu0 0.0
    %937 = vmatpush1.msra.mxu0 0.0
    %938 = vmatprep.subr.mxu0 0.0
    %939 = vmatpush1.msra.mxu0 0.0
    %940 = vmatprep.subr.mxu0 0.0
    %941 = vmatpush1.msra.mxu0 0.0
    %942 = vmatprep.subr.mxu0 0.0
    %943 = vmatpush1.msra.mxu0 0.0
    %944 = vmatprep.subr.mxu0 0.0
    %945 = vmatpush1.msra.mxu0 0.0
    %946 = vmatprep.subr.mxu0 0.0
    %947 = vmatpush1.msra.mxu0 0.0
    %948 = vmatprep.subr.mxu0 0.0
    %949 = vmatpush1.msra.mxu0 0.0
    %950 = vmatprep.subr.mxu0 0.0
    %951 = vmatpush1.msra.mxu0 0.0
    %952 = vmatprep.subr.mxu0 0.0
    %953 = vmatpush1.msra.mxu0 0.0
    %954 = vmatprep.subr.mxu0 0.0
    %955 = vmatpush1.msra.mxu0 0.0
    %956 = vmatprep.subr.mxu0 0.0
    %957 = vmatpush1.msra.mxu0 0.0
    %958 = vmatprep.subr.mxu0 0.0
    %959 = vmatpush1.msra.mxu0 0.0
    %960 = vmatprep.subr.mxu0 0.0
    %961 = vmatpush1.msra.mxu0 0.0
    %962 = vmatprep.subr.mxu0 0.0
    %963 = vmatpush1.msra.mxu0 0.0
    %964 = vmatprep.subr.mxu0 0.0
    %965 = vmatpush1.msra.mxu0 0.0
    %966 = vmatprep.mubr.f32.mxu0 0.0
    %967 = vmatmul.mubr.f32.gmra.mrb[0].mxu0 %v813
    %v968 = vpop.f32.mrb[0].mxu0
    %v969 = vadd.f32 0.0, %v968
    %v970 = vpop.f32.mrb[0].mxu0
    %v971 = vadd.f32 0.0, %v970
    %972 = vmatprep.mubr.f32.mxu0 0.0
    %973 = vmatmul.mubr.f32.gmra.mrb[0].mxu0 %v816
    %v974 = vpop.f32.mrb[0].mxu0
    %v975 = vadd.f32 0.0, %v974
    %v976 = vpop.f32.mrb[0].mxu0
    %v977 = vadd.f32 0.0, %v976
    %978 = vmatprep.mubr.f32.mxu0 0.0
    %979 = vmatmul.mubr.f32.gmra.mrb[0].mxu0 %v819
    %v980 = vpop.f32.mrb[0].mxu0
    %v981 = vadd.f32 0.0, %v980
    %v982 = vpop.f32.mrb[0].mxu0
    %v983 = vadd.f32 0.0, %v982
    %984 = vmatprep.mubr.f32.mxu0 0.0
    %985 = vmatmul.mubr.f32.gmra.mrb[0].mxu0 %v822
    %v986 = vpop.f32.mrb[0].mxu0
    %v987 = vadd.f32 0.0, %v986
    %v988 = vpop.f32.mrb[0].mxu0
    %v989 = vadd.f32 0.0, %v988
    %990 = vmatprep.mubr.f32.mxu0 0.0
    %991 = vmatmul.mubr.f32.gmra.mrb[0].mxu0 %v825
    %v992 = vpop.f32.mrb[0].mxu0
    %v993 = vadd.f32 0.0, %v992
    %v994 = vpop.f32.mrb[0].mxu0
    %v995 = vadd.f32 0.0, %v994
    %996 = vmatprep.mubr.f32.mxu0 0.0
    %997 = vmatmul.mubr.f32.gmra.mrb[0].mxu0 %v828
    %v998 = vpop.f32.mrb[0].mxu0
    %v999 = vadd.f32 0.0, %v998
    %v1000 = vpop.f32.mrb[0].mxu0
    %v1001 = vadd.f32 0.0, %v1000
    %1002 = vmatprep.mubr.f32.mxu0 0.0
    %1003 = vmatmul.mubr.f32.gmra.mrb[0].mxu0 %v831
    %v1004 = vpop.f32.mrb[0].mxu0
    %v1005 = vadd.f32 0.0, %v1004
    %v1006 = vpop.f32.mrb[0].mxu0
    %v1007 = vadd.f32 0.0, %v1006
    %1008 = vmatprep.mubr.f32.mxu0 0.0
    %1009 = vmatmul.mubr.f32.gmra.mrb[0].mxu0 %v834
    %v1010 = vpop.f32.mrb[0].mxu0
    %v1011 = vadd.f32 0.0, %v1010
    %v1012 = vpop.f32.mrb[0].mxu0
    %v1013 = vadd.f32 0.0, %v1012
    %1014 = vmatprep.mubr.f32.mxu0 0.0
    %1015 = vmatmul.mubr.f32.gmra.mrb[0].mxu0 %v837
    %v1016 = vpop.f32.mrb[0].mxu0
    %v1017 = vadd.f32 0.0, %v1016
    %v1018 = vpop.f32.mrb[0].mxu0
    %v1019 = vadd.f32 0.0, %v1018
    %1020 = vmatprep.mubr.f32.mxu0 0.0
    %1021 = vmatmul.mubr.f32.gmra.mrb[0].mxu0 %v840
    %v1022 = vpop.f32.mrb[0].mxu0
    %v1023 = vadd.f32 0.0, %v1022
    %v1024 = vpop.f32.mrb[0].mxu0
    %v1025 = vadd.f32 0.0, %v1024
    %1026 = vmatprep.mubr.f32.mxu0 0.0
    %1027 = vmatmul.mubr.f32.gmra.mrb[0].mxu0 %v843
    %v1028 = vpop.f32.mrb[0].mxu0
    %v1029 = vadd.f32 0.0, %v1028
    %v1030 = vpop.f32.mrb[0].mxu0
    %v1031 = vadd.f32 0.0, %v1030
    %1032 = vmatprep.mubr.f32.mxu0 0.0
    %1033 = vmatmul.mubr.f32.gmra.mrb[0].mxu0 %v846
    %v1034 = vpop.f32.mrb[0].mxu0
    %v1035 = vadd.f32 0.0, %v1034
    %v1036 = vpop.f32.mrb[0].mxu0
    %v1037 = vadd.f32 0.0, %v1036
    %1038 = vmatprep.mubr.f32.mxu0 0.0
    %1039 = vmatmul.mubr.f32.gmra.mrb[0].mxu0 %v849
    %v1040 = vpop.f32.mrb[0].mxu0
    %v1041 = vadd.f32 0.0, %v1040
    %v1042 = vpop.f32.mrb[0].mxu0
    %v1043 = vadd.f32 0.0, %v1042
    %1044 = vmatprep.mubr.f32.mxu0 0.0
    %1045 = vmatmul.mubr.f32.gmra.mrb[0].mxu0 %v852
    %v1046 = vpop.f32.mrb[0].mxu0
    %v1047 = vadd.f32 0.0, %v1046
    %v1048 = vpop.f32.mrb[0].mxu0
    %v1049 = vadd.f32 0.0, %v1048
    %1050 = vmatprep.mubr.f32.mxu0 0.0
    %1051 = vmatmul.mubr.f32.gmra.mrb[0].mxu0 %v855
    %v1052 = vpop.f32.mrb[0].mxu0
    %v1053 = vadd.f32 0.0, %v1052
    %v1054 = vpop.f32.mrb[0].mxu0
    %v1055 = vadd.f32 0.0, %v1054
    %1056 = vmatprep.mubr.f32.mxu0 0.0
    %1057 = vmatmul.mubr.f32.gmra.mrb[0].mxu0 %v858
    %v1058 = vpop.f32.mrb[0].mxu0
    %v1059 = vadd.f32 0.0, %v1058
    %v1060 = vpop.f32.mrb[0].mxu0
    %v1061 = vadd.f32 0.0, %v1060
    %1062 = vmatprep.mubr.f32.mxu0 0.0
    %1063 = vmatmul.mubr.f32.gmra.mrb[0].mxu0 %v861
    %v1064 = vpop.f32.mrb[0].mxu0
    %v1065 = vadd.f32 0.0, %v1064
    %v1066 = vpop.f32.mrb[0].mxu0
    %v1067 = vadd.f32 0.0, %v1066
    %1068 = vmatprep.mubr.f32.mxu0 0.0
    %1069 = vmatmul.mubr.f32.gmra.mrb[0].mxu0 %v864
    %v1070 = vpop.f32.mrb[0].mxu0
    %v1071 = vadd.f32 0.0, %v1070
    %v1072 = vpop.f32.mrb[0].mxu0
    %v1073 = vadd.f32 0.0, %v1072
    %1074 = vmatprep.mubr.f32.mxu0 0.0
    %1075 = vmatmul.mubr.f32.gmra.mrb[0].mxu0 %v867
    %v1076 = vpop.f32.mrb[0].mxu0
    %v1077 = vadd.f32 0.0, %v1076
    %v1078 = vpop.f32.mrb[0].mxu0
    %v1079 = vadd.f32 0.0, %v1078
    %1080 = vmatprep.mubr.f32.mxu0 0.0
    %1081 = vmatmul.mubr.f32.gmra.mrb[0].mxu0 %v870
    %v1082 = vpop.f32.mrb[0].mxu0
    %v1083 = vadd.f32 0.0, %v1082
    %v1084 = vpop.f32.mrb[0].mxu0
    %v1085 = vadd.f32 0.0, %v1084
    %1086 = vmatprep.mubr.f32.mxu0 0.0
    %1087 = vmatmul.mubr.f32.gmra.mrb[0].mxu0 %v873
    %v1088 = vpop.f32.mrb[0].mxu0
    %v1089 = vadd.f32 0.0, %v1088
    %v1090 = vpop.f32.mrb[0].mxu0
    %v1091 = vadd.f32 0.0, %v1090
    %1092 = vmatprep.mubr.f32.mxu0 0.0
    %1093 = vmatmul.mubr.f32.gmra.mrb[0].mxu0 %v876
    %v1094 = vpop.f32.mrb[0].mxu0
    %v1095 = vadd.f32 0.0, %v1094
    %v1096 = vpop.f32.mrb[0].mxu0
    %v1097 = vadd.f32 0.0, %v1096
    %1098 = vmatprep.mubr.f32.mxu0 0.0
    %1099 = vmatmul.mubr.f32.gmra.mrb[0].mxu0 %v879
    %v1100 = vpop.f32.mrb[0].mxu0
    %v1101 = vadd.f32 0.0, %v1100
    %v1102 = vpop.f32.mrb[0].mxu0
    %v1103 = vadd.f32 0.0, %v1102
    %1104 = vmatprep.mubr.f32.mxu0 0.0
    %1105 = vmatmul.mubr.f32.gmra.mrb[0].mxu0 %v882
    %v1106 = vpop.f32.mrb[0].mxu0
    %v1107 = vadd.f32 0.0, %v1106
    %v1108 = vpop.f32.mrb[0].mxu0
    %v1109 = vadd.f32 0.0, %v1108
    %1110 = vmatprep.mubr.f32.mxu0 0.0
    %1111 = vmatmul.mubr.f32.gmra.mrb[0].mxu0 %v885
    %v1112 = vpop.f32.mrb[0].mxu0
    %v1113 = vadd.f32 0.0, %v1112
    %v1114 = vpop.f32.mrb[0].mxu0
    %v1115 = vadd.f32 0.0, %v1114
    %1116 = vmatprep.mubr.f32.mxu0 0.0
    %1117 = vmatmul.mubr.f32.gmra.mrb[0].mxu0 %v888
    %v1118 = vpop.f32.mrb[0].mxu0
    %v1119 = vadd.f32 0.0, %v1118
    %v1120 = vpop.f32.mrb[0].mxu0
    %v1121 = vadd.f32 0.0, %v1120
    %1122 = vmatprep.mubr.f32.mxu0 0.0
    %1123 = vmatmul.mubr.f32.gmra.mrb[0].mxu0 %v891
    %v1124 = vpop.f32.mrb[0].mxu0
    %v1125 = vadd.f32 0.0, %v1124
    %v1126 = vpop.f32.mrb[0].mxu0
    %v1127 = vadd.f32 0.0, %v1126
    %1128 = vmatprep.mubr.f32.mxu0 0.0
    %1129 = vmatmul.mubr.f32.gmra.mrb[0].mxu0 %v894
    %v1130 = vpop.f32.mrb[0].mxu0
    %v1131 = vadd.f32 0.0, %v1130
    %v1132 = vpop.f32.mrb[0].mxu0
    %v1133 = vadd.f32 0.0, %v1132
    %1134 = vdwg.mxu0
    %v1135 = vadd.f32 %v608, %v969
    %v1136 = vadd.f32 %v610, %v971
    %v1137 = vadd.f32 %v614, %v975
    %v1138 = vadd.f32 %v616, %v977
    %v1139 = vadd.f32 %v620, %v981
    %v1140 = vadd.f32 %v622, %v983
    %v1141 = vadd.f32 %v626, %v987
    %v1142 = vadd.f32 %v628, %v989
    %v1143 = vadd.f32 %v632, %v993
    %v1144 = vadd.f32 %v634, %v995
    %v1145 = vadd.f32 %v638, %v999
    %v1146 = vadd.f32 %v640, %v1001
    %v1147 = vadd.f32 %v644, %v1005
    %v1148 = vadd.f32 %v646, %v1007
    %v1149 = vadd.f32 %v650, %v1011
    %v1150 = vadd.f32 %v652, %v1013
    %v1151 = vadd.f32 %v656, %v1017
    %v1152 = vadd.f32 %v658, %v1019
    %v1153 = vadd.f32 %v662, %v1023
    %v1154 = vadd.f32 %v664, %v1025
    %v1155 = vadd.f32 %v668, %v1029
    %v1156 = vadd.f32 %v670, %v1031
    %v1157 = vadd.f32 %v674, %v1035
    %v1158 = vadd.f32 %v676, %v1037
    %v1159 = vadd.f32 %v680, %v1041
    %v1160 = vadd.f32 %v682, %v1043
    %v1161 = vadd.f32 %v686, %v1047
    %v1162 = vadd.f32 %v688, %v1049
    %v1163 = vadd.f32 %v692, %v1053
    %v1164 = vadd.f32 %v694, %v1055
    %v1165 = vadd.f32 %v698, %v1059
    %v1166 = vadd.f32 %v700, %v1061
    %v1167 = vadd.f32 %v704, %v1065
    %v1168 = vadd.f32 %v706, %v1067
    %v1169 = vadd.f32 %v710, %v1071
    %v1170 = vadd.f32 %v712, %v1073
    %v1171 = vadd.f32 %v716, %v1077
    %v1172 = vadd.f32 %v718, %v1079
    %v1173 = vadd.f32 %v722, %v1083
    %v1174 = vadd.f32 %v724, %v1085
    %v1175 = vadd.f32 %v728, %v1089
    %v1176 = vadd.f32 %v730, %v1091
    %v1177 = vadd.f32 %v734, %v1095
    %v1178 = vadd.f32 %v736, %v1097
    %v1179 = vadd.f32 %v740, %v1101
    %v1180 = vadd.f32 %v742, %v1103
    %v1181 = vadd.f32 %v746, %v1107
    %v1182 = vadd.f32 %v748, %v1109
    %v1183 = vadd.f32 %v752, %v1113
    %v1184 = vadd.f32 %v754, %v1115
    %v1185 = vadd.f32 %v758, %v1119
    %v1186 = vadd.f32 %v760, %v1121
    %v1187 = vadd.f32 %v764, %v1125
    %v1188 = vadd.f32 %v766, %v1127
    %v1189 = vadd.f32 %v770, %v1131
    %v1190 = vadd.f32 %v772, %v1133
    %v1191 = vld [vmem:[%s2] sm:$0x3]
    %v1193 = vlaneseq
    %v1194 = vshrl.u32 %v1193, 7
    %v1195 = vsub.s32 0, %v1194
    %v1196 = vrot.slane %v1191, %v1195
    %v1197 = vlaneseq
    %v1198 = vshrl.u32 %v1197, 7
    %v1199 = vsub.s32 1, %v1198
    %v1200 = vrot.slane %v1191, %v1199
    %v1203 = vadd.f32 %v1135, %v1196
    %v1204 = vadd.f32 %v1136, %v1200
    %v1205 = vadd.f32 %v1137, %v1196
    %v1206 = vadd.f32 %v1138, %v1200
    %v1207 = vadd.f32 %v1139, %v1196
    %v1208 = vadd.f32 %v1140, %v1200
    %v1209 = vadd.f32 %v1141, %v1196
    %v1210 = vadd.f32 %v1142, %v1200
    %v1211 = vadd.f32 %v1143, %v1196
    %v1212 = vadd.f32 %v1144, %v1200
    %v1213 = vadd.f32 %v1145, %v1196
    %v1214 = vadd.f32 %v1146, %v1200
    %v1215 = vadd.f32 %v1147, %v1196
    %v1216 = vadd.f32 %v1148, %v1200
    %v1217 = vadd.f32 %v1149, %v1196
    %v1218 = vadd.f32 %v1150, %v1200
    %v1219 = vadd.f32 %v1151, %v1196
    %v1220 = vadd.f32 %v1152, %v1200
    %v1221 = vadd.f32 %v1153, %v1196
    %v1222 = vadd.f32 %v1154, %v1200
    %v1223 = vadd.f32 %v1155, %v1196
    %v1224 = vadd.f32 %v1156, %v1200
    %v1225 = vadd.f32 %v1157, %v1196
    %v1226 = vadd.f32 %v1158, %v1200
    %v1227 = vadd.f32 %v1159, %v1196
    %v1228 = vadd.f32 %v1160, %v1200
    %v1229 = vadd.f32 %v1161, %v1196
    %v1230 = vadd.f32 %v1162, %v1200
    %v1231 = vadd.f32 %v1163, %v1196
    %v1232 = vadd.f32 %v1164, %v1200
    %v1233 = vadd.f32 %v1165, %v1196
    %v1234 = vadd.f32 %v1166, %v1200
    %v1235 = vadd.f32 %v1167, %v1196
    %v1236 = vadd.f32 %v1168, %v1200
    %v1237 = vadd.f32 %v1169, %v1196
    %v1238 = vadd.f32 %v1170, %v1200
    %v1239 = vadd.f32 %v1171, %v1196
    %v1240 = vadd.f32 %v1172, %v1200
    %v1241 = vadd.f32 %v1173, %v1196
    %v1242 = vadd.f32 %v1174, %v1200
    %v1243 = vadd.f32 %v1175, %v1196
    %v1244 = vadd.f32 %v1176, %v1200
    %v1245 = vadd.f32 %v1177, %v1196
    %v1246 = vadd.f32 %v1178, %v1200
    %v1247 = vadd.f32 %v1179, %v1196
    %v1248 = vadd.f32 %v1180, %v1200
    %v1249 = vadd.f32 %v1181, %v1196
    %v1250 = vadd.f32 %v1182, %v1200
    %v1251 = vadd.f32 %v1183, %v1196
    %v1252 = vadd.f32 %v1184, %v1200
    %v1253 = vadd.f32 %v1185, %v1196
    %v1254 = vadd.f32 %v1186, %v1200
    %v1255 = vadd.f32 %v1187, %v1196
    %v1256 = vadd.f32 %v1188, %v1200
    %v1257 = vadd.f32 %v1189, %v1196
    %v1258 = vadd.f32 %v1190, %v1200
    %v1259 = vmax.f32 %v1203, 0.0
    %v1260 = vmax.f32 %v1204, 0.0
    %v1261 = vmax.f32 %v1205, 0.0
    %v1262 = vmax.f32 %v1206, 0.0
    %v1263 = vmax.f32 %v1207, 0.0
    %v1264 = vmax.f32 %v1208, 0.0
    %v1265 = vmax.f32 %v1209, 0.0
    %v1266 = vmax.f32 %v1210, 0.0
    %v1267 = vmax.f32 %v1211, 0.0
    %v1268 = vmax.f32 %v1212, 0.0
    %v1269 = vmax.f32 %v1213, 0.0
    %v1270 = vmax.f32 %v1214, 0.0
    %v1271 = vmax.f32 %v1215, 0.0
    %v1272 = vmax.f32 %v1216, 0.0
    %v1273 = vmax.f32 %v1217, 0.0
    %v1274 = vmax.f32 %v1218, 0.0
    %v1275 = vmax.f32 %v1219, 0.0
    %v1276 = vmax.f32 %v1220, 0.0
    %v1277 = vmax.f32 %v1221, 0.0
    %v1278 = vmax.f32 %v1222, 0.0
    %v1279 = vmax.f32 %v1223, 0.0
    %v1280 = vmax.f32 %v1224, 0.0
    %v1281 = vmax.f32 %v1225, 0.0
    %v1282 = vmax.f32 %v1226, 0.0
    %v1283 = vmax.f32 %v1227, 0.0
    %v1284 = vmax.f32 %v1228, 0.0
    %v1285 = vmax.f32 %v1229, 0.0
    %v1286 = vmax.f32 %v1230, 0.0
    %v1287 = vmax.f32 %v1231, 0.0
    %v1288 = vmax.f32 %v1232, 0.0
    %v1289 = vmax.f32 %v1233, 0.0
    %v1290 = vmax.f32 %v1234, 0.0
    %v1291 = vmax.f32 %v1235, 0.0
    %v1292 = vmax.f32 %v1236, 0.0
    %v1293 = vmax.f32 %v1237, 0.0
    %v1294 = vmax.f32 %v1238, 0.0
    %v1295 = vmax.f32 %v1239, 0.0
    %v1296 = vmax.f32 %v1240, 0.0
    %v1297 = vmax.f32 %v1241, 0.0
    %v1298 = vmax.f32 %v1242, 0.0
    %v1299 = vmax.f32 %v1243, 0.0
    %v1300 = vmax.f32 %v1244, 0.0
    %v1301 = vmax.f32 %v1245, 0.0
    %v1302 = vmax.f32 %v1246, 0.0
    %v1303 = vmax.f32 %v1247, 0.0
    %v1304 = vmax.f32 %v1248, 0.0
    %v1305 = vmax.f32 %v1249, 0.0
    %v1306 = vmax.f32 %v1250, 0.0
    %v1307 = vmax.f32 %v1251, 0.0
    %v1308 = vmax.f32 %v1252, 0.0
    %v1309 = vmax.f32 %v1253, 0.0
    %v1310 = vmax.f32 %v1254, 0.0
    %v1311 = vmax.f32 %v1255, 0.0
    %v1312 = vmax.f32 %v1256, 0.0
    %v1313 = vmax.f32 %v1257, 0.0
    %v1314 = vmax.f32 %v1258, 0.0
    %1315 = vst [vmem:[#allocation2] sm:$0xff] 0.0
    %vm1316 = vcmask 785408
    %1317 = vst.msk [vmem:[#allocation2 + $0x8] sm:$0xff] %vm1316, 0.0
    %s1318 = scalar_lea.vmem [#allocation2], 464
    %1319 = vst [vmem:[%s1318] sm:$0xff] 0.0
    %1320 = vst.msk [vmem:[%s1318 + $0x8] sm:$0xff] %vm1316, 0.0
    %s1321 = scalar_lea.vmem [#allocation2], 16
    %1322 = vst [vmem:[%s1321] sm:$0xff] %v1259
    %1323 = vst.msk [vmem:[%s1321 + $0x8] sm:$0xff] %vm1316, %v1260
    %1324 = vst [vmem:[%s1321 + $0x10] sm:$0xff] %v1261
    %1325 = vst.msk [vmem:[%s1321 + $0x18] sm:$0xff] %vm1316, %v1262
    %1326 = vst [vmem:[%s1321 + $0x20] sm:$0xff] %v1263
    %1327 = vst.msk [vmem:[%s1321 + $0x28] sm:$0xff] %vm1316, %v1264
    %1328 = vst [vmem:[%s1321 + $0x30] sm:$0xff] %v1265
    %1329 = vst.msk [vmem:[%s1321 + $0x38] sm:$0xff] %vm1316, %v1266
    %1330 = vst [vmem:[%s1321 + $0x40] sm:$0xff] %v1267
    %1331 = vst.msk [vmem:[%s1321 + $0x48] sm:$0xff] %vm1316, %v1268
    %1332 = vst [vmem:[%s1321 + $0x50] sm:$0xff] %v1269
    %1333 = vst.msk [vmem:[%s1321 + $0x58] sm:$0xff] %vm1316, %v1270
    %1334 = vst [vmem:[%s1321 + $0x60] sm:$0xff] %v1271
    %1335 = vst.msk [vmem:[%s1321 + $0x68] sm:$0xff] %vm1316, %v1272
    %1336 = vst [vmem:[%s1321 + $0x70] sm:$0xff] %v1273
    %1337 = vst.msk [vmem:[%s1321 + $0x78] sm:$0xff] %vm1316, %v1274
    %1338 = vst [vmem:[%s1321 + $0x80] sm:$0xff] %v1275
    %1339 = vst.msk [vmem:[%s1321 + $0x88] sm:$0xff] %vm1316, %v1276
    %1340 = vst [vmem:[%s1321 + $0x90] sm:$0xff] %v1277
    %1341 = vst.msk [vmem:[%s1321 + $0x98] sm:$0xff] %vm1316, %v1278
    %1342 = vst [vmem:[%s1321 + $0xa0] sm:$0xff] %v1279
    %1343 = vst.msk [vmem:[%s1321 + $0xa8] sm:$0xff] %vm1316, %v1280
    %1344 = vst [vmem:[%s1321 + $0xb0] sm:$0xff] %v1281
    %1345 = vst.msk [vmem:[%s1321 + $0xb8] sm:$0xff] %vm1316, %v1282
    %1346 = vst [vmem:[%s1321 + $0xc0] sm:$0xff] %v1283
    %1347 = vst.msk [vmem:[%s1321 + $0xc8] sm:$0xff] %vm1316, %v1284
    %1348 = vst [vmem:[%s1321 + $0xd0] sm:$0xff] %v1285
    %1349 = vst.msk [vmem:[%s1321 + $0xd8] sm:$0xff] %vm1316, %v1286
    %1350 = vst [vmem:[%s1321 + $0xe0] sm:$0xff] %v1287
    %1351 = vst.msk [vmem:[%s1321 + $0xe8] sm:$0xff] %vm1316, %v1288
    %1352 = vst [vmem:[%s1321 + $0xf0] sm:$0xff] %v1289
    %1353 = vst.msk [vmem:[%s1321 + $0xf8] sm:$0xff] %vm1316, %v1290
    %1354 = vst [vmem:[%s1321 + $0x100] sm:$0xff] %v1291
    %1355 = vst.msk [vmem:[%s1321 + $0x108] sm:$0xff] %vm1316, %v1292
    %1356 = vst [vmem:[%s1321 + $0x110] sm:$0xff] %v1293
    %1357 = vst.msk [vmem:[%s1321 + $0x118] sm:$0xff] %vm1316, %v1294
    %1358 = vst [vmem:[%s1321 + $0x120] sm:$0xff] %v1295
    %1359 = vst.msk [vmem:[%s1321 + $0x128] sm:$0xff] %vm1316, %v1296
    %1360 = vst [vmem:[%s1321 + $0x130] sm:$0xff] %v1297
    %1361 = vst.msk [vmem:[%s1321 + $0x138] sm:$0xff] %vm1316, %v1298
    %1362 = vst [vmem:[%s1321 + $0x140] sm:$0xff] %v1299
    %1363 = vst.msk [vmem:[%s1321 + $0x148] sm:$0xff] %vm1316, %v1300
    %1364 = vst [vmem:[%s1321 + $0x150] sm:$0xff] %v1301
    %1365 = vst.msk [vmem:[%s1321 + $0x158] sm:$0xff] %vm1316, %v1302
    %1366 = vst [vmem:[%s1321 + $0x160] sm:$0xff] %v1303
    %1367 = vst.msk [vmem:[%s1321 + $0x168] sm:$0xff] %vm1316, %v1304
    %1368 = vst [vmem:[%s1321 + $0x170] sm:$0xff] %v1305
    %1369 = vst.msk [vmem:[%s1321 + $0x178] sm:$0xff] %vm1316, %v1306
    %1370 = vst [vmem:[%s1321 + $0x180] sm:$0xff] %v1307
    %1371 = vst.msk [vmem:[%s1321 + $0x188] sm:$0xff] %vm1316, %v1308
    %1372 = vst [vmem:[%s1321 + $0x190] sm:$0xff] %v1309
    %1373 = vst.msk [vmem:[%s1321 + $0x198] sm:$0xff] %vm1316, %v1310
    %1374 = vst [vmem:[%s1321 + $0x1a0] sm:$0xff] %v1311
    %1375 = vst.msk [vmem:[%s1321 + $0x1a8] sm:$0xff] %vm1316, %v1312
    %1376 = vst [vmem:[%s1321 + $0x1b0] sm:$0xff] %v1313
    %1377 = vst.msk [vmem:[%s1321 + $0x1b8] sm:$0xff] %vm1316, %v1314
    %v1378 = vld [vmem:[#allocation2] sm:$0xff]
    %v1379 = vld [vmem:[#allocation2 + $0x8] sm:$0xff]
    %v1380 = vld [vmem:[#allocation2 + $0x10] sm:$0xff]
    %v1381 = vld [vmem:[#allocation2 + $0x18] sm:$0xff]
    %v1382 = vld [vmem:[#allocation2 + $0x20] sm:$0xff]
    %v1383 = vld [vmem:[#allocation2 + $0x28] sm:$0xff]
    %v1384 = vld [vmem:[#allocation2 + $0x30] sm:$0xff]
    %v1385 = vld [vmem:[#allocation2 + $0x38] sm:$0xff]
    %v1386 = vld [vmem:[#allocation2 + $0x40] sm:$0xff]
    %v1387 = vld [vmem:[#allocation2 + $0x48] sm:$0xff]
    %v1388 = vld [vmem:[#allocation2 + $0x50] sm:$0xff]
    %v1389 = vld [vmem:[#allocation2 + $0x58] sm:$0xff]
    %v1390 = vld [vmem:[#allocation2 + $0x60] sm:$0xff]
    %v1391 = vld [vmem:[#allocation2 + $0x68] sm:$0xff]
    %v1392 = vld [vmem:[#allocation2 + $0x70] sm:$0xff]
    %v1393 = vld [vmem:[#allocation2 + $0x78] sm:$0xff]
    %v1394 = vld [vmem:[#allocation2 + $0x80] sm:$0xff]
    %v1395 = vld [vmem:[#allocation2 + $0x88] sm:$0xff]
    %v1396 = vld [vmem:[#allocation2 + $0x90] sm:$0xff]
    %v1397 = vld [vmem:[#allocation2 + $0x98] sm:$0xff]
    %v1398 = vld [vmem:[#allocation2 + $0xa0] sm:$0xff]
    %v1399 = vld [vmem:[#allocation2 + $0xa8] sm:$0xff]
    %v1400 = vld [vmem:[#allocation2 + $0xb0] sm:$0xff]
    %v1401 = vld [vmem:[#allocation2 + $0xb8] sm:$0xff]
    %v1402 = vld [vmem:[#allocation2 + $0xc0] sm:$0xff]
    %v1403 = vld [vmem:[#allocation2 + $0xc8] sm:$0xff]
    %v1404 = vld [vmem:[#allocation2 + $0xd0] sm:$0xff]
    %v1405 = vld [vmem:[#allocation2 + $0xd8] sm:$0xff]
    %v1406 = vld [vmem:[#allocation2 + $0xe0] sm:$0xff]
    %v1407 = vld [vmem:[#allocation2 + $0xe8] sm:$0xff]
    %v1408 = vld [vmem:[#allocation2 + $0xf0] sm:$0xff]
    %v1409 = vld [vmem:[#allocation2 + $0xf8] sm:$0xff]
    %v1410 = vld [vmem:[#allocation2 + $0x100] sm:$0xff]
    %v1411 = vld [vmem:[#allocation2 + $0x108] sm:$0xff]
    %v1412 = vld [vmem:[#allocation2 + $0x110] sm:$0xff]
    %v1413 = vld [vmem:[#allocation2 + $0x118] sm:$0xff]
    %v1414 = vld [vmem:[#allocation2 + $0x120] sm:$0xff]
    %v1415 = vld [vmem:[#allocation2 + $0x128] sm:$0xff]
    %v1416 = vld [vmem:[#allocation2 + $0x130] sm:$0xff]
    %v1417 = vld [vmem:[#allocation2 + $0x138] sm:$0xff]
    %v1418 = vld [vmem:[#allocation2 + $0x140] sm:$0xff]
    %v1419 = vld [vmem:[#allocation2 + $0x148] sm:$0xff]
    %v1420 = vld [vmem:[#allocation2 + $0x150] sm:$0xff]
    %v1421 = vld [vmem:[#allocation2 + $0x158] sm:$0xff]
    %v1422 = vld [vmem:[#allocation2 + $0x160] sm:$0xff]
    %v1423 = vld [vmem:[#allocation2 + $0x168] sm:$0xff]
    %v1424 = vld [vmem:[#allocation2 + $0x170] sm:$0xff]
    %v1425 = vld [vmem:[#allocation2 + $0x178] sm:$0xff]
    %v1426 = vld [vmem:[#allocation2 + $0x180] sm:$0xff]
    %v1427 = vld [vmem:[#allocation2 + $0x188] sm:$0xff]
    %v1428 = vld [vmem:[#allocation2 + $0x190] sm:$0xff]
    %v1429 = vld [vmem:[#allocation2 + $0x198] sm:$0xff]
    %v1430 = vld [vmem:[#allocation2 + $0x1a0] sm:$0xff]
    %v1431 = vld [vmem:[#allocation2 + $0x1a8] sm:$0xff]
    %v1432 = vld [vmem:[#allocation2 + $0x1b0] sm:$0xff]
    %v1433 = vld [vmem:[#allocation2 + $0x1b8] sm:$0xff]
    %v1434 = vld [vmem:[#allocation5] sm:$0xff]
    %v1435 = vld [vmem:[#allocation5 + $0x8] sm:$0xff]
    %v1436 = vld [vmem:[#allocation5 + $0x10] sm:$0xff]
    %v1437 = vld [vmem:[#allocation5 + $0x18] sm:$0xff]
    %v1438 = vld [vmem:[#allocation5 + $0x20] sm:$0xff]
    %v1439 = vld [vmem:[#allocation5 + $0x28] sm:$0xff]
    %v1440 = vld [vmem:[#allocation5 + $0x30] sm:$0xff]
    %v1441 = vld [vmem:[#allocation5 + $0x38] sm:$0xff]
    %v1442 = vld [vmem:[#allocation5 + $0x40] sm:$0xff]
    %v1443 = vld [vmem:[#allocation5 + $0x48] sm:$0xff]
    %v1444 = vld [vmem:[#allocation5 + $0x50] sm:$0xff]
    %v1445 = vld [vmem:[#allocation5 + $0x58] sm:$0xff]
    %v1446 = vld [vmem:[#allocation5 + $0x60] sm:$0xff]
    %v1447 = vld [vmem:[#allocation5 + $0x68] sm:$0xff]
    %v1448 = vld [vmem:[#allocation5 + $0x70] sm:$0xff]
    %v1449 = vld [vmem:[#allocation5 + $0x78] sm:$0xff]
    %v1450 = vld [vmem:[#allocation5 + $0x80] sm:$0xff]
    %v1451 = vld [vmem:[#allocation5 + $0x88] sm:$0xff]
    %v1452 = vld [vmem:[#allocation5 + $0x90] sm:$0xff]
    %v1453 = vld [vmem:[#allocation5 + $0x98] sm:$0xff]
    %v1454 = vld [vmem:[#allocation5 + $0xa0] sm:$0xff]
    %v1455 = vld [vmem:[#allocation5 + $0xa8] sm:$0xff]
    %v1456 = vld [vmem:[#allocation5 + $0xb0] sm:$0xff]
    %v1457 = vld [vmem:[#allocation5 + $0xb8] sm:$0xff]
    %v1458 = vld [vmem:[#allocation5 + $0xc0] sm:$0xff]
    %v1459 = vld [vmem:[#allocation5 + $0xc8] sm:$0xff]
    %v1460 = vld [vmem:[#allocation5 + $0xd0] sm:$0xff]
    %v1461 = vld [vmem:[#allocation5 + $0xd8] sm:$0xff]
    %v1462 = vld [vmem:[#allocation5 + $0xe0] sm:$0xff]
    %v1463 = vld [vmem:[#allocation5 + $0xe8] sm:$0xff]
    %v1464 = vld [vmem:[#allocation5 + $0xf0] sm:$0xff]
    %v1465 = vld [vmem:[#allocation5 + $0xf8] sm:$0xff]
    %v1466 = vld [vmem:[#allocation5 + $0x100] sm:$0xff]
    %v1467 = vld [vmem:[#allocation5 + $0x108] sm:$0xff]
    %v1468 = vld [vmem:[#allocation5 + $0x110] sm:$0xff]
    %v1469 = vld [vmem:[#allocation5 + $0x118] sm:$0xff]
    %v1470 = vld [vmem:[#allocation5 + $0x120] sm:$0xff]
    %v1471 = vld [vmem:[#allocation5 + $0x128] sm:$0xff]
    %v1472 = vld [vmem:[#allocation5 + $0x130] sm:$0xff]
    %v1473 = vld [vmem:[#allocation5 + $0x138] sm:$0xff]
    %v1474 = vld [vmem:[#allocation5 + $0x140] sm:$0xff]
    %v1475 = vld [vmem:[#allocation5 + $0x148] sm:$0xff]
    %v1476 = vld [vmem:[#allocation5 + $0x150] sm:$0xff]
    %v1477 = vld [vmem:[#allocation5 + $0x158] sm:$0xff]
    %v1478 = vld [vmem:[#allocation5 + $0x160] sm:$0xff]
    %v1479 = vld [vmem:[#allocation5 + $0x168] sm:$0xff]
    %v1480 = vld [vmem:[#allocation5 + $0x170] sm:$0xff]
    %v1481 = vld [vmem:[#allocation5 + $0x178] sm:$0xff]
    %v1482 = vld [vmem:[#allocation5 + $0x180] sm:$0xff]
    %v1483 = vld [vmem:[#allocation5 + $0x188] sm:$0xff]
    %v1484 = vld [vmem:[#allocation5 + $0x190] sm:$0xff]
    %v1485 = vld [vmem:[#allocation5 + $0x198] sm:$0xff]
    %v1486 = vld [vmem:[#allocation5 + $0x1a0] sm:$0xff]
    %v1487 = vld [vmem:[#allocation5 + $0x1a8] sm:$0xff]
    %v1488 = vld [vmem:[#allocation5 + $0x1b0] sm:$0xff]
    %v1489 = vld [vmem:[#allocation5 + $0x1b8] sm:$0xff]
    %v1490 = vld [vmem:[%s1321] sm:$0xff]
    %v1491 = vld [vmem:[%s1321 + $0x8] sm:$0xff]
    %v1492 = vld [vmem:[%s1321 + $0x10] sm:$0xff]
    %v1493 = vld [vmem:[%s1321 + $0x18] sm:$0xff]
    %v1494 = vld [vmem:[%s1321 + $0x20] sm:$0xff]
    %v1495 = vld [vmem:[%s1321 + $0x28] sm:$0xff]
    %v1496 = vld [vmem:[%s1321 + $0x30] sm:$0xff]
    %v1497 = vld [vmem:[%s1321 + $0x38] sm:$0xff]
    %v1498 = vld [vmem:[%s1321 + $0x40] sm:$0xff]
    %v1499 = vld [vmem:[%s1321 + $0x48] sm:$0xff]
    %v1500 = vld [vmem:[%s1321 + $0x50] sm:$0xff]
    %v1501 = vld [vmem:[%s1321 + $0x58] sm:$0xff]
    %v1502 = vld [vmem:[%s1321 + $0x60] sm:$0xff]
    %v1503 = vld [vmem:[%s1321 + $0x68] sm:$0xff]
    %v1504 = vld [vmem:[%s1321 + $0x70] sm:$0xff]
    %v1505 = vld [vmem:[%s1321 + $0x78] sm:$0xff]
    %v1506 = vld [vmem:[%s1321 + $0x80] sm:$0xff]
    %v1507 = vld [vmem:[%s1321 + $0x88] sm:$0xff]
    %v1508 = vld [vmem:[%s1321 + $0x90] sm:$0xff]
    %v1509 = vld [vmem:[%s1321 + $0x98] sm:$0xff]
    %v1510 = vld [vmem:[%s1321 + $0xa0] sm:$0xff]
    %v1511 = vld [vmem:[%s1321 + $0xa8] sm:$0xff]
    %v1512 = vld [vmem:[%s1321 + $0xb0] sm:$0xff]
    %v1513 = vld [vmem:[%s1321 + $0xb8] sm:$0xff]
    %v1514 = vld [vmem:[%s1321 + $0xc0] sm:$0xff]
    %v1515 = vld [vmem:[%s1321 + $0xc8] sm:$0xff]
    %v1516 = vld [vmem:[%s1321 + $0xd0] sm:$0xff]
    %v1517 = vld [vmem:[%s1321 + $0xd8] sm:$0xff]
    %v1518 = vld [vmem:[%s1321 + $0xe0] sm:$0xff]
    %v1519 = vld [vmem:[%s1321 + $0xe8] sm:$0xff]
    %v1520 = vld [vmem:[%s1321 + $0xf0] sm:$0xff]
    %v1521 = vld [vmem:[%s1321 + $0xf8] sm:$0xff]
    %v1522 = vld [vmem:[%s1321 + $0x100] sm:$0xff]
    %v1523 = vld [vmem:[%s1321 + $0x108] sm:$0xff]
    %v1524 = vld [vmem:[%s1321 + $0x110] sm:$0xff]
    %v1525 = vld [vmem:[%s1321 + $0x118] sm:$0xff]
    %v1526 = vld [vmem:[%s1321 + $0x120] sm:$0xff]
    %v1527 = vld [vmem:[%s1321 + $0x128] sm:$0xff]
    %v1528 = vld [vmem:[%s1321 + $0x130] sm:$0xff]
    %v1529 = vld [vmem:[%s1321 + $0x138] sm:$0xff]
    %v1530 = vld [vmem:[%s1321 + $0x140] sm:$0xff]
    %v1531 = vld [vmem:[%s1321 + $0x148] sm:$0xff]
    %v1532 = vld [vmem:[%s1321 + $0x150] sm:$0xff]
    %v1533 = vld [vmem:[%s1321 + $0x158] sm:$0xff]
    %v1534 = vld [vmem:[%s1321 + $0x160] sm:$0xff]
    %v1535 = vld [vmem:[%s1321 + $0x168] sm:$0xff]
    %v1536 = vld [vmem:[%s1321 + $0x170] sm:$0xff]
    %v1537 = vld [vmem:[%s1321 + $0x178] sm:$0xff]
    %v1538 = vld [vmem:[%s1321 + $0x180] sm:$0xff]
    %v1539 = vld [vmem:[%s1321 + $0x188] sm:$0xff]
    %v1540 = vld [vmem:[%s1321 + $0x190] sm:$0xff]
    %v1541 = vld [vmem:[%s1321 + $0x198] sm:$0xff]
    %v1542 = vld [vmem:[%s1321 + $0x1a0] sm:$0xff]
    %v1543 = vld [vmem:[%s1321 + $0x1a8] sm:$0xff]
    %v1544 = vld [vmem:[%s1321 + $0x1b0] sm:$0xff]
    %v1545 = vld [vmem:[%s1321 + $0x1b8] sm:$0xff]
    %s1546 = scalar_lea.vmem [#allocation5], 448
    %v1547 = vld [vmem:[%s1546] sm:$0xff]
    %v1548 = vld [vmem:[%s1546 + $0x8] sm:$0xff]
    %v1549 = vld [vmem:[%s1546 + $0x10] sm:$0xff]
    %v1550 = vld [vmem:[%s1546 + $0x18] sm:$0xff]
    %v1551 = vld [vmem:[%s1546 + $0x20] sm:$0xff]
    %v1552 = vld [vmem:[%s1546 + $0x28] sm:$0xff]
    %v1553 = vld [vmem:[%s1546 + $0x30] sm:$0xff]
    %v1554 = vld [vmem:[%s1546 + $0x38] sm:$0xff]
    %v1555 = vld [vmem:[%s1546 + $0x40] sm:$0xff]
    %v1556 = vld [vmem:[%s1546 + $0x48] sm:$0xff]
    %v1557 = vld [vmem:[%s1546 + $0x50] sm:$0xff]
    %v1558 = vld [vmem:[%s1546 + $0x58] sm:$0xff]
    %v1559 = vld [vmem:[%s1546 + $0x60] sm:$0xff]
    %v1560 = vld [vmem:[%s1546 + $0x68] sm:$0xff]
    %v1561 = vld [vmem:[%s1546 + $0x70] sm:$0xff]
    %v1562 = vld [vmem:[%s1546 + $0x78] sm:$0xff]
    %v1563 = vld [vmem:[%s1546 + $0x80] sm:$0xff]
    %v1564 = vld [vmem:[%s1546 + $0x88] sm:$0xff]
    %v1565 = vld [vmem:[%s1546 + $0x90] sm:$0xff]
    %v1566 = vld [vmem:[%s1546 + $0x98] sm:$0xff]
    %v1567 = vld [vmem:[%s1546 + $0xa0] sm:$0xff]
    %v1568 = vld [vmem:[%s1546 + $0xa8] sm:$0xff]
    %v1569 = vld [vmem:[%s1546 + $0xb0] sm:$0xff]
    %v1570 = vld [vmem:[%s1546 + $0xb8] sm:$0xff]
    %v1571 = vld [vmem:[%s1546 + $0xc0] sm:$0xff]
    %v1572 = vld [vmem:[%s1546 + $0xc8] sm:$0xff]
    %v1573 = vld [vmem:[%s1546 + $0xd0] sm:$0xff]
    %v1574 = vld [vmem:[%s1546 + $0xd8] sm:$0xff]
    %v1575 = vld [vmem:[%s1546 + $0xe0] sm:$0xff]
    %v1576 = vld [vmem:[%s1546 + $0xe8] sm:$0xff]
    %v1577 = vld [vmem:[%s1546 + $0xf0] sm:$0xff]
    %v1578 = vld [vmem:[%s1546 + $0xf8] sm:$0xff]
    %v1579 = vld [vmem:[%s1546 + $0x100] sm:$0xff]
    %v1580 = vld [vmem:[%s1546 + $0x108] sm:$0xff]
    %v1581 = vld [vmem:[%s1546 + $0x110] sm:$0xff]
    %v1582 = vld [vmem:[%s1546 + $0x118] sm:$0xff]
    %v1583 = vld [vmem:[%s1546 + $0x120] sm:$0xff]
    %v1584 = vld [vmem:[%s1546 + $0x128] sm:$0xff]
    %v1585 = vld [vmem:[%s1546 + $0x130] sm:$0xff]
    %v1586 = vld [vmem:[%s1546 + $0x138] sm:$0xff]
    %v1587 = vld [vmem:[%s1546 + $0x140] sm:$0xff]
    %v1588 = vld [vmem:[%s1546 + $0x148] sm:$0xff]
    %v1589 = vld [vmem:[%s1546 + $0x150] sm:$0xff]
    %v1590 = vld [vmem:[%s1546 + $0x158] sm:$0xff]
    %v1591 = vld [vmem:[%s1546 + $0x160] sm:$0xff]
    %v1592 = vld [vmem:[%s1546 + $0x168] sm:$0xff]
    %v1593 = vld [vmem:[%s1546 + $0x170] sm:$0xff]
    %v1594 = vld [vmem:[%s1546 + $0x178] sm:$0xff]
    %v1595 = vld [vmem:[%s1546 + $0x180] sm:$0xff]
    %v1596 = vld [vmem:[%s1546 + $0x188] sm:$0xff]
    %v1597 = vld [vmem:[%s1546 + $0x190] sm:$0xff]
    %v1598 = vld [vmem:[%s1546 + $0x198] sm:$0xff]
    %v1599 = vld [vmem:[%s1546 + $0x1a0] sm:$0xff]
    %v1600 = vld [vmem:[%s1546 + $0x1a8] sm:$0xff]
    %v1601 = vld [vmem:[%s1546 + $0x1b0] sm:$0xff]
    %v1602 = vld [vmem:[%s1546 + $0x1b8] sm:$0xff]
    %v1604 = vsel %vm1316, %v1491, 0
    %v1607 = vsel %vm1316, %v1493, 0
    %v1610 = vsel %vm1316, %v1495, 0
    %v1613 = vsel %vm1316, %v1497, 0
    %v1616 = vsel %vm1316, %v1499, 0
    %v1619 = vsel %vm1316, %v1501, 0
    %v1622 = vsel %vm1316, %v1503, 0
    %v1625 = vsel %vm1316, %v1505, 0
    %v1628 = vsel %vm1316, %v1507, 0
    %v1631 = vsel %vm1316, %v1509, 0
    %v1634 = vsel %vm1316, %v1511, 0
    %v1637 = vsel %vm1316, %v1513, 0
    %v1640 = vsel %vm1316, %v1515, 0
    %v1643 = vsel %vm1316, %v1517, 0
    %v1646 = vsel %vm1316, %v1519, 0
    %v1649 = vsel %vm1316, %v1521, 0
    %v1652 = vsel %vm1316, %v1523, 0
    %v1655 = vsel %vm1316, %v1525, 0
    %v1658 = vsel %vm1316, %v1527, 0
    %v1661 = vsel %vm1316, %v1529, 0
    %v1664 = vsel %vm1316, %v1531, 0
    %v1667 = vsel %vm1316, %v1533, 0
    %v1670 = vsel %vm1316, %v1535, 0
    %v1673 = vsel %vm1316, %v1537, 0
    %v1676 = vsel %vm1316, %v1539, 0
    %v1679 = vsel %vm1316, %v1541, 0
    %v1682 = vsel %vm1316, %v1543, 0
    %v1685 = vsel %vm1316, %v1545, 0
    %1687 = vmatprep.subr.mxu0 %v1548
    %1688 = vmatpush1.msra.mxu0 %v1547
    %1689 = vmatprep.subr.mxu0 %v1550
    %1690 = vmatpush1.msra.mxu0 %v1549
    %1691 = vmatprep.subr.mxu0 %v1552
    %1692 = vmatpush1.msra.mxu0 %v1551
    %1693 = vmatprep.subr.mxu0 %v1554
    %1694 = vmatpush1.msra.mxu0 %v1553
    %1695 = vmatprep.subr.mxu0 %v1556
    %1696 = vmatpush1.msra.mxu0 %v1555
    %1697 = vmatprep.subr.mxu0 %v1558
    %1698 = vmatpush1.msra.mxu0 %v1557
    %1699 = vmatprep.subr.mxu0 %v1560
    %1700 = vmatpush1.msra.mxu0 %v1559
    %1701 = vmatprep.subr.mxu0 %v1562
    %1702 = vmatpush1.msra.mxu0 %v1561
    %1703 = vmatprep.subr.mxu0 %v1564
    %1704 = vmatpush1.msra.mxu0 %v1563
    %1705 = vmatprep.subr.mxu0 %v1566
    %1706 = vmatpush1.msra.mxu0 %v1565
    %1707 = vmatprep.subr.mxu0 %v1568
    %1708 = vmatpush1.msra.mxu0 %v1567
    %1709 = vmatprep.subr.mxu0 %v1570
    %1710 = vmatpush1.msra.mxu0 %v1569
    %1711 = vmatprep.subr.mxu0 %v1572
    %1712 = vmatpush1.msra.mxu0 %v1571
    %1713 = vmatprep.subr.mxu0 %v1574
    %1714 = vmatpush1.msra.mxu0 %v1573
    %1715 = vmatprep.subr.mxu0 %v1576
    %1716 = vmatpush1.msra.mxu0 %v1575
    %1717 = vmatprep.subr.mxu0 %v1578
    %1718 = vmatpush1.msra.mxu0 %v1577
    %1719 = vmatprep.subr.mxu0 %v1580
    %1720 = vmatpush1.msra.mxu0 %v1579
    %1721 = vmatprep.subr.mxu0 %v1582
    %1722 = vmatpush1.msra.mxu0 %v1581
    %1723 = vmatprep.subr.mxu0 %v1584
    %1724 = vmatpush1.msra.mxu0 %v1583
    %1725 = vmatprep.subr.mxu0 %v1586
    %1726 = vmatpush1.msra.mxu0 %v1585
    %1727 = vmatprep.subr.mxu0 %v1588
    %1728 = vmatpush1.msra.mxu0 %v1587
    %1729 = vmatprep.subr.mxu0 %v1590
    %1730 = vmatpush1.msra.mxu0 %v1589
    %1731 = vmatprep.subr.mxu0 %v1592
    %1732 = vmatpush1.msra.mxu0 %v1591
    %1733 = vmatprep.subr.mxu0 %v1594
    %1734 = vmatpush1.msra.mxu0 %v1593
    %1735 = vmatprep.subr.mxu0 %v1596
    %1736 = vmatpush1.msra.mxu0 %v1595
    %1737 = vmatprep.subr.mxu0 %v1598
    %1738 = vmatpush1.msra.mxu0 %v1597
    %1739 = vmatprep.subr.mxu0 %v1600
    %1740 = vmatpush1.msra.mxu0 %v1599
    %1741 = vmatprep.subr.mxu0 %v1602
    %1742 = vmatpush1.msra.mxu0 %v1601
    %1743 = vmatprep.subr.mxu0 0.0
    %1744 = vmatpush1.msra.mxu0 0.0
    %1745 = vmatprep.subr.mxu0 0.0
    %1746 = vmatpush1.msra.mxu0 0.0
    %1747 = vmatprep.subr.mxu0 0.0
    %1748 = vmatpush1.msra.mxu0 0.0
    %1749 = vmatprep.subr.mxu0 0.0
    %1750 = vmatpush1.msra.mxu0 0.0
    %1751 = vmatprep.mubr.f32.mxu0 %v1604
    %1752 = vmatmul.mubr.f32.gmra.mrb[0].mxu0 %v1490
    %v1753 = vpop.f32.mrb[0].mxu0
    %v1754 = vadd.f32 0.0, %v1753
    %v1755 = vpop.f32.mrb[0].mxu0
    %v1756 = vadd.f32 0.0, %v1755
    %1757 = vmatprep.mubr.f32.mxu0 %v1607
    %1758 = vmatmul.mubr.f32.gmra.mrb[0].mxu0 %v1492
    %v1759 = vpop.f32.mrb[0].mxu0
    %v1760 = vadd.f32 0.0, %v1759
    %v1761 = vpop.f32.mrb[0].mxu0
    %v1762 = vadd.f32 0.0, %v1761
    %1763 = vmatprep.mubr.f32.mxu0 %v1610
    %1764 = vmatmul.mubr.f32.gmra.mrb[0].mxu0 %v1494
    %v1765 = vpop.f32.mrb[0].mxu0
    %v1766 = vadd.f32 0.0, %v1765
    %v1767 = vpop.f32.mrb[0].mxu0
    %v1768 = vadd.f32 0.0, %v1767
    %1769 = vmatprep.mubr.f32.mxu0 %v1613
    %1770 = vmatmul.mubr.f32.gmra.mrb[0].mxu0 %v1496
    %v1771 = vpop.f32.mrb[0].mxu0
    %v1772 = vadd.f32 0.0, %v1771
    %v1773 = vpop.f32.mrb[0].mxu0
    %v1774 = vadd.f32 0.0, %v1773
    %1775 = vmatprep.mubr.f32.mxu0 %v1616
    %1776 = vmatmul.mubr.f32.gmra.mrb[0].mxu0 %v1498
    %v1777 = vpop.f32.mrb[0].mxu0
    %v1778 = vadd.f32 0.0, %v1777
    %v1779 = vpop.f32.mrb[0].mxu0
    %v1780 = vadd.f32 0.0, %v1779
    %1781 = vmatprep.mubr.f32.mxu0 %v1619
    %1782 = vmatmul.mubr.f32.gmra.mrb[0].mxu0 %v1500
    %v1783 = vpop.f32.mrb[0].mxu0
    %v1784 = vadd.f32 0.0, %v1783
    %v1785 = vpop.f32.mrb[0].mxu0
    %v1786 = vadd.f32 0.0, %v1785
    %1787 = vmatprep.mubr.f32.mxu0 %v1622
    %1788 = vmatmul.mubr.f32.gmra.mrb[0].mxu0 %v1502
    %v1789 = vpop.f32.mrb[0].mxu0
    %v1790 = vadd.f32 0.0, %v1789
    %v1791 = vpop.f32.mrb[0].mxu0
    %v1792 = vadd.f32 0.0, %v1791
    %1793 = vmatprep.mubr.f32.mxu0 %v1625
    %1794 = vmatmul.mubr.f32.gmra.mrb[0].mxu0 %v1504
    %v1795 = vpop.f32.mrb[0].mxu0
    %v1796 = vadd.f32 0.0, %v1795
    %v1797 = vpop.f32.mrb[0].mxu0
    %v1798 = vadd.f32 0.0, %v1797
    %1799 = vmatprep.mubr.f32.mxu0 %v1628
    %1800 = vmatmul.mubr.f32.gmra.mrb[0].mxu0 %v1506
    %v1801 = vpop.f32.mrb[0].mxu0
    %v1802 = vadd.f32 0.0, %v1801
    %v1803 = vpop.f32.mrb[0].mxu0
    %v1804 = vadd.f32 0.0, %v1803
    %1805 = vmatprep.mubr.f32.mxu0 %v1631
    %1806 = vmatmul.mubr.f32.gmra.mrb[0].mxu0 %v1508
    %v1807 = vpop.f32.mrb[0].mxu0
    %v1808 = vadd.f32 0.0, %v1807
    %v1809 = vpop.f32.mrb[0].mxu0
    %v1810 = vadd.f32 0.0, %v1809
    %1811 = vmatprep.mubr.f32.mxu0 %v1634
    %1812 = vmatmul.mubr.f32.gmra.mrb[0].mxu0 %v1510
    %v1813 = vpop.f32.mrb[0].mxu0
    %v1814 = vadd.f32 0.0, %v1813
    %v1815 = vpop.f32.mrb[0].mxu0
    %v1816 = vadd.f32 0.0, %v1815
    %1817 = vmatprep.mubr.f32.mxu0 %v1637
    %1818 = vmatmul.mubr.f32.gmra.mrb[0].mxu0 %v1512
    %v1819 = vpop.f32.mrb[0].mxu0
    %v1820 = vadd.f32 0.0, %v1819
    %v1821 = vpop.f32.mrb[0].mxu0
    %v1822 = vadd.f32 0.0, %v1821
    %1823 = vmatprep.mubr.f32.mxu0 %v1640
    %1824 = vmatmul.mubr.f32.gmra.mrb[0].mxu0 %v1514
    %v1825 = vpop.f32.mrb[0].mxu0
    %v1826 = vadd.f32 0.0, %v1825
    %v1827 = vpop.f32.mrb[0].mxu0
    %v1828 = vadd.f32 0.0, %v1827
    %1829 = vmatprep.mubr.f32.mxu0 %v1643
    %1830 = vmatmul.mubr.f32.gmra.mrb[0].mxu0 %v1516
    %v1831 = vpop.f32.mrb[0].mxu0
    %v1832 = vadd.f32 0.0, %v1831
    %v1833 = vpop.f32.mrb[0].mxu0
    %v1834 = vadd.f32 0.0, %v1833
    %1835 = vmatprep.mubr.f32.mxu0 %v1646
    %1836 = vmatmul.mubr.f32.gmra.mrb[0].mxu0 %v1518
    %v1837 = vpop.f32.mrb[0].mxu0
    %v1838 = vadd.f32 0.0, %v1837
    %v1839 = vpop.f32.mrb[0].mxu0
    %v1840 = vadd.f32 0.0, %v1839
    %1841 = vmatprep.mubr.f32.mxu0 %v1649
    %1842 = vmatmul.mubr.f32.gmra.mrb[0].mxu0 %v1520
    %v1843 = vpop.f32.mrb[0].mxu0
    %v1844 = vadd.f32 0.0, %v1843
    %v1845 = vpop.f32.mrb[0].mxu0
    %v1846 = vadd.f32 0.0, %v1845
    %1847 = vmatprep.mubr.f32.mxu0 %v1652
    %1848 = vmatmul.mubr.f32.gmra.mrb[0].mxu0 %v1522
    %v1849 = vpop.f32.mrb[0].mxu0
    %v1850 = vadd.f32 0.0, %v1849
    %v1851 = vpop.f32.mrb[0].mxu0
    %v1852 = vadd.f32 0.0, %v1851
    %1853 = vmatprep.mubr.f32.mxu0 %v1655
    %1854 = vmatmul.mubr.f32.gmra.mrb[0].mxu0 %v1524
    %v1855 = vpop.f32.mrb[0].mxu0
    %v1856 = vadd.f32 0.0, %v1855
    %v1857 = vpop.f32.mrb[0].mxu0
    %v1858 = vadd.f32 0.0, %v1857
    %1859 = vmatprep.mubr.f32.mxu0 %v1658
    %1860 = vmatmul.mubr.f32.gmra.mrb[0].mxu0 %v1526
    %v1861 = vpop.f32.mrb[0].mxu0
    %v1862 = vadd.f32 0.0, %v1861
    %v1863 = vpop.f32.mrb[0].mxu0
    %v1864 = vadd.f32 0.0, %v1863
    %1865 = vmatprep.mubr.f32.mxu0 %v1661
    %1866 = vmatmul.mubr.f32.gmra.mrb[0].mxu0 %v1528
    %v1867 = vpop.f32.mrb[0].mxu0
    %v1868 = vadd.f32 0.0, %v1867
    %v1869 = vpop.f32.mrb[0].mxu0
    %v1870 = vadd.f32 0.0, %v1869
    %1871 = vmatprep.mubr.f32.mxu0 %v1664
    %1872 = vmatmul.mubr.f32.gmra.mrb[0].mxu0 %v1530
    %v1873 = vpop.f32.mrb[0].mxu0
    %v1874 = vadd.f32 0.0, %v1873
    %v1875 = vpop.f32.mrb[0].mxu0
    %v1876 = vadd.f32 0.0, %v1875
    %1877 = vmatprep.mubr.f32.mxu0 %v1667
    %1878 = vmatmul.mubr.f32.gmra.mrb[0].mxu0 %v1532
    %v1879 = vpop.f32.mrb[0].mxu0
    %v1880 = vadd.f32 0.0, %v1879
    %v1881 = vpop.f32.mrb[0].mxu0
    %v1882 = vadd.f32 0.0, %v1881
    %1883 = vmatprep.mubr.f32.mxu0 %v1670
    %1884 = vmatmul.mubr.f32.gmra.mrb[0].mxu0 %v1534
    %v1885 = vpop.f32.mrb[0].mxu0
    %v1886 = vadd.f32 0.0, %v1885
    %v1887 = vpop.f32.mrb[0].mxu0
    %v1888 = vadd.f32 0.0, %v1887
    %1889 = vmatprep.mubr.f32.mxu0 %v1673
    %1890 = vmatmul.mubr.f32.gmra.mrb[0].mxu0 %v1536
    %v1891 = vpop.f32.mrb[0].mxu0
    %v1892 = vadd.f32 0.0, %v1891
    %v1893 = vpop.f32.mrb[0].mxu0
    %v1894 = vadd.f32 0.0, %v1893
    %1895 = vmatprep.mubr.f32.mxu0 %v1676
    %1896 = vmatmul.mubr.f32.gmra.mrb[0].mxu0 %v1538
    %v1897 = vpop.f32.mrb[0].mxu0
    %v1898 = vadd.f32 0.0, %v1897
    %v1899 = vpop.f32.mrb[0].mxu0
    %v1900 = vadd.f32 0.0, %v1899
    %1901 = vmatprep.mubr.f32.mxu0 %v1679
    %1902 = vmatmul.mubr.f32.gmra.mrb[0].mxu0 %v1540
    %v1903 = vpop.f32.mrb[0].mxu0
    %v1904 = vadd.f32 0.0, %v1903
    %v1905 = vpop.f32.mrb[0].mxu0
    %v1906 = vadd.f32 0.0, %v1905
    %1907 = vmatprep.mubr.f32.mxu0 %v1682
    %1908 = vmatmul.mubr.f32.gmra.mrb[0].mxu0 %v1542
    %v1909 = vpop.f32.mrb[0].mxu0
    %v1910 = vadd.f32 0.0, %v1909
    %v1911 = vpop.f32.mrb[0].mxu0
    %v1912 = vadd.f32 0.0, %v1911
    %1913 = vmatprep.mubr.f32.mxu0 %v1685
    %1914 = vmatmul.mubr.f32.gmra.mrb[0].mxu0 %v1544
    %v1915 = vpop.f32.mrb[0].mxu0
    %v1916 = vadd.f32 0.0, %v1915
    %v1917 = vpop.f32.mrb[0].mxu0
    %v1918 = vadd.f32 0.0, %v1917
    %1919 = vdwg.mxu0
    %v1921 = vsel %vm1316, %v1379, 0
    %v1924 = vsel %vm1316, %v1381, 0
    %v1927 = vsel %vm1316, %v1383, 0
    %v1930 = vsel %vm1316, %v1385, 0
    %v1933 = vsel %vm1316, %v1387, 0
    %v1936 = vsel %vm1316, %v1389, 0
    %v1939 = vsel %vm1316, %v1391, 0
    %v1942 = vsel %vm1316, %v1393, 0
    %v1945 = vsel %vm1316, %v1395, 0
    %v1948 = vsel %vm1316, %v1397, 0
    %v1951 = vsel %vm1316, %v1399, 0
    %v1954 = vsel %vm1316, %v1401, 0
    %v1957 = vsel %vm1316, %v1403, 0
    %v1960 = vsel %vm1316, %v1405, 0
    %v1963 = vsel %vm1316, %v1407, 0
    %v1966 = vsel %vm1316, %v1409, 0
    %v1969 = vsel %vm1316, %v1411, 0
    %v1972 = vsel %vm1316, %v1413, 0
    %v1975 = vsel %vm1316, %v1415, 0
    %v1978 = vsel %vm1316, %v1417, 0
    %v1981 = vsel %vm1316, %v1419, 0
    %v1984 = vsel %vm1316, %v1421, 0
    %v1987 = vsel %vm1316, %v1423, 0
    %v1990 = vsel %vm1316, %v1425, 0
    %v1993 = vsel %vm1316, %v1427, 0
    %v1996 = vsel %vm1316, %v1429, 0
    %v1999 = vsel %vm1316, %v1431, 0
    %v2002 = vsel %vm1316, %v1433, 0
    %2004 = vmatprep.subr.mxu0 %v1435
    %2005 = vmatpush1.msra.mxu0 %v1434
    %2006 = vmatprep.subr.mxu0 %v1437
    %2007 = vmatpush1.msra.mxu0 %v1436
    %2008 = vmatprep.subr.mxu0 %v1439
    %2009 = vmatpush1.msra.mxu0 %v1438
    %2010 = vmatprep.subr.mxu0 %v1441
    %2011 = vmatpush1.msra.mxu0 %v1440
    %2012 = vmatprep.subr.mxu0 %v1443
    %2013 = vmatpush1.msra.mxu0 %v1442
    %2014 = vmatprep.subr.mxu0 %v1445
    %2015 = vmatpush1.msra.mxu0 %v1444
    %2016 = vmatprep.subr.mxu0 %v1447
    %2017 = vmatpush1.msra.mxu0 %v1446
    %2018 = vmatprep.subr.mxu0 %v1449
    %2019 = vmatpush1.msra.mxu0 %v1448
    %2020 = vmatprep.subr.mxu0 %v1451
    %2021 = vmatpush1.msra.mxu0 %v1450
    %2022 = vmatprep.subr.mxu0 %v1453
    %2023 = vmatpush1.msra.mxu0 %v1452
    %2024 = vmatprep.subr.mxu0 %v1455
    %2025 = vmatpush1.msra.mxu0 %v1454
    %2026 = vmatprep.subr.mxu0 %v1457
    %2027 = vmatpush1.msra.mxu0 %v1456
    %2028 = vmatprep.subr.mxu0 %v1459
    %2029 = vmatpush1.msra.mxu0 %v1458
    %2030 = vmatprep.subr.mxu0 %v1461
    %2031 = vmatpush1.msra.mxu0 %v1460
    %2032 = vmatprep.subr.mxu0 %v1463
    %2033 = vmatpush1.msra.mxu0 %v1462
    %2034 = vmatprep.subr.mxu0 %v1465
    %2035 = vmatpush1.msra.mxu0 %v1464
    %2036 = vmatprep.subr.mxu0 %v1467
    %2037 = vmatpush1.msra.mxu0 %v1466
    %2038 = vmatprep.subr.mxu0 %v1469
    %2039 = vmatpush1.msra.mxu0 %v1468
    %2040 = vmatprep.subr.mxu0 %v1471
    %2041 = vmatpush1.msra.mxu0 %v1470
    %2042 = vmatprep.subr.mxu0 %v1473
    %2043 = vmatpush1.msra.mxu0 %v1472
    %2044 = vmatprep.subr.mxu0 %v1475
    %2045 = vmatpush1.msra.mxu0 %v1474
    %2046 = vmatprep.subr.mxu0 %v1477
    %2047 = vmatpush1.msra.mxu0 %v1476
    %2048 = vmatprep.subr.mxu0 %v1479
    %2049 = vmatpush1.msra.mxu0 %v1478
    %2050 = vmatprep.subr.mxu0 %v1481
    %2051 = vmatpush1.msra.mxu0 %v1480
    %2052 = vmatprep.subr.mxu0 %v1483
    %2053 = vmatpush1.msra.mxu0 %v1482
    %2054 = vmatprep.subr.mxu0 %v1485
    %2055 = vmatpush1.msra.mxu0 %v1484
    %2056 = vmatprep.subr.mxu0 %v1487
    %2057 = vmatpush1.msra.mxu0 %v1486
    %2058 = vmatprep.subr.mxu0 %v1489
    %2059 = vmatpush1.msra.mxu0 %v1488
    %2060 = vmatprep.subr.mxu0 0.0
    %2061 = vmatpush1.msra.mxu0 0.0
    %2062 = vmatprep.subr.mxu0 0.0
    %2063 = vmatpush1.msra.mxu0 0.0
    %2064 = vmatprep.subr.mxu0 0.0
    %2065 = vmatpush1.msra.mxu0 0.0
    %2066 = vmatprep.subr.mxu0 0.0
    %2067 = vmatpush1.msra.mxu0 0.0
    %2068 = vmatprep.mubr.f32.mxu0 %v1921
    %2069 = vmatmul.mubr.f32.gmra.mrb[0].mxu0 %v1378
    %v2070 = vpop.f32.mrb[0].mxu0
    %v2071 = vadd.f32 %v1754, %v2070
    %v2072 = vpop.f32.mrb[0].mxu0
    %v2073 = vadd.f32 %v1756, %v2072
    %2074 = vmatprep.mubr.f32.mxu0 %v1924
    %2075 = vmatmul.mubr.f32.gmra.mrb[0].mxu0 %v1380
    %v2076 = vpop.f32.mrb[0].mxu0
    %v2077 = vadd.f32 %v1760, %v2076
    %v2078 = vpop.f32.mrb[0].mxu0
    %v2079 = vadd.f32 %v1762, %v2078
    %2080 = vmatprep.mubr.f32.mxu0 %v1927
    %2081 = vmatmul.mubr.f32.gmra.mrb[0].mxu0 %v1382
    %v2082 = vpop.f32.mrb[0].mxu0
    %v2083 = vadd.f32 %v1766, %v2082
    %v2084 = vpop.f32.mrb[0].mxu0
    %v2085 = vadd.f32 %v1768, %v2084
    %2086 = vmatprep.mubr.f32.mxu0 %v1930
    %2087 = vmatmul.mubr.f32.gmra.mrb[0].mxu0 %v1384
    %v2088 = vpop.f32.mrb[0].mxu0
    %v2089 = vadd.f32 %v1772, %v2088
    %v2090 = vpop.f32.mrb[0].mxu0
    %v2091 = vadd.f32 %v1774, %v2090
    %2092 = vmatprep.mubr.f32.mxu0 %v1933
    %2093 = vmatmul.mubr.f32.gmra.mrb[0].mxu0 %v1386
    %v2094 = vpop.f32.mrb[0].mxu0
    %v2095 = vadd.f32 %v1778, %v2094
    %v2096 = vpop.f32.mrb[0].mxu0
    %v2097 = vadd.f32 %v1780, %v2096
    %2098 = vmatprep.mubr.f32.mxu0 %v1936
    %2099 = vmatmul.mubr.f32.gmra.mrb[0].mxu0 %v1388
    %v2100 = vpop.f32.mrb[0].mxu0
    %v2101 = vadd.f32 %v1784, %v2100
    %v2102 = vpop.f32.mrb[0].mxu0
    %v2103 = vadd.f32 %v1786, %v2102
    %2104 = vmatprep.mubr.f32.mxu0 %v1939
    %2105 = vmatmul.mubr.f32.gmra.mrb[0].mxu0 %v1390
    %v2106 = vpop.f32.mrb[0].mxu0
    %v2107 = vadd.f32 %v1790, %v2106
    %v2108 = vpop.f32.mrb[0].mxu0
    %v2109 = vadd.f32 %v1792, %v2108
    %2110 = vmatprep.mubr.f32.mxu0 %v1942
    %2111 = vmatmul.mubr.f32.gmra.mrb[0].mxu0 %v1392
    %v2112 = vpop.f32.mrb[0].mxu0
    %v2113 = vadd.f32 %v1796, %v2112
    %v2114 = vpop.f32.mrb[0].mxu0
    %v2115 = vadd.f32 %v1798, %v2114
    %2116 = vmatprep.mubr.f32.mxu0 %v1945
    %2117 = vmatmul.mubr.f32.gmra.mrb[0].mxu0 %v1394
    %v2118 = vpop.f32.mrb[0].mxu0
    %v2119 = vadd.f32 %v1802, %v2118
    %v2120 = vpop.f32.mrb[0].mxu0
    %v2121 = vadd.f32 %v1804, %v2120
    %2122 = vmatprep.mubr.f32.mxu0 %v1948
    %2123 = vmatmul.mubr.f32.gmra.mrb[0].mxu0 %v1396
    %v2124 = vpop.f32.mrb[0].mxu0
    %v2125 = vadd.f32 %v1808, %v2124
    %v2126 = vpop.f32.mrb[0].mxu0
    %v2127 = vadd.f32 %v1810, %v2126
    %2128 = vmatprep.mubr.f32.mxu0 %v1951
    %2129 = vmatmul.mubr.f32.gmra.mrb[0].mxu0 %v1398
    %v2130 = vpop.f32.mrb[0].mxu0
    %v2131 = vadd.f32 %v1814, %v2130
    %v2132 = vpop.f32.mrb[0].mxu0
    %v2133 = vadd.f32 %v1816, %v2132
    %2134 = vmatprep.mubr.f32.mxu0 %v1954
    %2135 = vmatmul.mubr.f32.gmra.mrb[0].mxu0 %v1400
    %v2136 = vpop.f32.mrb[0].mxu0
    %v2137 = vadd.f32 %v1820, %v2136
    %v2138 = vpop.f32.mrb[0].mxu0
    %v2139 = vadd.f32 %v1822, %v2138
    %2140 = vmatprep.mubr.f32.mxu0 %v1957
    %2141 = vmatmul.mubr.f32.gmra.mrb[0].mxu0 %v1402
    %v2142 = vpop.f32.mrb[0].mxu0
    %v2143 = vadd.f32 %v1826, %v2142
    %v2144 = vpop.f32.mrb[0].mxu0
    %v2145 = vadd.f32 %v1828, %v2144
    %2146 = vmatprep.mubr.f32.mxu0 %v1960
    %2147 = vmatmul.mubr.f32.gmra.mrb[0].mxu0 %v1404
    %v2148 = vpop.f32.mrb[0].mxu0
    %v2149 = vadd.f32 %v1832, %v2148
    %v2150 = vpop.f32.mrb[0].mxu0
    %v2151 = vadd.f32 %v1834, %v2150
    %2152 = vmatprep.mubr.f32.mxu0 %v1963
    %2153 = vmatmul.mubr.f32.gmra.mrb[0].mxu0 %v1406
    %v2154 = vpop.f32.mrb[0].mxu0
    %v2155 = vadd.f32 %v1838, %v2154
    %v2156 = vpop.f32.mrb[0].mxu0
    %v2157 = vadd.f32 %v1840, %v2156
    %2158 = vmatprep.mubr.f32.mxu0 %v1966
    %2159 = vmatmul.mubr.f32.gmra.mrb[0].mxu0 %v1408
    %v2160 = vpop.f32.mrb[0].mxu0
    %v2161 = vadd.f32 %v1844, %v2160
    %v2162 = vpop.f32.mrb[0].mxu0
    %v2163 = vadd.f32 %v1846, %v2162
    %2164 = vmatprep.mubr.f32.mxu0 %v1969
    %2165 = vmatmul.mubr.f32.gmra.mrb[0].mxu0 %v1410
    %v2166 = vpop.f32.mrb[0].mxu0
    %v2167 = vadd.f32 %v1850, %v2166
    %v2168 = vpop.f32.mrb[0].mxu0
    %v2169 = vadd.f32 %v1852, %v2168
    %2170 = vmatprep.mubr.f32.mxu0 %v1972
    %2171 = vmatmul.mubr.f32.gmra.mrb[0].mxu0 %v1412
    %v2172 = vpop.f32.mrb[0].mxu0
    %v2173 = vadd.f32 %v1856, %v2172
    %v2174 = vpop.f32.mrb[0].mxu0
    %v2175 = vadd.f32 %v1858, %v2174
    %2176 = vmatprep.mubr.f32.mxu0 %v1975
    %2177 = vmatmul.mubr.f32.gmra.mrb[0].mxu0 %v1414
    %v2178 = vpop.f32.mrb[0].mxu0
    %v2179 = vadd.f32 %v1862, %v2178
    %v2180 = vpop.f32.mrb[0].mxu0
    %v2181 = vadd.f32 %v1864, %v2180
    %2182 = vmatprep.mubr.f32.mxu0 %v1978
    %2183 = vmatmul.mubr.f32.gmra.mrb[0].mxu0 %v1416
    %v2184 = vpop.f32.mrb[0].mxu0
    %v2185 = vadd.f32 %v1868, %v2184
    %v2186 = vpop.f32.mrb[0].mxu0
    %v2187 = vadd.f32 %v1870, %v2186
    %2188 = vmatprep.mubr.f32.mxu0 %v1981
    %2189 = vmatmul.mubr.f32.gmra.mrb[0].mxu0 %v1418
    %v2190 = vpop.f32.mrb[0].mxu0
    %v2191 = vadd.f32 %v1874, %v2190
    %v2192 = vpop.f32.mrb[0].mxu0
    %v2193 = vadd.f32 %v1876, %v2192
    %2194 = vmatprep.mubr.f32.mxu0 %v1984
    %2195 = vmatmul.mubr.f32.gmra.mrb[0].mxu0 %v1420
    %v2196 = vpop.f32.mrb[0].mxu0
    %v2197 = vadd.f32 %v1880, %v2196
    %v2198 = vpop.f32.mrb[0].mxu0
    %v2199 = vadd.f32 %v1882, %v2198
    %2200 = vmatprep.mubr.f32.mxu0 %v1987
    %2201 = vmatmul.mubr.f32.gmra.mrb[0].mxu0 %v1422
    %v2202 = vpop.f32.mrb[0].mxu0
    %v2203 = vadd.f32 %v1886, %v2202
    %v2204 = vpop.f32.mrb[0].mxu0
    %v2205 = vadd.f32 %v1888, %v2204
    %2206 = vmatprep.mubr.f32.mxu0 %v1990
    %2207 = vmatmul.mubr.f32.gmra.mrb[0].mxu0 %v1424
    %v2208 = vpop.f32.mrb[0].mxu0
    %v2209 = vadd.f32 %v1892, %v2208
    %v2210 = vpop.f32.mrb[0].mxu0
    %v2211 = vadd.f32 %v1894, %v2210
    %2212 = vmatprep.mubr.f32.mxu0 %v1993
    %2213 = vmatmul.mubr.f32.gmra.mrb[0].mxu0 %v1426
    %v2214 = vpop.f32.mrb[0].mxu0
    %v2215 = vadd.f32 %v1898, %v2214
    %v2216 = vpop.f32.mrb[0].mxu0
    %v2217 = vadd.f32 %v1900, %v2216
    %2218 = vmatprep.mubr.f32.mxu0 %v1996
    %2219 = vmatmul.mubr.f32.gmra.mrb[0].mxu0 %v1428
    %v2220 = vpop.f32.mrb[0].mxu0
    %v2221 = vadd.f32 %v1904, %v2220
    %v2222 = vpop.f32.mrb[0].mxu0
    %v2223 = vadd.f32 %v1906, %v2222
    %2224 = vmatprep.mubr.f32.mxu0 %v1999
    %2225 = vmatmul.mubr.f32.gmra.mrb[0].mxu0 %v1430
    %v2226 = vpop.f32.mrb[0].mxu0
    %v2227 = vadd.f32 %v1910, %v2226
    %v2228 = vpop.f32.mrb[0].mxu0
    %v2229 = vadd.f32 %v1912, %v2228
    %2230 = vmatprep.mubr.f32.mxu0 %v2002
    %2231 = vmatmul.mubr.f32.gmra.mrb[0].mxu0 %v1432
    %v2232 = vpop.f32.mrb[0].mxu0
    %v2233 = vadd.f32 %v1916, %v2232
    %v2234 = vpop.f32.mrb[0].mxu0
    %v2235 = vadd.f32 %v1918, %v2234
    %2236 = vdwg.mxu0
    %s2237 = scalar_lea.vmem [#allocation2], 32
    %v2238 = vld [vmem:[%s2237] sm:$0xff]
    %v2239 = vld [vmem:[%s2237 + $0x8] sm:$0xff]
    %v2240 = vld [vmem:[%s2237 + $0x10] sm:$0xff]
    %v2241 = vld [vmem:[%s2237 + $0x18] sm:$0xff]
    %v2242 = vld [vmem:[%s2237 + $0x20] sm:$0xff]
    %v2243 = vld [vmem:[%s2237 + $0x28] sm:$0xff]
    %v2244 = vld [vmem:[%s2237 + $0x30] sm:$0xff]
    %v2245 = vld [vmem:[%s2237 + $0x38] sm:$0xff]
    %v2246 = vld [vmem:[%s2237 + $0x40] sm:$0xff]
    %v2247 = vld [vmem:[%s2237 + $0x48] sm:$0xff]
    %v2248 = vld [vmem:[%s2237 + $0x50] sm:$0xff]
    %v2249 = vld [vmem:[%s2237 + $0x58] sm:$0xff]
    %v2250 = vld [vmem:[%s2237 + $0x60] sm:$0xff]
    %v2251 = vld [vmem:[%s2237 + $0x68] sm:$0xff]
    %v2252 = vld [vmem:[%s2237 + $0x70] sm:$0xff]
    %v2253 = vld [vmem:[%s2237 + $0x78] sm:$0xff]
    %v2254 = vld [vmem:[%s2237 + $0x80] sm:$0xff]
    %v2255 = vld [vmem:[%s2237 + $0x88] sm:$0xff]
    %v2256 = vld [vmem:[%s2237 + $0x90] sm:$0xff]
    %v2257 = vld [vmem:[%s2237 + $0x98] sm:$0xff]
    %v2258 = vld [vmem:[%s2237 + $0xa0] sm:$0xff]
    %v2259 = vld [vmem:[%s2237 + $0xa8] sm:$0xff]
    %v2260 = vld [vmem:[%s2237 + $0xb0] sm:$0xff]
    %v2261 = vld [vmem:[%s2237 + $0xb8] sm:$0xff]
    %v2262 = vld [vmem:[%s2237 + $0xc0] sm:$0xff]
    %v2263 = vld [vmem:[%s2237 + $0xc8] sm:$0xff]
    %v2264 = vld [vmem:[%s2237 + $0xd0] sm:$0xff]
    %v2265 = vld [vmem:[%s2237 + $0xd8] sm:$0xff]
    %v2266 = vld [vmem:[%s2237 + $0xe0] sm:$0xff]
    %v2267 = vld [vmem:[%s2237 + $0xe8] sm:$0xff]
    %v2268 = vld [vmem:[%s2237 + $0xf0] sm:$0xff]
    %v2269 = vld [vmem:[%s2237 + $0xf8] sm:$0xff]
    %v2270 = vld [vmem:[%s2237 + $0x100] sm:$0xff]
    %v2271 = vld [vmem:[%s2237 + $0x108] sm:$0xff]
    %v2272 = vld [vmem:[%s2237 + $0x110] sm:$0xff]
    %v2273 = vld [vmem:[%s2237 + $0x118] sm:$0xff]
    %v2274 = vld [vmem:[%s2237 + $0x120] sm:$0xff]
    %v2275 = vld [vmem:[%s2237 + $0x128] sm:$0xff]
    %v2276 = vld [vmem:[%s2237 + $0x130] sm:$0xff]
    %v2277 = vld [vmem:[%s2237 + $0x138] sm:$0xff]
    %v2278 = vld [vmem:[%s2237 + $0x140] sm:$0xff]
    %v2279 = vld [vmem:[%s2237 + $0x148] sm:$0xff]
    %v2280 = vld [vmem:[%s2237 + $0x150] sm:$0xff]
    %v2281 = vld [vmem:[%s2237 + $0x158] sm:$0xff]
    %v2282 = vld [vmem:[%s2237 + $0x160] sm:$0xff]
    %v2283 = vld [vmem:[%s2237 + $0x168] sm:$0xff]
    %v2284 = vld [vmem:[%s2237 + $0x170] sm:$0xff]
    %v2285 = vld [vmem:[%s2237 + $0x178] sm:$0xff]
    %v2286 = vld [vmem:[%s2237 + $0x180] sm:$0xff]
    %v2287 = vld [vmem:[%s2237 + $0x188] sm:$0xff]
    %v2288 = vld [vmem:[%s2237 + $0x190] sm:$0xff]
    %v2289 = vld [vmem:[%s2237 + $0x198] sm:$0xff]
    %v2290 = vld [vmem:[%s2237 + $0x1a0] sm:$0xff]
    %v2291 = vld [vmem:[%s2237 + $0x1a8] sm:$0xff]
    %v2292 = vld [vmem:[%s2237 + $0x1b0] sm:$0xff]
    %v2293 = vld [vmem:[%s2237 + $0x1b8] sm:$0xff]
    %s2294 = scalar_lea.vmem [#allocation5], 896
    %v2295 = vld [vmem:[%s2294] sm:$0xff]
    %v2296 = vld [vmem:[%s2294 + $0x8] sm:$0xff]
    %v2297 = vld [vmem:[%s2294 + $0x10] sm:$0xff]
    %v2298 = vld [vmem:[%s2294 + $0x18] sm:$0xff]
    %v2299 = vld [vmem:[%s2294 + $0x20] sm:$0xff]
    %v2300 = vld [vmem:[%s2294 + $0x28] sm:$0xff]
    %v2301 = vld [vmem:[%s2294 + $0x30] sm:$0xff]
    %v2302 = vld [vmem:[%s2294 + $0x38] sm:$0xff]
    %v2303 = vld [vmem:[%s2294 + $0x40] sm:$0xff]
    %v2304 = vld [vmem:[%s2294 + $0x48] sm:$0xff]
    %v2305 = vld [vmem:[%s2294 + $0x50] sm:$0xff]
    %v2306 = vld [vmem:[%s2294 + $0x58] sm:$0xff]
    %v2307 = vld [vmem:[%s2294 + $0x60] sm:$0xff]
    %v2308 = vld [vmem:[%s2294 + $0x68] sm:$0xff]
    %v2309 = vld [vmem:[%s2294 + $0x70] sm:$0xff]
    %v2310 = vld [vmem:[%s2294 + $0x78] sm:$0xff]
    %v2311 = vld [vmem:[%s2294 + $0x80] sm:$0xff]
    %v2312 = vld [vmem:[%s2294 + $0x88] sm:$0xff]
    %v2313 = vld [vmem:[%s2294 + $0x90] sm:$0xff]
    %v2314 = vld [vmem:[%s2294 + $0x98] sm:$0xff]
    %v2315 = vld [vmem:[%s2294 + $0xa0] sm:$0xff]
    %v2316 = vld [vmem:[%s2294 + $0xa8] sm:$0xff]
    %v2317 = vld [vmem:[%s2294 + $0xb0] sm:$0xff]
    %v2318 = vld [vmem:[%s2294 + $0xb8] sm:$0xff]
    %v2319 = vld [vmem:[%s2294 + $0xc0] sm:$0xff]
    %v2320 = vld [vmem:[%s2294 + $0xc8] sm:$0xff]
    %v2321 = vld [vmem:[%s2294 + $0xd0] sm:$0xff]
    %v2322 = vld [vmem:[%s2294 + $0xd8] sm:$0xff]
    %v2323 = vld [vmem:[%s2294 + $0xe0] sm:$0xff]
    %v2324 = vld [vmem:[%s2294 + $0xe8] sm:$0xff]
    %v2325 = vld [vmem:[%s2294 + $0xf0] sm:$0xff]
    %v2326 = vld [vmem:[%s2294 + $0xf8] sm:$0xff]
    %v2327 = vld [vmem:[%s2294 + $0x100] sm:$0xff]
    %v2328 = vld [vmem:[%s2294 + $0x108] sm:$0xff]
    %v2329 = vld [vmem:[%s2294 + $0x110] sm:$0xff]
    %v2330 = vld [vmem:[%s2294 + $0x118] sm:$0xff]
    %v2331 = vld [vmem:[%s2294 + $0x120] sm:$0xff]
    %v2332 = vld [vmem:[%s2294 + $0x128] sm:$0xff]
    %v2333 = vld [vmem:[%s2294 + $0x130] sm:$0xff]
    %v2334 = vld [vmem:[%s2294 + $0x138] sm:$0xff]
    %v2335 = vld [vmem:[%s2294 + $0x140] sm:$0xff]
    %v2336 = vld [vmem:[%s2294 + $0x148] sm:$0xff]
    %v2337 = vld [vmem:[%s2294 + $0x150] sm:$0xff]
    %v2338 = vld [vmem:[%s2294 + $0x158] sm:$0xff]
    %v2339 = vld [vmem:[%s2294 + $0x160] sm:$0xff]
    %v2340 = vld [vmem:[%s2294 + $0x168] sm:$0xff]
    %v2341 = vld [vmem:[%s2294 + $0x170] sm:$0xff]
    %v2342 = vld [vmem:[%s2294 + $0x178] sm:$0xff]
    %v2343 = vld [vmem:[%s2294 + $0x180] sm:$0xff]
    %v2344 = vld [vmem:[%s2294 + $0x188] sm:$0xff]
    %v2345 = vld [vmem:[%s2294 + $0x190] sm:$0xff]
    %v2346 = vld [vmem:[%s2294 + $0x198] sm:$0xff]
    %v2347 = vld [vmem:[%s2294 + $0x1a0] sm:$0xff]
    %v2348 = vld [vmem:[%s2294 + $0x1a8] sm:$0xff]
    %v2349 = vld [vmem:[%s2294 + $0x1b0] sm:$0xff]
    %v2350 = vld [vmem:[%s2294 + $0x1b8] sm:$0xff]
    %v2352 = vsel %vm1316, %v2239, 0
    %v2355 = vsel %vm1316, %v2241, 0
    %v2358 = vsel %vm1316, %v2243, 0
    %v2361 = vsel %vm1316, %v2245, 0
    %v2364 = vsel %vm1316, %v2247, 0
    %v2367 = vsel %vm1316, %v2249, 0
    %v2370 = vsel %vm1316, %v2251, 0
    %v2373 = vsel %vm1316, %v2253, 0
    %v2376 = vsel %vm1316, %v2255, 0
    %v2379 = vsel %vm1316, %v2257, 0
    %v2382 = vsel %vm1316, %v2259, 0
    %v2385 = vsel %vm1316, %v2261, 0
    %v2388 = vsel %vm1316, %v2263, 0
    %v2391 = vsel %vm1316, %v2265, 0
    %v2394 = vsel %vm1316, %v2267, 0
    %v2397 = vsel %vm1316, %v2269, 0
    %v2400 = vsel %vm1316, %v2271, 0
    %v2403 = vsel %vm1316, %v2273, 0
    %v2406 = vsel %vm1316, %v2275, 0
    %v2409 = vsel %vm1316, %v2277, 0
    %v2412 = vsel %vm1316, %v2279, 0
    %v2415 = vsel %vm1316, %v2281, 0
    %v2418 = vsel %vm1316, %v2283, 0
    %v2421 = vsel %vm1316, %v2285, 0
    %v2424 = vsel %vm1316, %v2287, 0
    %v2427 = vsel %vm1316, %v2289, 0
    %v2430 = vsel %vm1316, %v2291, 0
    %v2433 = vsel %vm1316, %v2293, 0
    %2435 = vmatprep.subr.mxu0 %v2296
    %2436 = vmatpush1.msra.mxu0 %v2295
    %2437 = vmatprep.subr.mxu0 %v2298
    %2438 = vmatpush1.msra.mxu0 %v2297
    %2439 = vmatprep.subr.mxu0 %v2300
    %2440 = vmatpush1.msra.mxu0 %v2299
    %2441 = vmatprep.subr.mxu0 %v2302
    %2442 = vmatpush1.msra.mxu0 %v2301
    %2443 = vmatprep.subr.mxu0 %v2304
    %2444 = vmatpush1.msra.mxu0 %v2303
    %2445 = vmatprep.subr.mxu0 %v2306
    %2446 = vmatpush1.msra.mxu0 %v2305
    %2447 = vmatprep.subr.mxu0 %v2308
    %2448 = vmatpush1.msra.mxu0 %v2307
    %2449 = vmatprep.subr.mxu0 %v2310
    %2450 = vmatpush1.msra.mxu0 %v2309
    %2451 = vmatprep.subr.mxu0 %v2312
    %2452 = vmatpush1.msra.mxu0 %v2311
    %2453 = vmatprep.subr.mxu0 %v2314
    %2454 = vmatpush1.msra.mxu0 %v2313
    %2455 = vmatprep.subr.mxu0 %v2316
    %2456 = vmatpush1.msra.mxu0 %v2315
    %2457 = vmatprep.subr.mxu0 %v2318
    %2458 = vmatpush1.msra.mxu0 %v2317
    %2459 = vmatprep.subr.mxu0 %v2320
    %2460 = vmatpush1.msra.mxu0 %v2319
    %2461 = vmatprep.subr.mxu0 %v2322
    %2462 = vmatpush1.msra.mxu0 %v2321
    %2463 = vmatprep.subr.mxu0 %v2324
    %2464 = vmatpush1.msra.mxu0 %v2323
    %2465 = vmatprep.subr.mxu0 %v2326
    %2466 = vmatpush1.msra.mxu0 %v2325
    %2467 = vmatprep.subr.mxu0 %v2328
    %2468 = vmatpush1.msra.mxu0 %v2327
    %2469 = vmatprep.subr.mxu0 %v2330
    %2470 = vmatpush1.msra.mxu0 %v2329
    %2471 = vmatprep.subr.mxu0 %v2332
    %2472 = vmatpush1.msra.mxu0 %v2331
    %2473 = vmatprep.subr.mxu0 %v2334
    %2474 = vmatpush1.msra.mxu0 %v2333
    %2475 = vmatprep.subr.mxu0 %v2336
    %2476 = vmatpush1.msra.mxu0 %v2335
    %2477 = vmatprep.subr.mxu0 %v2338
    %2478 = vmatpush1.msra.mxu0 %v2337
    %2479 = vmatprep.subr.mxu0 %v2340
    %2480 = vmatpush1.msra.mxu0 %v2339
    %2481 = vmatprep.subr.mxu0 %v2342
    %2482 = vmatpush1.msra.mxu0 %v2341
    %2483 = vmatprep.subr.mxu0 %v2344
    %2484 = vmatpush1.msra.mxu0 %v2343
    %2485 = vmatprep.subr.mxu0 %v2346
    %2486 = vmatpush1.msra.mxu0 %v2345
    %2487 = vmatprep.subr.mxu0 %v2348
    %2488 = vmatpush1.msra.mxu0 %v2347
    %2489 = vmatprep.subr.mxu0 %v2350
    %2490 = vmatpush1.msra.mxu0 %v2349
    %2491 = vmatprep.subr.mxu0 0.0
    %2492 = vmatpush1.msra.mxu0 0.0
    %2493 = vmatprep.subr.mxu0 0.0
    %2494 = vmatpush1.msra.mxu0 0.0
    %2495 = vmatprep.subr.mxu0 0.0
    %2496 = vmatpush1.msra.mxu0 0.0
    %2497 = vmatprep.subr.mxu0 0.0
    %2498 = vmatpush1.msra.mxu0 0.0
    %2499 = vmatprep.mubr.f32.mxu0 %v2352
    %2500 = vmatmul.mubr.f32.gmra.mrb[0].mxu0 %v2238
    %v2501 = vpop.f32.mrb[0].mxu0
    %v2502 = vadd.f32 0.0, %v2501
    %v2503 = vpop.f32.mrb[0].mxu0
    %v2504 = vadd.f32 0.0, %v2503
    %2505 = vmatprep.mubr.f32.mxu0 %v2355
    %2506 = vmatmul.mubr.f32.gmra.mrb[0].mxu0 %v2240
    %v2507 = vpop.f32.mrb[0].mxu0
    %v2508 = vadd.f32 0.0, %v2507
    %v2509 = vpop.f32.mrb[0].mxu0
    %v2510 = vadd.f32 0.0, %v2509
    %2511 = vmatprep.mubr.f32.mxu0 %v2358
    %2512 = vmatmul.mubr.f32.gmra.mrb[0].mxu0 %v2242
    %v2513 = vpop.f32.mrb[0].mxu0
    %v2514 = vadd.f32 0.0, %v2513
    %v2515 = vpop.f32.mrb[0].mxu0
    %v2516 = vadd.f32 0.0, %v2515
    %2517 = vmatprep.mubr.f32.mxu0 %v2361
    %2518 = vmatmul.mubr.f32.gmra.mrb[0].mxu0 %v2244
    %v2519 = vpop.f32.mrb[0].mxu0
    %v2520 = vadd.f32 0.0, %v2519
    %v2521 = vpop.f32.mrb[0].mxu0
    %v2522 = vadd.f32 0.0, %v2521
    %2523 = vmatprep.mubr.f32.mxu0 %v2364
    %2524 = vmatmul.mubr.f32.gmra.mrb[0].mxu0 %v2246
    %v2525 = vpop.f32.mrb[0].mxu0
    %v2526 = vadd.f32 0.0, %v2525
    %v2527 = vpop.f32.mrb[0].mxu0
    %v2528 = vadd.f32 0.0, %v2527
    %2529 = vmatprep.mubr.f32.mxu0 %v2367
    %2530 = vmatmul.mubr.f32.gmra.mrb[0].mxu0 %v2248
    %v2531 = vpop.f32.mrb[0].mxu0
    %v2532 = vadd.f32 0.0, %v2531
    %v2533 = vpop.f32.mrb[0].mxu0
    %v2534 = vadd.f32 0.0, %v2533
    %2535 = vmatprep.mubr.f32.mxu0 %v2370
    %2536 = vmatmul.mubr.f32.gmra.mrb[0].mxu0 %v2250
    %v2537 = vpop.f32.mrb[0].mxu0
    %v2538 = vadd.f32 0.0, %v2537
    %v2539 = vpop.f32.mrb[0].mxu0
    %v2540 = vadd.f32 0.0, %v2539
    %2541 = vmatprep.mubr.f32.mxu0 %v2373
    %2542 = vmatmul.mubr.f32.gmra.mrb[0].mxu0 %v2252
    %v2543 = vpop.f32.mrb[0].mxu0
    %v2544 = vadd.f32 0.0, %v2543
    %v2545 = vpop.f32.mrb[0].mxu0
    %v2546 = vadd.f32 0.0, %v2545
    %2547 = vmatprep.mubr.f32.mxu0 %v2376
    %2548 = vmatmul.mubr.f32.gmra.mrb[0].mxu0 %v2254
    %v2549 = vpop.f32.mrb[0].mxu0
    %v2550 = vadd.f32 0.0, %v2549
    %v2551 = vpop.f32.mrb[0].mxu0
    %v2552 = vadd.f32 0.0, %v2551
    %2553 = vmatprep.mubr.f32.mxu0 %v2379
    %2554 = vmatmul.mubr.f32.gmra.mrb[0].mxu0 %v2256
    %v2555 = vpop.f32.mrb[0].mxu0
    %v2556 = vadd.f32 0.0, %v2555
    %v2557 = vpop.f32.mrb[0].mxu0
    %v2558 = vadd.f32 0.0, %v2557
    %2559 = vmatprep.mubr.f32.mxu0 %v2382
    %2560 = vmatmul.mubr.f32.gmra.mrb[0].mxu0 %v2258
    %v2561 = vpop.f32.mrb[0].mxu0
    %v2562 = vadd.f32 0.0, %v2561
    %v2563 = vpop.f32.mrb[0].mxu0
    %v2564 = vadd.f32 0.0, %v2563
    %2565 = vmatprep.mubr.f32.mxu0 %v2385
    %2566 = vmatmul.mubr.f32.gmra.mrb[0].mxu0 %v2260
    %v2567 = vpop.f32.mrb[0].mxu0
    %v2568 = vadd.f32 0.0, %v2567
    %v2569 = vpop.f32.mrb[0].mxu0
    %v2570 = vadd.f32 0.0, %v2569
    %2571 = vmatprep.mubr.f32.mxu0 %v2388
    %2572 = vmatmul.mubr.f32.gmra.mrb[0].mxu0 %v2262
    %v2573 = vpop.f32.mrb[0].mxu0
    %v2574 = vadd.f32 0.0, %v2573
    %v2575 = vpop.f32.mrb[0].mxu0
    %v2576 = vadd.f32 0.0, %v2575
    %2577 = vmatprep.mubr.f32.mxu0 %v2391
    %2578 = vmatmul.mubr.f32.gmra.mrb[0].mxu0 %v2264
    %v2579 = vpop.f32.mrb[0].mxu0
    %v2580 = vadd.f32 0.0, %v2579
    %v2581 = vpop.f32.mrb[0].mxu0
    %v2582 = vadd.f32 0.0, %v2581
    %2583 = vmatprep.mubr.f32.mxu0 %v2394
    %2584 = vmatmul.mubr.f32.gmra.mrb[0].mxu0 %v2266
    %v2585 = vpop.f32.mrb[0].mxu0
    %v2586 = vadd.f32 0.0, %v2585
    %v2587 = vpop.f32.mrb[0].mxu0
    %v2588 = vadd.f32 0.0, %v2587
    %2589 = vmatprep.mubr.f32.mxu0 %v2397
    %2590 = vmatmul.mubr.f32.gmra.mrb[0].mxu0 %v2268
    %v2591 = vpop.f32.mrb[0].mxu0
    %v2592 = vadd.f32 0.0, %v2591
    %v2593 = vpop.f32.mrb[0].mxu0
    %v2594 = vadd.f32 0.0, %v2593
    %2595 = vmatprep.mubr.f32.mxu0 %v2400
    %2596 = vmatmul.mubr.f32.gmra.mrb[0].mxu0 %v2270
    %v2597 = vpop.f32.mrb[0].mxu0
    %v2598 = vadd.f32 0.0, %v2597
    %v2599 = vpop.f32.mrb[0].mxu0
    %v2600 = vadd.f32 0.0, %v2599
    %2601 = vmatprep.mubr.f32.mxu0 %v2403
    %2602 = vmatmul.mubr.f32.gmra.mrb[0].mxu0 %v2272
    %v2603 = vpop.f32.mrb[0].mxu0
    %v2604 = vadd.f32 0.0, %v2603
    %v2605 = vpop.f32.mrb[0].mxu0
    %v2606 = vadd.f32 0.0, %v2605
    %2607 = vmatprep.mubr.f32.mxu0 %v2406
    %2608 = vmatmul.mubr.f32.gmra.mrb[0].mxu0 %v2274
    %v2609 = vpop.f32.mrb[0].mxu0
    %v2610 = vadd.f32 0.0, %v2609
    %v2611 = vpop.f32.mrb[0].mxu0
    %v2612 = vadd.f32 0.0, %v2611
    %2613 = vmatprep.mubr.f32.mxu0 %v2409
    %2614 = vmatmul.mubr.f32.gmra.mrb[0].mxu0 %v2276
    %v2615 = vpop.f32.mrb[0].mxu0
    %v2616 = vadd.f32 0.0, %v2615
    %v2617 = vpop.f32.mrb[0].mxu0
    %v2618 = vadd.f32 0.0, %v2617
    %2619 = vmatprep.mubr.f32.mxu0 %v2412
    %2620 = vmatmul.mubr.f32.gmra.mrb[0].mxu0 %v2278
    %v2621 = vpop.f32.mrb[0].mxu0
    %v2622 = vadd.f32 0.0, %v2621
    %v2623 = vpop.f32.mrb[0].mxu0
    %v2624 = vadd.f32 0.0, %v2623
    %2625 = vmatprep.mubr.f32.mxu0 %v2415
    %2626 = vmatmul.mubr.f32.gmra.mrb[0].mxu0 %v2280
    %v2627 = vpop.f32.mrb[0].mxu0
    %v2628 = vadd.f32 0.0, %v2627
    %v2629 = vpop.f32.mrb[0].mxu0
    %v2630 = vadd.f32 0.0, %v2629
    %2631 = vmatprep.mubr.f32.mxu0 %v2418
    %2632 = vmatmul.mubr.f32.gmra.mrb[0].mxu0 %v2282
    %v2633 = vpop.f32.mrb[0].mxu0
    %v2634 = vadd.f32 0.0, %v2633
    %v2635 = vpop.f32.mrb[0].mxu0
    %v2636 = vadd.f32 0.0, %v2635
    %2637 = vmatprep.mubr.f32.mxu0 %v2421
    %2638 = vmatmul.mubr.f32.gmra.mrb[0].mxu0 %v2284
    %v2639 = vpop.f32.mrb[0].mxu0
    %v2640 = vadd.f32 0.0, %v2639
    %v2641 = vpop.f32.mrb[0].mxu0
    %v2642 = vadd.f32 0.0, %v2641
    %2643 = vmatprep.mubr.f32.mxu0 %v2424
    %2644 = vmatmul.mubr.f32.gmra.mrb[0].mxu0 %v2286
    %v2645 = vpop.f32.mrb[0].mxu0
    %v2646 = vadd.f32 0.0, %v2645
    %v2647 = vpop.f32.mrb[0].mxu0
    %v2648 = vadd.f32 0.0, %v2647
    %2649 = vmatprep.mubr.f32.mxu0 %v2427
    %2650 = vmatmul.mubr.f32.gmra.mrb[0].mxu0 %v2288
    %v2651 = vpop.f32.mrb[0].mxu0
    %v2652 = vadd.f32 0.0, %v2651
    %v2653 = vpop.f32.mrb[0].mxu0
    %v2654 = vadd.f32 0.0, %v2653
    %2655 = vmatprep.mubr.f32.mxu0 %v2430
    %2656 = vmatmul.mubr.f32.gmra.mrb[0].mxu0 %v2290
    %v2657 = vpop.f32.mrb[0].mxu0
    %v2658 = vadd.f32 0.0, %v2657
    %v2659 = vpop.f32.mrb[0].mxu0
    %v2660 = vadd.f32 0.0, %v2659
    %2661 = vmatprep.mubr.f32.mxu0 %v2433
    %2662 = vmatmul.mubr.f32.gmra.mrb[0].mxu0 %v2292
    %v2663 = vpop.f32.mrb[0].mxu0
    %v2664 = vadd.f32 0.0, %v2663
    %v2665 = vpop.f32.mrb[0].mxu0
    %v2666 = vadd.f32 0.0, %v2665
    %2667 = vdwg.mxu0
    %v2668 = vadd.f32 %v2071, %v2502
    %v2669 = vadd.f32 %v2073, %v2504
    %v2670 = vadd.f32 %v2077, %v2508
    %v2671 = vadd.f32 %v2079, %v2510
    %v2672 = vadd.f32 %v2083, %v2514
    %v2673 = vadd.f32 %v2085, %v2516
    %v2674 = vadd.f32 %v2089, %v2520
    %v2675 = vadd.f32 %v2091, %v2522
    %v2676 = vadd.f32 %v2095, %v2526
    %v2677 = vadd.f32 %v2097, %v2528
    %v2678 = vadd.f32 %v2101, %v2532
    %v2679 = vadd.f32 %v2103, %v2534
    %v2680 = vadd.f32 %v2107, %v2538
    %v2681 = vadd.f32 %v2109, %v2540
    %v2682 = vadd.f32 %v2113, %v2544
    %v2683 = vadd.f32 %v2115, %v2546
    %v2684 = vadd.f32 %v2119, %v2550
    %v2685 = vadd.f32 %v2121, %v2552
    %v2686 = vadd.f32 %v2125, %v2556
    %v2687 = vadd.f32 %v2127, %v2558
    %v2688 = vadd.f32 %v2131, %v2562
    %v2689 = vadd.f32 %v2133, %v2564
    %v2690 = vadd.f32 %v2137, %v2568
    %v2691 = vadd.f32 %v2139, %v2570
    %v2692 = vadd.f32 %v2143, %v2574
    %v2693 = vadd.f32 %v2145, %v2576
    %v2694 = vadd.f32 %v2149, %v2580
    %v2695 = vadd.f32 %v2151, %v2582
    %v2696 = vadd.f32 %v2155, %v2586
    %v2697 = vadd.f32 %v2157, %v2588
    %v2698 = vadd.f32 %v2161, %v2592
    %v2699 = vadd.f32 %v2163, %v2594
    %v2700 = vadd.f32 %v2167, %v2598
    %v2701 = vadd.f32 %v2169, %v2600
    %v2702 = vadd.f32 %v2173, %v2604
    %v2703 = vadd.f32 %v2175, %v2606
    %v2704 = vadd.f32 %v2179, %v2610
    %v2705 = vadd.f32 %v2181, %v2612
    %v2706 = vadd.f32 %v2185, %v2616
    %v2707 = vadd.f32 %v2187, %v2618
    %v2708 = vadd.f32 %v2191, %v2622
    %v2709 = vadd.f32 %v2193, %v2624
    %v2710 = vadd.f32 %v2197, %v2628
    %v2711 = vadd.f32 %v2199, %v2630
    %v2712 = vadd.f32 %v2203, %v2634
    %v2713 = vadd.f32 %v2205, %v2636
    %v2714 = vadd.f32 %v2209, %v2640
    %v2715 = vadd.f32 %v2211, %v2642
    %v2716 = vadd.f32 %v2215, %v2646
    %v2717 = vadd.f32 %v2217, %v2648
    %v2718 = vadd.f32 %v2221, %v2652
    %v2719 = vadd.f32 %v2223, %v2654
    %v2720 = vadd.f32 %v2227, %v2658
    %v2721 = vadd.f32 %v2229, %v2660
    %v2722 = vadd.f32 %v2233, %v2664
    %v2723 = vadd.f32 %v2235, %v2666
    %v2724 = vld [vmem:[%s4] sm:$0x3]
    %v2726 = vlaneseq
    %v2727 = vshrl.u32 %v2726, 7
    %v2728 = vsub.s32 0, %v2727
    %v2729 = vrot.slane %v2724, %v2728
    %v2730 = vlaneseq
    %v2731 = vshrl.u32 %v2730, 7
    %v2732 = vsub.s32 1, %v2731
    %v2733 = vrot.slane %v2724, %v2732
    %v2736 = vadd.f32 %v2668, %v2729
    %v2737 = vadd.f32 %v2669, %v2733
    %v2738 = vadd.f32 %v2670, %v2729
    %v2739 = vadd.f32 %v2671, %v2733
    %v2740 = vadd.f32 %v2672, %v2729
    %v2741 = vadd.f32 %v2673, %v2733
    %v2742 = vadd.f32 %v2674, %v2729
    %v2743 = vadd.f32 %v2675, %v2733
    %v2744 = vadd.f32 %v2676, %v2729
    %v2745 = vadd.f32 %v2677, %v2733
    %v2746 = vadd.f32 %v2678, %v2729
    %v2747 = vadd.f32 %v2679, %v2733
    %v2748 = vadd.f32 %v2680, %v2729
    %v2749 = vadd.f32 %v2681, %v2733
    %v2750 = vadd.f32 %v2682, %v2729
    %v2751 = vadd.f32 %v2683, %v2733
    %v2752 = vadd.f32 %v2684, %v2729
    %v2753 = vadd.f32 %v2685, %v2733
    %v2754 = vadd.f32 %v2686, %v2729
    %v2755 = vadd.f32 %v2687, %v2733
    %v2756 = vadd.f32 %v2688, %v2729
    %v2757 = vadd.f32 %v2689, %v2733
    %v2758 = vadd.f32 %v2690, %v2729
    %v2759 = vadd.f32 %v2691, %v2733
    %v2760 = vadd.f32 %v2692, %v2729
    %v2761 = vadd.f32 %v2693, %v2733
    %v2762 = vadd.f32 %v2694, %v2729
    %v2763 = vadd.f32 %v2695, %v2733
    %v2764 = vadd.f32 %v2696, %v2729
    %v2765 = vadd.f32 %v2697, %v2733
    %v2766 = vadd.f32 %v2698, %v2729
    %v2767 = vadd.f32 %v2699, %v2733
    %v2768 = vadd.f32 %v2700, %v2729
    %v2769 = vadd.f32 %v2701, %v2733
    %v2770 = vadd.f32 %v2702, %v2729
    %v2771 = vadd.f32 %v2703, %v2733
    %v2772 = vadd.f32 %v2704, %v2729
    %v2773 = vadd.f32 %v2705, %v2733
    %v2774 = vadd.f32 %v2706, %v2729
    %v2775 = vadd.f32 %v2707, %v2733
    %v2776 = vadd.f32 %v2708, %v2729
    %v2777 = vadd.f32 %v2709, %v2733
    %v2778 = vadd.f32 %v2710, %v2729
    %v2779 = vadd.f32 %v2711, %v2733
    %v2780 = vadd.f32 %v2712, %v2729
    %v2781 = vadd.f32 %v2713, %v2733
    %v2782 = vadd.f32 %v2714, %v2729
    %v2783 = vadd.f32 %v2715, %v2733
    %v2784 = vadd.f32 %v2716, %v2729
    %v2785 = vadd.f32 %v2717, %v2733
    %v2786 = vadd.f32 %v2718, %v2729
    %v2787 = vadd.f32 %v2719, %v2733
    %v2788 = vadd.f32 %v2720, %v2729
    %v2789 = vadd.f32 %v2721, %v2733
    %v2790 = vadd.f32 %v2722, %v2729
    %v2791 = vadd.f32 %v2723, %v2733
    %v2792 = vmax.f32 %v2736, 0.0
    %v2793 = vmax.f32 %v2737, 0.0
    %v2794 = vmax.f32 %v2738, 0.0
    %v2795 = vmax.f32 %v2739, 0.0
    %v2796 = vmax.f32 %v2740, 0.0
    %v2797 = vmax.f32 %v2741, 0.0
    %v2798 = vmax.f32 %v2742, 0.0
    %v2799 = vmax.f32 %v2743, 0.0
    %v2800 = vmax.f32 %v2744, 0.0
    %v2801 = vmax.f32 %v2745, 0.0
    %v2802 = vmax.f32 %v2746, 0.0
    %v2803 = vmax.f32 %v2747, 0.0
    %v2804 = vmax.f32 %v2748, 0.0
    %v2805 = vmax.f32 %v2749, 0.0
    %v2806 = vmax.f32 %v2750, 0.0
    %v2807 = vmax.f32 %v2751, 0.0
    %v2808 = vmax.f32 %v2752, 0.0
    %v2809 = vmax.f32 %v2753, 0.0
    %v2810 = vmax.f32 %v2754, 0.0
    %v2811 = vmax.f32 %v2755, 0.0
    %v2812 = vmax.f32 %v2756, 0.0
    %v2813 = vmax.f32 %v2757, 0.0
    %v2814 = vmax.f32 %v2758, 0.0
    %v2815 = vmax.f32 %v2759, 0.0
    %v2816 = vmax.f32 %v2760, 0.0
    %v2817 = vmax.f32 %v2761, 0.0
    %v2818 = vmax.f32 %v2762, 0.0
    %v2819 = vmax.f32 %v2763, 0.0
    %v2820 = vmax.f32 %v2764, 0.0
    %v2821 = vmax.f32 %v2765, 0.0
    %v2822 = vmax.f32 %v2766, 0.0
    %v2823 = vmax.f32 %v2767, 0.0
    %v2824 = vmax.f32 %v2768, 0.0
    %v2825 = vmax.f32 %v2769, 0.0
    %v2826 = vmax.f32 %v2770, 0.0
    %v2827 = vmax.f32 %v2771, 0.0
    %v2828 = vmax.f32 %v2772, 0.0
    %v2829 = vmax.f32 %v2773, 0.0
    %v2830 = vmax.f32 %v2774, 0.0
    %v2831 = vmax.f32 %v2775, 0.0
    %v2832 = vmax.f32 %v2776, 0.0
    %v2833 = vmax.f32 %v2777, 0.0
    %v2834 = vmax.f32 %v2778, 0.0
    %v2835 = vmax.f32 %v2779, 0.0
    %v2836 = vmax.f32 %v2780, 0.0
    %v2837 = vmax.f32 %v2781, 0.0
    %v2838 = vmax.f32 %v2782, 0.0
    %v2839 = vmax.f32 %v2783, 0.0
    %v2840 = vmax.f32 %v2784, 0.0
    %v2841 = vmax.f32 %v2785, 0.0
    %v2842 = vmax.f32 %v2786, 0.0
    %v2843 = vmax.f32 %v2787, 0.0
    %v2844 = vmax.f32 %v2788, 0.0
    %v2845 = vmax.f32 %v2789, 0.0
    %v2846 = vmax.f32 %v2790, 0.0
    %v2847 = vmax.f32 %v2791, 0.0
    %v2848 = vmax.f32 %v2792, %v2794
    %v2849 = vmax.f32 %v2793, %v2795
    %v2850 = vmax.f32 %v2796, %v2798
    %v2851 = vmax.f32 %v2797, %v2799
    %v2852 = vmax.f32 %v2800, %v2802
    %v2853 = vmax.f32 %v2801, %v2803
    %v2854 = vmax.f32 %v2804, %v2806
    %v2855 = vmax.f32 %v2805, %v2807
    %v2856 = vmax.f32 %v2808, %v2810
    %v2857 = vmax.f32 %v2809, %v2811
    %v2858 = vmax.f32 %v2812, %v2814
    %v2859 = vmax.f32 %v2813, %v2815
    %v2860 = vmax.f32 %v2816, %v2818
    %v2861 = vmax.f32 %v2817, %v2819
    %v2862 = vmax.f32 %v2820, %v2822
    %v2863 = vmax.f32 %v2821, %v2823
    %v2864 = vmax.f32 %v2824, %v2826
    %v2865 = vmax.f32 %v2825, %v2827
    %v2866 = vmax.f32 %v2828, %v2830
    %v2867 = vmax.f32 %v2829, %v2831
    %v2868 = vmax.f32 %v2832, %v2834
    %v2869 = vmax.f32 %v2833, %v2835
    %v2870 = vmax.f32 %v2836, %v2838
    %v2871 = vmax.f32 %v2837, %v2839
    %v2872 = vmax.f32 %v2840, %v2842
    %v2873 = vmax.f32 %v2841, %v2843
    %v2874 = vmax.f32 %v2844, %v2846
    %v2875 = vmax.f32 %v2845, %v2847
    %2904 = vrot.lane.b32.xlu0 %v2848, 120
    %v2905 = vpop.permute.xlu0 %2904
    %2906 = vrot.lane.b32.xlu0 %v2849, 120
    %v2907 = vpop.permute.xlu0 %2906
    %2908 = vrot.lane.b32.xlu0 %v2850, 120
    %v2909 = vpop.permute.xlu0 %2908
    %2910 = vrot.lane.b32.xlu0 %v2851, 120
    %v2911 = vpop.permute.xlu0 %2910
    %2912 = vrot.lane.b32.xlu0 %v2852, 120
    %v2913 = vpop.permute.xlu0 %2912
    %2914 = vrot.lane.b32.xlu0 %v2853, 120
    %v2915 = vpop.permute.xlu0 %2914
    %2916 = vrot.lane.b32.xlu0 %v2854, 120
    %v2917 = vpop.permute.xlu0 %2916
    %2918 = vrot.lane.b32.xlu0 %v2855, 120
    %v2919 = vpop.permute.xlu0 %2918
    %2920 = vrot.lane.b32.xlu0 %v2856, 120
    %v2921 = vpop.permute.xlu0 %2920
    %2922 = vrot.lane.b32.xlu0 %v2857, 120
    %v2923 = vpop.permute.xlu0 %2922
    %2924 = vrot.lane.b32.xlu0 %v2858, 120
    %v2925 = vpop.permute.xlu0 %2924
    %2926 = vrot.lane.b32.xlu0 %v2859, 120
    %v2927 = vpop.permute.xlu0 %2926
    %2928 = vrot.lane.b32.xlu0 %v2860, 120
    %v2929 = vpop.permute.xlu0 %2928
    %2930 = vrot.lane.b32.xlu0 %v2861, 120
    %v2931 = vpop.permute.xlu0 %2930
    %2932 = vrot.lane.b32.xlu0 %v2862, 120
    %v2933 = vpop.permute.xlu0 %2932
    %2934 = vrot.lane.b32.xlu0 %v2863, 120
    %v2935 = vpop.permute.xlu0 %2934
    %2936 = vrot.lane.b32.xlu0 %v2864, 120
    %v2937 = vpop.permute.xlu0 %2936
    %2938 = vrot.lane.b32.xlu0 %v2865, 120
    %v2939 = vpop.permute.xlu0 %2938
    %2940 = vrot.lane.b32.xlu0 %v2866, 120
    %v2941 = vpop.permute.xlu0 %2940
    %2942 = vrot.lane.b32.xlu0 %v2867, 120
    %v2943 = vpop.permute.xlu0 %2942
    %2944 = vrot.lane.b32.xlu0 %v2868, 120
    %v2945 = vpop.permute.xlu0 %2944
    %2946 = vrot.lane.b32.xlu0 %v2869, 120
    %v2947 = vpop.permute.xlu0 %2946
    %2948 = vrot.lane.b32.xlu0 %v2870, 120
    %v2949 = vpop.permute.xlu0 %2948
    %2950 = vrot.lane.b32.xlu0 %v2871, 120
    %v2951 = vpop.permute.xlu0 %2950
    %2952 = vrot.lane.b32.xlu0 %v2872, 120
    %v2953 = vpop.permute.xlu0 %2952
    %2954 = vrot.lane.b32.xlu0 %v2873, 120
    %v2955 = vpop.permute.xlu0 %2954
    %2956 = vrot.lane.b32.xlu0 %v2874, 120
    %v2957 = vpop.permute.xlu0 %2956
    %2958 = vrot.lane.b32.xlu0 %v2875, 120
    %v2959 = vpop.permute.xlu0 %2958
    %vm2960 = vcmask 982016
    %v2961 = vsel %vm2960, %v2905, %v2907
    %v2962 = vsel %vm2960, %v2909, %v2911
    %v2963 = vsel %vm2960, %v2913, %v2915
    %v2964 = vsel %vm2960, %v2917, %v2919
    %v2965 = vsel %vm2960, %v2921, %v2923
    %v2966 = vsel %vm2960, %v2925, %v2927
    %v2967 = vsel %vm2960, %v2929, %v2931
    %v2968 = vsel %vm2960, %v2933, %v2935
    %v2969 = vsel %vm2960, %v2937, %v2939
    %v2970 = vsel %vm2960, %v2941, %v2943
    %v2971 = vsel %vm2960, %v2945, %v2947
    %v2972 = vsel %vm2960, %v2949, %v2951
    %v2973 = vsel %vm2960, %v2953, %v2955
    %v2974 = vsel %vm2960, %v2957, %v2959
    %v3003 = vmax.f32 %v2848, %v2961
    %v3004 = vmax.f32 %v2849, %v2907
    %v3005 = vmax.f32 %v2850, %v2962
    %v3006 = vmax.f32 %v2851, %v2911
    %v3007 = vmax.f32 %v2852, %v2963
    %v3008 = vmax.f32 %v2853, %v2915
    %v3009 = vmax.f32 %v2854, %v2964
    %v3010 = vmax.f32 %v2855, %v2919
    %v3011 = vmax.f32 %v2856, %v2965
    %v3012 = vmax.f32 %v2857, %v2923
    %v3013 = vmax.f32 %v2858, %v2966
    %v3014 = vmax.f32 %v2859, %v2927
    %v3015 = vmax.f32 %v2860, %v2967
    %v3016 = vmax.f32 %v2861, %v2931
    %v3017 = vmax.f32 %v2862, %v2968
    %v3018 = vmax.f32 %v2863, %v2935
    %v3019 = vmax.f32 %v2864, %v2969
    %v3020 = vmax.f32 %v2865, %v2939
    %v3021 = vmax.f32 %v2866, %v2970
    %v3022 = vmax.f32 %v2867, %v2943
    %v3023 = vmax.f32 %v2868, %v2971
    %v3024 = vmax.f32 %v2869, %v2947
    %v3025 = vmax.f32 %v2870, %v2972
    %v3026 = vmax.f32 %v2871, %v2951
    %v3027 = vmax.f32 %v2872, %v2973
    %v3028 = vmax.f32 %v2873, %v2955
    %v3029 = vmax.f32 %v2874, %v2974
    %v3030 = vmax.f32 %v2875, %v2959
    %3031 = vst [vmem:[#allocation3] sm:$0xff] 0.0
    %vm3032 = vcmask 719872
    %3033 = vst.msk [vmem:[#allocation3 + $0x8] sm:$0xff] %vm3032, 0.0
    %s3034 = scalar_lea.vmem [#allocation3], 240
    %3035 = vst [vmem:[%s3034] sm:$0xff] 0.0
    %3036 = vst.msk [vmem:[%s3034 + $0x8] sm:$0xff] %vm3032, 0.0
    %s3037 = scalar_lea.vmem [#allocation3], 16
    %3038 = vst [vmem:[%s3037] sm:$0xff] %v3003
    %3039 = vst.msk [vmem:[%s3037 + $0x8] sm:$0xff] %vm3032, %v3004
    %3040 = vst [vmem:[%s3037 + $0x10] sm:$0xff] %v3005
    %3041 = vst.msk [vmem:[%s3037 + $0x18] sm:$0xff] %vm3032, %v3006
    %3042 = vst [vmem:[%s3037 + $0x20] sm:$0xff] %v3007
    %3043 = vst.msk [vmem:[%s3037 + $0x28] sm:$0xff] %vm3032, %v3008
    %3044 = vst [vmem:[%s3037 + $0x30] sm:$0xff] %v3009
    %3045 = vst.msk [vmem:[%s3037 + $0x38] sm:$0xff] %vm3032, %v3010
    %3046 = vst [vmem:[%s3037 + $0x40] sm:$0xff] %v3011
    %3047 = vst.msk [vmem:[%s3037 + $0x48] sm:$0xff] %vm3032, %v3012
    %3048 = vst [vmem:[%s3037 + $0x50] sm:$0xff] %v3013
    %3049 = vst.msk [vmem:[%s3037 + $0x58] sm:$0xff] %vm3032, %v3014
    %3050 = vst [vmem:[%s3037 + $0x60] sm:$0xff] %v3015
    %3051 = vst.msk [vmem:[%s3037 + $0x68] sm:$0xff] %vm3032, %v3016
    %3052 = vst [vmem:[%s3037 + $0x70] sm:$0xff] %v3017
    %3053 = vst.msk [vmem:[%s3037 + $0x78] sm:$0xff] %vm3032, %v3018
    %3054 = vst [vmem:[%s3037 + $0x80] sm:$0xff] %v3019
    %3055 = vst.msk [vmem:[%s3037 + $0x88] sm:$0xff] %vm3032, %v3020
    %3056 = vst [vmem:[%s3037 + $0x90] sm:$0xff] %v3021
    %3057 = vst.msk [vmem:[%s3037 + $0x98] sm:$0xff] %vm3032, %v3022
    %3058 = vst [vmem:[%s3037 + $0xa0] sm:$0xff] %v3023
    %3059 = vst.msk [vmem:[%s3037 + $0xa8] sm:$0xff] %vm3032, %v3024
    %3060 = vst [vmem:[%s3037 + $0xb0] sm:$0xff] %v3025
    %3061 = vst.msk [vmem:[%s3037 + $0xb8] sm:$0xff] %vm3032, %v3026
    %3062 = vst [vmem:[%s3037 + $0xc0] sm:$0xff] %v3027
    %3063 = vst.msk [vmem:[%s3037 + $0xc8] sm:$0xff] %vm3032, %v3028
    %3064 = vst [vmem:[%s3037 + $0xd0] sm:$0xff] %v3029
    %3065 = vst.msk [vmem:[%s3037 + $0xd8] sm:$0xff] %vm3032, %v3030
    %v3066 = vld [vmem:[#allocation3] sm:$0xff]
    %v3067 = vld [vmem:[#allocation3 + $0x8] sm:$0xff]
    %v3068 = vld [vmem:[#allocation3 + $0x10] sm:$0xff]
    %v3069 = vld [vmem:[#allocation3 + $0x18] sm:$0xff]
    %v3070 = vld [vmem:[#allocation3 + $0x20] sm:$0xff]
    %v3071 = vld [vmem:[#allocation3 + $0x28] sm:$0xff]
    %v3072 = vld [vmem:[#allocation3 + $0x30] sm:$0xff]
    %v3073 = vld [vmem:[#allocation3 + $0x38] sm:$0xff]
    %v3074 = vld [vmem:[#allocation3 + $0x40] sm:$0xff]
    %v3075 = vld [vmem:[#allocation3 + $0x48] sm:$0xff]
    %v3076 = vld [vmem:[#allocation3 + $0x50] sm:$0xff]
    %v3077 = vld [vmem:[#allocation3 + $0x58] sm:$0xff]
    %v3078 = vld [vmem:[#allocation3 + $0x60] sm:$0xff]
    %v3079 = vld [vmem:[#allocation3 + $0x68] sm:$0xff]
    %v3080 = vld [vmem:[#allocation3 + $0x70] sm:$0xff]
    %v3081 = vld [vmem:[#allocation3 + $0x78] sm:$0xff]
    %v3082 = vld [vmem:[#allocation3 + $0x80] sm:$0xff]
    %v3083 = vld [vmem:[#allocation3 + $0x88] sm:$0xff]
    %v3084 = vld [vmem:[#allocation3 + $0x90] sm:$0xff]
    %v3085 = vld [vmem:[#allocation3 + $0x98] sm:$0xff]
    %v3086 = vld [vmem:[#allocation3 + $0xa0] sm:$0xff]
    %v3087 = vld [vmem:[#allocation3 + $0xa8] sm:$0xff]
    %v3088 = vld [vmem:[#allocation3 + $0xb0] sm:$0xff]
    %v3089 = vld [vmem:[#allocation3 + $0xb8] sm:$0xff]
    %v3090 = vld [vmem:[#allocation3 + $0xc0] sm:$0xff]
    %v3091 = vld [vmem:[#allocation3 + $0xc8] sm:$0xff]
    %v3092 = vld [vmem:[#allocation3 + $0xd0] sm:$0xff]
    %v3093 = vld [vmem:[#allocation3 + $0xd8] sm:$0xff]
    %v3094 = vld [vmem:[%s5] sm:$0xff]
    %v3095 = vld [vmem:[%s5 + $0x8] sm:$0xff]
    %v3096 = vld [vmem:[%s5 + $0x10] sm:$0xff]
    %v3097 = vld [vmem:[%s5 + $0x18] sm:$0xff]
    %v3098 = vld [vmem:[%s5 + $0x20] sm:$0xff]
    %v3099 = vld [vmem:[%s5 + $0x28] sm:$0xff]
    %v3100 = vld [vmem:[%s5 + $0x30] sm:$0xff]
    %v3101 = vld [vmem:[%s5 + $0x38] sm:$0xff]
    %v3102 = vld [vmem:[%s5 + $0x40] sm:$0xff]
    %v3103 = vld [vmem:[%s5 + $0x48] sm:$0xff]
    %v3104 = vld [vmem:[%s5 + $0x50] sm:$0xff]
    %v3105 = vld [vmem:[%s5 + $0x58] sm:$0xff]
    %v3106 = vld [vmem:[%s5 + $0x60] sm:$0xff]
    %v3107 = vld [vmem:[%s5 + $0x68] sm:$0xff]
    %v3108 = vld [vmem:[%s5 + $0x70] sm:$0xff]
    %v3109 = vld [vmem:[%s5 + $0x78] sm:$0xff]
    %v3110 = vld [vmem:[%s5 + $0x80] sm:$0xff]
    %v3111 = vld [vmem:[%s5 + $0x88] sm:$0xff]
    %v3112 = vld [vmem:[%s5 + $0x90] sm:$0xff]
    %v3113 = vld [vmem:[%s5 + $0x98] sm:$0xff]
    %v3114 = vld [vmem:[%s5 + $0xa0] sm:$0xff]
    %v3115 = vld [vmem:[%s5 + $0xa8] sm:$0xff]
    %v3116 = vld [vmem:[%s5 + $0xb0] sm:$0xff]
    %v3117 = vld [vmem:[%s5 + $0xb8] sm:$0xff]
    %v3118 = vld [vmem:[%s5 + $0xc0] sm:$0xff]
    %v3119 = vld [vmem:[%s5 + $0xc8] sm:$0xff]
    %v3120 = vld [vmem:[%s5 + $0xd0] sm:$0xff]
    %v3121 = vld [vmem:[%s3037] sm:$0xff]
    %v3122 = vld [vmem:[%s3037 + $0x8] sm:$0xff]
    %v3123 = vld [vmem:[%s3037 + $0x10] sm:$0xff]
    %v3124 = vld [vmem:[%s3037 + $0x18] sm:$0xff]
    %v3125 = vld [vmem:[%s3037 + $0x20] sm:$0xff]
    %v3126 = vld [vmem:[%s3037 + $0x28] sm:$0xff]
    %v3127 = vld [vmem:[%s3037 + $0x30] sm:$0xff]
    %v3128 = vld [vmem:[%s3037 + $0x38] sm:$0xff]
    %v3129 = vld [vmem:[%s3037 + $0x40] sm:$0xff]
    %v3130 = vld [vmem:[%s3037 + $0x48] sm:$0xff]
    %v3131 = vld [vmem:[%s3037 + $0x50] sm:$0xff]
    %v3132 = vld [vmem:[%s3037 + $0x58] sm:$0xff]
    %v3133 = vld [vmem:[%s3037 + $0x60] sm:$0xff]
    %v3134 = vld [vmem:[%s3037 + $0x68] sm:$0xff]
    %v3135 = vld [vmem:[%s3037 + $0x70] sm:$0xff]
    %v3136 = vld [vmem:[%s3037 + $0x78] sm:$0xff]
    %v3137 = vld [vmem:[%s3037 + $0x80] sm:$0xff]
    %v3138 = vld [vmem:[%s3037 + $0x88] sm:$0xff]
    %v3139 = vld [vmem:[%s3037 + $0x90] sm:$0xff]
    %v3140 = vld [vmem:[%s3037 + $0x98] sm:$0xff]
    %v3141 = vld [vmem:[%s3037 + $0xa0] sm:$0xff]
    %v3142 = vld [vmem:[%s3037 + $0xa8] sm:$0xff]
    %v3143 = vld [vmem:[%s3037 + $0xb0] sm:$0xff]
    %v3144 = vld [vmem:[%s3037 + $0xb8] sm:$0xff]
    %v3145 = vld [vmem:[%s3037 + $0xc0] sm:$0xff]
    %v3146 = vld [vmem:[%s3037 + $0xc8] sm:$0xff]
    %v3147 = vld [vmem:[%s3037 + $0xd0] sm:$0xff]
    %v3148 = vld [vmem:[%s3037 + $0xd8] sm:$0xff]
    %s3149 = scalar_lea.vmem %s5, 216
    %v3150 = vld [vmem:[%s3149] sm:$0xff]
    %v3151 = vld [vmem:[%s3149 + $0x8] sm:$0xff]
    %v3152 = vld [vmem:[%s3149 + $0x10] sm:$0xff]
    %v3153 = vld [vmem:[%s3149 + $0x18] sm:$0xff]
    %v3154 = vld [vmem:[%s3149 + $0x20] sm:$0xff]
    %v3155 = vld [vmem:[%s3149 + $0x28] sm:$0xff]
    %v3156 = vld [vmem:[%s3149 + $0x30] sm:$0xff]
    %v3157 = vld [vmem:[%s3149 + $0x38] sm:$0xff]
    %v3158 = vld [vmem:[%s3149 + $0x40] sm:$0xff]
    %v3159 = vld [vmem:[%s3149 + $0x48] sm:$0xff]
    %v3160 = vld [vmem:[%s3149 + $0x50] sm:$0xff]
    %v3161 = vld [vmem:[%s3149 + $0x58] sm:$0xff]
    %v3162 = vld [vmem:[%s3149 + $0x60] sm:$0xff]
    %v3163 = vld [vmem:[%s3149 + $0x68] sm:$0xff]
    %v3164 = vld [vmem:[%s3149 + $0x70] sm:$0xff]
    %v3165 = vld [vmem:[%s3149 + $0x78] sm:$0xff]
    %v3166 = vld [vmem:[%s3149 + $0x80] sm:$0xff]
    %v3167 = vld [vmem:[%s3149 + $0x88] sm:$0xff]
    %v3168 = vld [vmem:[%s3149 + $0x90] sm:$0xff]
    %v3169 = vld [vmem:[%s3149 + $0x98] sm:$0xff]
    %v3170 = vld [vmem:[%s3149 + $0xa0] sm:$0xff]
    %v3171 = vld [vmem:[%s3149 + $0xa8] sm:$0xff]
    %v3172 = vld [vmem:[%s3149 + $0xb0] sm:$0xff]
    %v3173 = vld [vmem:[%s3149 + $0xb8] sm:$0xff]
    %v3174 = vld [vmem:[%s3149 + $0xc0] sm:$0xff]
    %v3175 = vld [vmem:[%s3149 + $0xc8] sm:$0xff]
    %v3176 = vld [vmem:[%s3149 + $0xd0] sm:$0xff]
    %v3178 = vsel %vm3032, %v3122, 0
    %v3181 = vsel %vm3032, %v3124, 0
    %v3184 = vsel %vm3032, %v3126, 0
    %v3187 = vsel %vm3032, %v3128, 0
    %v3190 = vsel %vm3032, %v3130, 0
    %v3193 = vsel %vm3032, %v3132, 0
    %v3196 = vsel %vm3032, %v3134, 0
    %v3199 = vsel %vm3032, %v3136, 0
    %v3202 = vsel %vm3032, %v3138, 0
    %v3205 = vsel %vm3032, %v3140, 0
    %v3208 = vsel %vm3032, %v3142, 0
    %v3211 = vsel %vm3032, %v3144, 0
    %v3214 = vsel %vm3032, %v3146, 0
    %v3217 = vsel %vm3032, %v3148, 0
    %3219 = vmatprep.subr.mxu0 0.0
    %3220 = vmatpush1.msra.mxu0 %v3150
    %3221 = vmatprep.subr.mxu0 0.0
    %3222 = vmatpush1.msra.mxu0 %v3151
    %3223 = vmatprep.subr.mxu0 0.0
    %3224 = vmatpush1.msra.mxu0 %v3152
    %3225 = vmatprep.subr.mxu0 0.0
    %3226 = vmatpush1.msra.mxu0 %v3153
    %3227 = vmatprep.subr.mxu0 0.0
    %3228 = vmatpush1.msra.mxu0 %v3154
    %3229 = vmatprep.subr.mxu0 0.0
    %3230 = vmatpush1.msra.mxu0 %v3155
    %3231 = vmatprep.subr.mxu0 0.0
    %3232 = vmatpush1.msra.mxu0 %v3156
    %3233 = vmatprep.subr.mxu0 0.0
    %3234 = vmatpush1.msra.mxu0 %v3157
    %3235 = vmatprep.subr.mxu0 0.0
    %3236 = vmatpush1.msra.mxu0 %v3158
    %3237 = vmatprep.subr.mxu0 0.0
    %3238 = vmatpush1.msra.mxu0 %v3159
    %3239 = vmatprep.subr.mxu0 0.0
    %3240 = vmatpush1.msra.mxu0 %v3160
    %3241 = vmatprep.subr.mxu0 0.0
    %3242 = vmatpush1.msra.mxu0 %v3161
    %3243 = vmatprep.subr.mxu0 0.0
    %3244 = vmatpush1.msra.mxu0 %v3162
    %3245 = vmatprep.subr.mxu0 0.0
    %3246 = vmatpush1.msra.mxu0 %v3163
    %3247 = vmatprep.subr.mxu0 0.0
    %3248 = vmatpush1.msra.mxu0 %v3164
    %3249 = vmatprep.subr.mxu0 0.0
    %3250 = vmatpush1.msra.mxu0 %v3165
    %3251 = vmatprep.subr.mxu0 0.0
    %3252 = vmatpush1.msra.mxu0 %v3166
    %3253 = vmatprep.subr.mxu0 0.0
    %3254 = vmatpush1.msra.mxu0 %v3167
    %3255 = vmatprep.subr.mxu0 0.0
    %3256 = vmatpush1.msra.mxu0 %v3168
    %3257 = vmatprep.subr.mxu0 0.0
    %3258 = vmatpush1.msra.mxu0 %v3169
    %3259 = vmatprep.subr.mxu0 0.0
    %3260 = vmatpush1.msra.mxu0 %v3170
    %3261 = vmatprep.subr.mxu0 0.0
    %3262 = vmatpush1.msra.mxu0 %v3171
    %3263 = vmatprep.subr.mxu0 0.0
    %3264 = vmatpush1.msra.mxu0 %v3172
    %3265 = vmatprep.subr.mxu0 0.0
    %3266 = vmatpush1.msra.mxu0 %v3173
    %3267 = vmatprep.subr.mxu0 0.0
    %3268 = vmatpush1.msra.mxu0 %v3174
    %3269 = vmatprep.subr.mxu0 0.0
    %3270 = vmatpush1.msra.mxu0 %v3175
    %3271 = vmatprep.subr.mxu0 0.0
    %3272 = vmatpush1.msra.mxu0 %v3176
    %3273 = vmatprep.subr.mxu0 0.0
    %3274 = vmatpush1.msra.mxu0 0.0
    %3275 = vmatprep.subr.mxu0 0.0
    %3276 = vmatpush1.msra.mxu0 0.0
    %3277 = vmatprep.subr.mxu0 0.0
    %3278 = vmatpush1.msra.mxu0 0.0
    %3279 = vmatprep.subr.mxu0 0.0
    %3280 = vmatpush1.msra.mxu0 0.0
    %3281 = vmatprep.subr.mxu0 0.0
    %3282 = vmatpush1.msra.mxu0 0.0
    %3283 = vmatprep.mubr.f32.mxu0 %v3178
    %3284 = vmatmul.mubr.f32.gmra.mrb[0].mxu0 %v3121
    %v3285 = vpop.f32.mrb[0].mxu0
    %v3286 = vadd.f32 0.0, %v3285
    %v3287 = vpop.f32.mrb[0].mxu0
    %3288 = vmatprep.mubr.f32.mxu0 %v3181
    %3289 = vmatmul.mubr.f32.gmra.mrb[0].mxu0 %v3123
    %v3290 = vpop.f32.mrb[0].mxu0
    %v3291 = vadd.f32 0.0, %v3290
    %v3292 = vpop.f32.mrb[0].mxu0
    %3293 = vmatprep.mubr.f32.mxu0 %v3184
    %3294 = vmatmul.mubr.f32.gmra.mrb[0].mxu0 %v3125
    %v3295 = vpop.f32.mrb[0].mxu0
    %v3296 = vadd.f32 0.0, %v3295
    %v3297 = vpop.f32.mrb[0].mxu0
    %3298 = vmatprep.mubr.f32.mxu0 %v3187
    %3299 = vmatmul.mubr.f32.gmra.mrb[0].mxu0 %v3127
    %v3300 = vpop.f32.mrb[0].mxu0
    %v3301 = vadd.f32 0.0, %v3300
    %v3302 = vpop.f32.mrb[0].mxu0
    %3303 = vmatprep.mubr.f32.mxu0 %v3190
    %3304 = vmatmul.mubr.f32.gmra.mrb[0].mxu0 %v3129
    %v3305 = vpop.f32.mrb[0].mxu0
    %v3306 = vadd.f32 0.0, %v3305
    %v3307 = vpop.f32.mrb[0].mxu0
    %3308 = vmatprep.mubr.f32.mxu0 %v3193
    %3309 = vmatmul.mubr.f32.gmra.mrb[0].mxu0 %v3131
    %v3310 = vpop.f32.mrb[0].mxu0
    %v3311 = vadd.f32 0.0, %v3310
    %v3312 = vpop.f32.mrb[0].mxu0
    %3313 = vmatprep.mubr.f32.mxu0 %v3196
    %3314 = vmatmul.mubr.f32.gmra.mrb[0].mxu0 %v3133
    %v3315 = vpop.f32.mrb[0].mxu0
    %v3316 = vadd.f32 0.0, %v3315
    %v3317 = vpop.f32.mrb[0].mxu0
    %3318 = vmatprep.mubr.f32.mxu0 %v3199
    %3319 = vmatmul.mubr.f32.gmra.mrb[0].mxu0 %v3135
    %v3320 = vpop.f32.mrb[0].mxu0
    %v3321 = vadd.f32 0.0, %v3320
    %v3322 = vpop.f32.mrb[0].mxu0
    %3323 = vmatprep.mubr.f32.mxu0 %v3202
    %3324 = vmatmul.mubr.f32.gmra.mrb[0].mxu0 %v3137
    %v3325 = vpop.f32.mrb[0].mxu0
    %v3326 = vadd.f32 0.0, %v3325
    %v3327 = vpop.f32.mrb[0].mxu0
    %3328 = vmatprep.mubr.f32.mxu0 %v3205
    %3329 = vmatmul.mubr.f32.gmra.mrb[0].mxu0 %v3139
    %v3330 = vpop.f32.mrb[0].mxu0
    %v3331 = vadd.f32 0.0, %v3330
    %v3332 = vpop.f32.mrb[0].mxu0
    %3333 = vmatprep.mubr.f32.mxu0 %v3208
    %3334 = vmatmul.mubr.f32.gmra.mrb[0].mxu0 %v3141
    %v3335 = vpop.f32.mrb[0].mxu0
    %v3336 = vadd.f32 0.0, %v3335
    %v3337 = vpop.f32.mrb[0].mxu0
    %3338 = vmatprep.mubr.f32.mxu0 %v3211
    %3339 = vmatmul.mubr.f32.gmra.mrb[0].mxu0 %v3143
    %v3340 = vpop.f32.mrb[0].mxu0
    %v3341 = vadd.f32 0.0, %v3340
    %v3342 = vpop.f32.mrb[0].mxu0
    %3343 = vmatprep.mubr.f32.mxu0 %v3214
    %3344 = vmatmul.mubr.f32.gmra.mrb[0].mxu0 %v3145
    %v3345 = vpop.f32.mrb[0].mxu0
    %v3346 = vadd.f32 0.0, %v3345
    %v3347 = vpop.f32.mrb[0].mxu0
    %3348 = vmatprep.mubr.f32.mxu0 %v3217
    %3349 = vmatmul.mubr.f32.gmra.mrb[0].mxu0 %v3147
    %v3350 = vpop.f32.mrb[0].mxu0
    %v3351 = vadd.f32 0.0, %v3350
    %v3352 = vpop.f32.mrb[0].mxu0
    %3353 = vdwg.mxu0
    %v3355 = vsel %vm3032, %v3067, 0
    %v3358 = vsel %vm3032, %v3069, 0
    %v3361 = vsel %vm3032, %v3071, 0
    %v3364 = vsel %vm3032, %v3073, 0
    %v3367 = vsel %vm3032, %v3075, 0
    %v3370 = vsel %vm3032, %v3077, 0
    %v3373 = vsel %vm3032, %v3079, 0
    %v3376 = vsel %vm3032, %v3081, 0
    %v3379 = vsel %vm3032, %v3083, 0
    %v3382 = vsel %vm3032, %v3085, 0
    %v3385 = vsel %vm3032, %v3087, 0
    %v3388 = vsel %vm3032, %v3089, 0
    %v3391 = vsel %vm3032, %v3091, 0
    %v3394 = vsel %vm3032, %v3093, 0
    %3396 = vmatprep.subr.mxu0 0.0
    %3397 = vmatpush1.msra.mxu0 %v3094
    %3398 = vmatprep.subr.mxu0 0.0
    %3399 = vmatpush1.msra.mxu0 %v3095
    %3400 = vmatprep.subr.mxu0 0.0
    %3401 = vmatpush1.msra.mxu0 %v3096
    %3402 = vmatprep.subr.mxu0 0.0
    %3403 = vmatpush1.msra.mxu0 %v3097
    %3404 = vmatprep.subr.mxu0 0.0
    %3405 = vmatpush1.msra.mxu0 %v3098
    %3406 = vmatprep.subr.mxu0 0.0
    %3407 = vmatpush1.msra.mxu0 %v3099
    %3408 = vmatprep.subr.mxu0 0.0
    %3409 = vmatpush1.msra.mxu0 %v3100
    %3410 = vmatprep.subr.mxu0 0.0
    %3411 = vmatpush1.msra.mxu0 %v3101
    %3412 = vmatprep.subr.mxu0 0.0
    %3413 = vmatpush1.msra.mxu0 %v3102
    %3414 = vmatprep.subr.mxu0 0.0
    %3415 = vmatpush1.msra.mxu0 %v3103
    %3416 = vmatprep.subr.mxu0 0.0
    %3417 = vmatpush1.msra.mxu0 %v3104
    %3418 = vmatprep.subr.mxu0 0.0
    %3419 = vmatpush1.msra.mxu0 %v3105
    %3420 = vmatprep.subr.mxu0 0.0
    %3421 = vmatpush1.msra.mxu0 %v3106
    %3422 = vmatprep.subr.mxu0 0.0
    %3423 = vmatpush1.msra.mxu0 %v3107
    %3424 = vmatprep.subr.mxu0 0.0
    %3425 = vmatpush1.msra.mxu0 %v3108
    %3426 = vmatprep.subr.mxu0 0.0
    %3427 = vmatpush1.msra.mxu0 %v3109
    %3428 = vmatprep.subr.mxu0 0.0
    %3429 = vmatpush1.msra.mxu0 %v3110
    %3430 = vmatprep.subr.mxu0 0.0
    %3431 = vmatpush1.msra.mxu0 %v3111
    %3432 = vmatprep.subr.mxu0 0.0
    %3433 = vmatpush1.msra.mxu0 %v3112
    %3434 = vmatprep.subr.mxu0 0.0
    %3435 = vmatpush1.msra.mxu0 %v3113
    %3436 = vmatprep.subr.mxu0 0.0
    %3437 = vmatpush1.msra.mxu0 %v3114
    %3438 = vmatprep.subr.mxu0 0.0
    %3439 = vmatpush1.msra.mxu0 %v3115
    %3440 = vmatprep.subr.mxu0 0.0
    %3441 = vmatpush1.msra.mxu0 %v3116
    %3442 = vmatprep.subr.mxu0 0.0
    %3443 = vmatpush1.msra.mxu0 %v3117
    %3444 = vmatprep.subr.mxu0 0.0
    %3445 = vmatpush1.msra.mxu0 %v3118
    %3446 = vmatprep.subr.mxu0 0.0
    %3447 = vmatpush1.msra.mxu0 %v3119
    %3448 = vmatprep.subr.mxu0 0.0
    %3449 = vmatpush1.msra.mxu0 %v3120
    %3450 = vmatprep.subr.mxu0 0.0
    %3451 = vmatpush1.msra.mxu0 0.0
    %3452 = vmatprep.subr.mxu0 0.0
    %3453 = vmatpush1.msra.mxu0 0.0
    %3454 = vmatprep.subr.mxu0 0.0
    %3455 = vmatpush1.msra.mxu0 0.0
    %3456 = vmatprep.subr.mxu0 0.0
    %3457 = vmatpush1.msra.mxu0 0.0
    %3458 = vmatprep.subr.mxu0 0.0
    %3459 = vmatpush1.msra.mxu0 0.0
    %3460 = vmatprep.mubr.f32.mxu0 %v3355
    %3461 = vmatmul.mubr.f32.gmra.mrb[0].mxu0 %v3066
    %v3462 = vpop.f32.mrb[0].mxu0
    %v3463 = vadd.f32 %v3286, %v3462
    %v3464 = vpop.f32.mrb[0].mxu0
    %3465 = vmatprep.mubr.f32.mxu0 %v3358
    %3466 = vmatmul.mubr.f32.gmra.mrb[0].mxu0 %v3068
    %v3467 = vpop.f32.mrb[0].mxu0
    %v3468 = vadd.f32 %v3291, %v3467
    %v3469 = vpop.f32.mrb[0].mxu0
    %3470 = vmatprep.mubr.f32.mxu0 %v3361
    %3471 = vmatmul.mubr.f32.gmra.mrb[0].mxu0 %v3070
    %v3472 = vpop.f32.mrb[0].mxu0
    %v3473 = vadd.f32 %v3296, %v3472
    %v3474 = vpop.f32.mrb[0].mxu0
    %3475 = vmatprep.mubr.f32.mxu0 %v3364
    %3476 = vmatmul.mubr.f32.gmra.mrb[0].mxu0 %v3072
    %v3477 = vpop.f32.mrb[0].mxu0
    %v3478 = vadd.f32 %v3301, %v3477
    %v3479 = vpop.f32.mrb[0].mxu0
    %3480 = vmatprep.mubr.f32.mxu0 %v3367
    %3481 = vmatmul.mubr.f32.gmra.mrb[0].mxu0 %v3074
    %v3482 = vpop.f32.mrb[0].mxu0
    %v3483 = vadd.f32 %v3306, %v3482
    %v3484 = vpop.f32.mrb[0].mxu0
    %3485 = vmatprep.mubr.f32.mxu0 %v3370
    %3486 = vmatmul.mubr.f32.gmra.mrb[0].mxu0 %v3076
    %v3487 = vpop.f32.mrb[0].mxu0
    %v3488 = vadd.f32 %v3311, %v3487
    %v3489 = vpop.f32.mrb[0].mxu0
    %3490 = vmatprep.mubr.f32.mxu0 %v3373
    %3491 = vmatmul.mubr.f32.gmra.mrb[0].mxu0 %v3078
    %v3492 = vpop.f32.mrb[0].mxu0
    %v3493 = vadd.f32 %v3316, %v3492
    %v3494 = vpop.f32.mrb[0].mxu0
    %3495 = vmatprep.mubr.f32.mxu0 %v3376
    %3496 = vmatmul.mubr.f32.gmra.mrb[0].mxu0 %v3080
    %v3497 = vpop.f32.mrb[0].mxu0
    %v3498 = vadd.f32 %v3321, %v3497
    %v3499 = vpop.f32.mrb[0].mxu0
    %3500 = vmatprep.mubr.f32.mxu0 %v3379
    %3501 = vmatmul.mubr.f32.gmra.mrb[0].mxu0 %v3082
    %v3502 = vpop.f32.mrb[0].mxu0
    %v3503 = vadd.f32 %v3326, %v3502
    %v3504 = vpop.f32.mrb[0].mxu0
    %3505 = vmatprep.mubr.f32.mxu0 %v3382
    %3506 = vmatmul.mubr.f32.gmra.mrb[0].mxu0 %v3084
    %v3507 = vpop.f32.mrb[0].mxu0
    %v3508 = vadd.f32 %v3331, %v3507
    %v3509 = vpop.f32.mrb[0].mxu0
    %3510 = vmatprep.mubr.f32.mxu0 %v3385
    %3511 = vmatmul.mubr.f32.gmra.mrb[0].mxu0 %v3086
    %v3512 = vpop.f32.mrb[0].mxu0
    %v3513 = vadd.f32 %v3336, %v3512
    %v3514 = vpop.f32.mrb[0].mxu0
    %3515 = vmatprep.mubr.f32.mxu0 %v3388
    %3516 = vmatmul.mubr.f32.gmra.mrb[0].mxu0 %v3088
    %v3517 = vpop.f32.mrb[0].mxu0
    %v3518 = vadd.f32 %v3341, %v3517
    %v3519 = vpop.f32.mrb[0].mxu0
    %3520 = vmatprep.mubr.f32.mxu0 %v3391
    %3521 = vmatmul.mubr.f32.gmra.mrb[0].mxu0 %v3090
    %v3522 = vpop.f32.mrb[0].mxu0
    %v3523 = vadd.f32 %v3346, %v3522
    %v3524 = vpop.f32.mrb[0].mxu0
    %3525 = vmatprep.mubr.f32.mxu0 %v3394
    %3526 = vmatmul.mubr.f32.gmra.mrb[0].mxu0 %v3092
    %v3527 = vpop.f32.mrb[0].mxu0
    %v3528 = vadd.f32 %v3351, %v3527
    %v3529 = vpop.f32.mrb[0].mxu0
    %3530 = vdwg.mxu0
    %s3531 = scalar_lea.vmem [#allocation3], 32
    %v3532 = vld [vmem:[%s3531] sm:$0xff]
    %v3533 = vld [vmem:[%s3531 + $0x8] sm:$0xff]
    %v3534 = vld [vmem:[%s3531 + $0x10] sm:$0xff]
    %v3535 = vld [vmem:[%s3531 + $0x18] sm:$0xff]
    %v3536 = vld [vmem:[%s3531 + $0x20] sm:$0xff]
    %v3537 = vld [vmem:[%s3531 + $0x28] sm:$0xff]
    %v3538 = vld [vmem:[%s3531 + $0x30] sm:$0xff]
    %v3539 = vld [vmem:[%s3531 + $0x38] sm:$0xff]
    %v3540 = vld [vmem:[%s3531 + $0x40] sm:$0xff]
    %v3541 = vld [vmem:[%s3531 + $0x48] sm:$0xff]
    %v3542 = vld [vmem:[%s3531 + $0x50] sm:$0xff]
    %v3543 = vld [vmem:[%s3531 + $0x58] sm:$0xff]
    %v3544 = vld [vmem:[%s3531 + $0x60] sm:$0xff]
    %v3545 = vld [vmem:[%s3531 + $0x68] sm:$0xff]
    %v3546 = vld [vmem:[%s3531 + $0x70] sm:$0xff]
    %v3547 = vld [vmem:[%s3531 + $0x78] sm:$0xff]
    %v3548 = vld [vmem:[%s3531 + $0x80] sm:$0xff]
    %v3549 = vld [vmem:[%s3531 + $0x88] sm:$0xff]
    %v3550 = vld [vmem:[%s3531 + $0x90] sm:$0xff]
    %v3551 = vld [vmem:[%s3531 + $0x98] sm:$0xff]
    %v3552 = vld [vmem:[%s3531 + $0xa0] sm:$0xff]
    %v3553 = vld [vmem:[%s3531 + $0xa8] sm:$0xff]
    %v3554 = vld [vmem:[%s3531 + $0xb0] sm:$0xff]
    %v3555 = vld [vmem:[%s3531 + $0xb8] sm:$0xff]
    %v3556 = vld [vmem:[%s3531 + $0xc0] sm:$0xff]
    %v3557 = vld [vmem:[%s3531 + $0xc8] sm:$0xff]
    %v3558 = vld [vmem:[%s3531 + $0xd0] sm:$0xff]
    %v3559 = vld [vmem:[%s3531 + $0xd8] sm:$0xff]
    %s3560 = scalar_lea.vmem %s5, 432
    %v3561 = vld [vmem:[%s3560] sm:$0xff]
    %v3562 = vld [vmem:[%s3560 + $0x8] sm:$0xff]
    %v3563 = vld [vmem:[%s3560 + $0x10] sm:$0xff]
    %v3564 = vld [vmem:[%s3560 + $0x18] sm:$0xff]
    %v3565 = vld [vmem:[%s3560 + $0x20] sm:$0xff]
    %v3566 = vld [vmem:[%s3560 + $0x28] sm:$0xff]
    %v3567 = vld [vmem:[%s3560 + $0x30] sm:$0xff]
    %v3568 = vld [vmem:[%s3560 + $0x38] sm:$0xff]
    %v3569 = vld [vmem:[%s3560 + $0x40] sm:$0xff]
    %v3570 = vld [vmem:[%s3560 + $0x48] sm:$0xff]
    %v3571 = vld [vmem:[%s3560 + $0x50] sm:$0xff]
    %v3572 = vld [vmem:[%s3560 + $0x58] sm:$0xff]
    %v3573 = vld [vmem:[%s3560 + $0x60] sm:$0xff]
    %v3574 = vld [vmem:[%s3560 + $0x68] sm:$0xff]
    %v3575 = vld [vmem:[%s3560 + $0x70] sm:$0xff]
    %v3576 = vld [vmem:[%s3560 + $0x78] sm:$0xff]
    %v3577 = vld [vmem:[%s3560 + $0x80] sm:$0xff]
    %v3578 = vld [vmem:[%s3560 + $0x88] sm:$0xff]
    %v3579 = vld [vmem:[%s3560 + $0x90] sm:$0xff]
    %v3580 = vld [vmem:[%s3560 + $0x98] sm:$0xff]
    %v3581 = vld [vmem:[%s3560 + $0xa0] sm:$0xff]
    %v3582 = vld [vmem:[%s3560 + $0xa8] sm:$0xff]
    %v3583 = vld [vmem:[%s3560 + $0xb0] sm:$0xff]
    %v3584 = vld [vmem:[%s3560 + $0xb8] sm:$0xff]
    %v3585 = vld [vmem:[%s3560 + $0xc0] sm:$0xff]
    %v3586 = vld [vmem:[%s3560 + $0xc8] sm:$0xff]
    %v3587 = vld [vmem:[%s3560 + $0xd0] sm:$0xff]
    %v3589 = vsel %vm3032, %v3533, 0
    %v3592 = vsel %vm3032, %v3535, 0
    %v3595 = vsel %vm3032, %v3537, 0
    %v3598 = vsel %vm3032, %v3539, 0
    %v3601 = vsel %vm3032, %v3541, 0
    %v3604 = vsel %vm3032, %v3543, 0
    %v3607 = vsel %vm3032, %v3545, 0
    %v3610 = vsel %vm3032, %v3547, 0
    %v3613 = vsel %vm3032, %v3549, 0
    %v3616 = vsel %vm3032, %v3551, 0
    %v3619 = vsel %vm3032, %v3553, 0
    %v3622 = vsel %vm3032, %v3555, 0
    %v3625 = vsel %vm3032, %v3557, 0
    %v3628 = vsel %vm3032, %v3559, 0
    %3630 = vmatprep.subr.mxu0 0.0
    %3631 = vmatpush1.msra.mxu0 %v3561
    %3632 = vmatprep.subr.mxu0 0.0
    %3633 = vmatpush1.msra.mxu0 %v3562
    %3634 = vmatprep.subr.mxu0 0.0
    %3635 = vmatpush1.msra.mxu0 %v3563
    %3636 = vmatprep.subr.mxu0 0.0
    %3637 = vmatpush1.msra.mxu0 %v3564
    %3638 = vmatprep.subr.mxu0 0.0
    %3639 = vmatpush1.msra.mxu0 %v3565
    %3640 = vmatprep.subr.mxu0 0.0
    %3641 = vmatpush1.msra.mxu0 %v3566
    %3642 = vmatprep.subr.mxu0 0.0
    %3643 = vmatpush1.msra.mxu0 %v3567
    %3644 = vmatprep.subr.mxu0 0.0
    %3645 = vmatpush1.msra.mxu0 %v3568
    %3646 = vmatprep.subr.mxu0 0.0
    %3647 = vmatpush1.msra.mxu0 %v3569
    %3648 = vmatprep.subr.mxu0 0.0
    %3649 = vmatpush1.msra.mxu0 %v3570
    %3650 = vmatprep.subr.mxu0 0.0
    %3651 = vmatpush1.msra.mxu0 %v3571
    %3652 = vmatprep.subr.mxu0 0.0
    %3653 = vmatpush1.msra.mxu0 %v3572
    %3654 = vmatprep.subr.mxu0 0.0
    %3655 = vmatpush1.msra.mxu0 %v3573
    %3656 = vmatprep.subr.mxu0 0.0
    %3657 = vmatpush1.msra.mxu0 %v3574
    %3658 = vmatprep.subr.mxu0 0.0
    %3659 = vmatpush1.msra.mxu0 %v3575
    %3660 = vmatprep.subr.mxu0 0.0
    %3661 = vmatpush1.msra.mxu0 %v3576
    %3662 = vmatprep.subr.mxu0 0.0
    %3663 = vmatpush1.msra.mxu0 %v3577
    %3664 = vmatprep.subr.mxu0 0.0
    %3665 = vmatpush1.msra.mxu0 %v3578
    %3666 = vmatprep.subr.mxu0 0.0
    %3667 = vmatpush1.msra.mxu0 %v3579
    %3668 = vmatprep.subr.mxu0 0.0
    %3669 = vmatpush1.msra.mxu0 %v3580
    %3670 = vmatprep.subr.mxu0 0.0
    %3671 = vmatpush1.msra.mxu0 %v3581
    %3672 = vmatprep.subr.mxu0 0.0
    %3673 = vmatpush1.msra.mxu0 %v3582
    %3674 = vmatprep.subr.mxu0 0.0
    %3675 = vmatpush1.msra.mxu0 %v3583
    %3676 = vmatprep.subr.mxu0 0.0
    %3677 = vmatpush1.msra.mxu0 %v3584
    %3678 = vmatprep.subr.mxu0 0.0
    %3679 = vmatpush1.msra.mxu0 %v3585
    %3680 = vmatprep.subr.mxu0 0.0
    %3681 = vmatpush1.msra.mxu0 %v3586
    %3682 = vmatprep.subr.mxu0 0.0
    %3683 = vmatpush1.msra.mxu0 %v3587
    %3684 = vmatprep.subr.mxu0 0.0
    %3685 = vmatpush1.msra.mxu0 0.0
    %3686 = vmatprep.subr.mxu0 0.0
    %3687 = vmatpush1.msra.mxu0 0.0
    %3688 = vmatprep.subr.mxu0 0.0
    %3689 = vmatpush1.msra.mxu0 0.0
    %3690 = vmatprep.subr.mxu0 0.0
    %3691 = vmatpush1.msra.mxu0 0.0
    %3692 = vmatprep.subr.mxu0 0.0
    %3693 = vmatpush1.msra.mxu0 0.0
    %3694 = vmatprep.mubr.f32.mxu0 %v3589
    %3695 = vmatmul.mubr.f32.gmra.mrb[0].mxu0 %v3532
    %v3696 = vpop.f32.mrb[0].mxu0
    %v3697 = vadd.f32 0.0, %v3696
    %v3698 = vpop.f32.mrb[0].mxu0
    %3699 = vmatprep.mubr.f32.mxu0 %v3592
    %3700 = vmatmul.mubr.f32.gmra.mrb[0].mxu0 %v3534
    %v3701 = vpop.f32.mrb[0].mxu0
    %v3702 = vadd.f32 0.0, %v3701
    %v3703 = vpop.f32.mrb[0].mxu0
    %3704 = vmatprep.mubr.f32.mxu0 %v3595
    %3705 = vmatmul.mubr.f32.gmra.mrb[0].mxu0 %v3536
    %v3706 = vpop.f32.mrb[0].mxu0
    %v3707 = vadd.f32 0.0, %v3706
    %v3708 = vpop.f32.mrb[0].mxu0
    %3709 = vmatprep.mubr.f32.mxu0 %v3598
    %3710 = vmatmul.mubr.f32.gmra.mrb[0].mxu0 %v3538
    %v3711 = vpop.f32.mrb[0].mxu0
    %v3712 = vadd.f32 0.0, %v3711
    %v3713 = vpop.f32.mrb[0].mxu0
    %3714 = vmatprep.mubr.f32.mxu0 %v3601
    %3715 = vmatmul.mubr.f32.gmra.mrb[0].mxu0 %v3540
    %v3716 = vpop.f32.mrb[0].mxu0
    %v3717 = vadd.f32 0.0, %v3716
    %v3718 = vpop.f32.mrb[0].mxu0
    %3719 = vmatprep.mubr.f32.mxu0 %v3604
    %3720 = vmatmul.mubr.f32.gmra.mrb[0].mxu0 %v3542
    %v3721 = vpop.f32.mrb[0].mxu0
    %v3722 = vadd.f32 0.0, %v3721
    %v3723 = vpop.f32.mrb[0].mxu0
    %3724 = vmatprep.mubr.f32.mxu0 %v3607
    %3725 = vmatmul.mubr.f32.gmra.mrb[0].mxu0 %v3544
    %v3726 = vpop.f32.mrb[0].mxu0
    %v3727 = vadd.f32 0.0, %v3726
    %v3728 = vpop.f32.mrb[0].mxu0
    %3729 = vmatprep.mubr.f32.mxu0 %v3610
    %3730 = vmatmul.mubr.f32.gmra.mrb[0].mxu0 %v3546
    %v3731 = vpop.f32.mrb[0].mxu0
    %v3732 = vadd.f32 0.0, %v3731
    %v3733 = vpop.f32.mrb[0].mxu0
    %3734 = vmatprep.mubr.f32.mxu0 %v3613
    %3735 = vmatmul.mubr.f32.gmra.mrb[0].mxu0 %v3548
    %v3736 = vpop.f32.mrb[0].mxu0
    %v3737 = vadd.f32 0.0, %v3736
    %v3738 = vpop.f32.mrb[0].mxu0
    %3739 = vmatprep.mubr.f32.mxu0 %v3616
    %3740 = vmatmul.mubr.f32.gmra.mrb[0].mxu0 %v3550
    %v3741 = vpop.f32.mrb[0].mxu0
    %v3742 = vadd.f32 0.0, %v3741
    %v3743 = vpop.f32.mrb[0].mxu0
    %3744 = vmatprep.mubr.f32.mxu0 %v3619
    %3745 = vmatmul.mubr.f32.gmra.mrb[0].mxu0 %v3552
    %v3746 = vpop.f32.mrb[0].mxu0
    %v3747 = vadd.f32 0.0, %v3746
    %v3748 = vpop.f32.mrb[0].mxu0
    %3749 = vmatprep.mubr.f32.mxu0 %v3622
    %3750 = vmatmul.mubr.f32.gmra.mrb[0].mxu0 %v3554
    %v3751 = vpop.f32.mrb[0].mxu0
    %v3752 = vadd.f32 0.0, %v3751
    %v3753 = vpop.f32.mrb[0].mxu0
    %3754 = vmatprep.mubr.f32.mxu0 %v3625
    %3755 = vmatmul.mubr.f32.gmra.mrb[0].mxu0 %v3556
    %v3756 = vpop.f32.mrb[0].mxu0
    %v3757 = vadd.f32 0.0, %v3756
    %v3758 = vpop.f32.mrb[0].mxu0
    %3759 = vmatprep.mubr.f32.mxu0 %v3628
    %3760 = vmatmul.mubr.f32.gmra.mrb[0].mxu0 %v3558
    %v3761 = vpop.f32.mrb[0].mxu0
    %v3762 = vadd.f32 0.0, %v3761
    %v3763 = vpop.f32.mrb[0].mxu0
    %3764 = vdwg.mxu0
    %v3765 = vadd.f32 %v3463, %v3697
    %v3766 = vadd.f32 %v3468, %v3702
    %v3767 = vadd.f32 %v3473, %v3707
    %v3768 = vadd.f32 %v3478, %v3712
    %v3769 = vadd.f32 %v3483, %v3717
    %v3770 = vadd.f32 %v3488, %v3722
    %v3771 = vadd.f32 %v3493, %v3727
    %v3772 = vadd.f32 %v3498, %v3732
    %v3773 = vadd.f32 %v3503, %v3737
    %v3774 = vadd.f32 %v3508, %v3742
    %v3775 = vadd.f32 %v3513, %v3747
    %v3776 = vadd.f32 %v3518, %v3752
    %v3777 = vadd.f32 %v3523, %v3757
    %v3778 = vadd.f32 %v3528, %v3762
    %v3779 = vld [vmem:[%s6] sm:$0x1]
    %v3781 = vlaneseq
    %v3782 = vshrl.u32 %v3781, 7
    %v3783 = vsub.s32 0, %v3782
    %v3784 = vrot.slane %v3779, %v3783
    %v3786 = vadd.f32 %v3765, %v3784
    %v3787 = vadd.f32 %v3766, %v3784
    %v3788 = vadd.f32 %v3767, %v3784
    %v3789 = vadd.f32 %v3768, %v3784
    %v3790 = vadd.f32 %v3769, %v3784
    %v3791 = vadd.f32 %v3770, %v3784
    %v3792 = vadd.f32 %v3771, %v3784
    %v3793 = vadd.f32 %v3772, %v3784
    %v3794 = vadd.f32 %v3773, %v3784
    %v3795 = vadd.f32 %v3774, %v3784
    %v3796 = vadd.f32 %v3775, %v3784
    %v3797 = vadd.f32 %v3776, %v3784
    %v3798 = vadd.f32 %v3777, %v3784
    %v3799 = vadd.f32 %v3778, %v3784
    %v3800 = vmax.f32 %v3786, 0.0
    %v3801 = vmax.f32 %v3787, 0.0
    %v3802 = vmax.f32 %v3788, 0.0
    %v3803 = vmax.f32 %v3789, 0.0
    %v3804 = vmax.f32 %v3790, 0.0
    %v3805 = vmax.f32 %v3791, 0.0
    %v3806 = vmax.f32 %v3792, 0.0
    %v3807 = vmax.f32 %v3793, 0.0
    %v3808 = vmax.f32 %v3794, 0.0
    %v3809 = vmax.f32 %v3795, 0.0
    %v3810 = vmax.f32 %v3796, 0.0
    %v3811 = vmax.f32 %v3797, 0.0
    %v3812 = vmax.f32 %v3798, 0.0
    %v3813 = vmax.f32 %v3799, 0.0
    %vm3814 = vcmask 916480
    %3815 = vst.msk [vmem:[#allocation4] sm:$0xff] %vm3814, 0.0
    %s3816 = scalar_lea.vmem [#allocation4], 120
    %3817 = vst.msk [vmem:[%s3816] sm:$0xff] %vm3814, 0.0
    %s3818 = scalar_lea.vmem [#allocation4], 8
    %3819 = vst.msk [vmem:[%s3818] sm:$0xff] %vm3814, %v3800
    %3820 = vst.msk [vmem:[%s3818 + $0x8] sm:$0xff] %vm3814, %v3801
    %3821 = vst.msk [vmem:[%s3818 + $0x10] sm:$0xff] %vm3814, %v3802
    %3822 = vst.msk [vmem:[%s3818 + $0x18] sm:$0xff] %vm3814, %v3803
    %3823 = vst.msk [vmem:[%s3818 + $0x20] sm:$0xff] %vm3814, %v3804
    %3824 = vst.msk [vmem:[%s3818 + $0x28] sm:$0xff] %vm3814, %v3805
    %3825 = vst.msk [vmem:[%s3818 + $0x30] sm:$0xff] %vm3814, %v3806
    %3826 = vst.msk [vmem:[%s3818 + $0x38] sm:$0xff] %vm3814, %v3807
    %3827 = vst.msk [vmem:[%s3818 + $0x40] sm:$0xff] %vm3814, %v3808
    %3828 = vst.msk [vmem:[%s3818 + $0x48] sm:$0xff] %vm3814, %v3809
    %3829 = vst.msk [vmem:[%s3818 + $0x50] sm:$0xff] %vm3814, %v3810
    %3830 = vst.msk [vmem:[%s3818 + $0x58] sm:$0xff] %vm3814, %v3811
    %3831 = vst.msk [vmem:[%s3818 + $0x60] sm:$0xff] %vm3814, %v3812
    %3832 = vst.msk [vmem:[%s3818 + $0x68] sm:$0xff] %vm3814, %v3813
    %v3833 = vld [vmem:[#allocation4] sm:$0xff]
    %v3834 = vld [vmem:[#allocation4 + $0x8] sm:$0xff]
    %v3835 = vld [vmem:[#allocation4 + $0x10] sm:$0xff]
    %v3836 = vld [vmem:[#allocation4 + $0x18] sm:$0xff]
    %v3837 = vld [vmem:[#allocation4 + $0x20] sm:$0xff]
    %v3838 = vld [vmem:[#allocation4 + $0x28] sm:$0xff]
    %v3839 = vld [vmem:[#allocation4 + $0x30] sm:$0xff]
    %v3840 = vld [vmem:[#allocation4 + $0x38] sm:$0xff]
    %v3841 = vld [vmem:[#allocation4 + $0x40] sm:$0xff]
    %v3842 = vld [vmem:[#allocation4 + $0x48] sm:$0xff]
    %v3843 = vld [vmem:[#allocation4 + $0x50] sm:$0xff]
    %v3844 = vld [vmem:[#allocation4 + $0x58] sm:$0xff]
    %v3845 = vld [vmem:[#allocation4 + $0x60] sm:$0xff]
    %v3846 = vld [vmem:[#allocation4 + $0x68] sm:$0xff]
    %v3847 = vld [vmem:[%s7] sm:$0xff]
    %v3848 = vld [vmem:[%s7 + $0x8] sm:$0xff]
    %v3849 = vld [vmem:[%s7 + $0x10] sm:$0xff]
    %v3850 = vld [vmem:[%s7 + $0x18] sm:$0xff]
    %v3851 = vld [vmem:[%s7 + $0x20] sm:$0xff]
    %v3852 = vld [vmem:[%s7 + $0x28] sm:$0xff]
    %v3853 = vld [vmem:[%s7 + $0x30] sm:$0xff]
    %v3854 = vld [vmem:[%s7 + $0x38] sm:$0xff]
    %v3855 = vld [vmem:[%s7 + $0x40] sm:$0xff]
    %v3856 = vld [vmem:[%s7 + $0x48] sm:$0xff]
    %v3857 = vld [vmem:[%s7 + $0x50] sm:$0xff]
    %v3858 = vld [vmem:[%s7 + $0x58] sm:$0xff]
    %v3859 = vld [vmem:[%s7 + $0x60] sm:$0xff]
    %v3860 = vld [vmem:[%s7 + $0x68] sm:$0xff]
    %v3861 = vld [vmem:[%s3818] sm:$0xff]
    %v3862 = vld [vmem:[%s3818 + $0x8] sm:$0xff]
    %v3863 = vld [vmem:[%s3818 + $0x10] sm:$0xff]
    %v3864 = vld [vmem:[%s3818 + $0x18] sm:$0xff]
    %v3865 = vld [vmem:[%s3818 + $0x20] sm:$0xff]
    %v3866 = vld [vmem:[%s3818 + $0x28] sm:$0xff]
    %v3867 = vld [vmem:[%s3818 + $0x30] sm:$0xff]
    %v3868 = vld [vmem:[%s3818 + $0x38] sm:$0xff]
    %v3869 = vld [vmem:[%s3818 + $0x40] sm:$0xff]
    %v3870 = vld [vmem:[%s3818 + $0x48] sm:$0xff]
    %v3871 = vld [vmem:[%s3818 + $0x50] sm:$0xff]
    %v3872 = vld [vmem:[%s3818 + $0x58] sm:$0xff]
    %v3873 = vld [vmem:[%s3818 + $0x60] sm:$0xff]
    %v3874 = vld [vmem:[%s3818 + $0x68] sm:$0xff]
    %s3875 = scalar_lea.vmem %s7, 112
    %v3876 = vld [vmem:[%s3875] sm:$0xff]
    %v3877 = vld [vmem:[%s3875 + $0x8] sm:$0xff]
    %v3878 = vld [vmem:[%s3875 + $0x10] sm:$0xff]
    %v3879 = vld [vmem:[%s3875 + $0x18] sm:$0xff]
    %v3880 = vld [vmem:[%s3875 + $0x20] sm:$0xff]
    %v3881 = vld [vmem:[%s3875 + $0x28] sm:$0xff]
    %v3882 = vld [vmem:[%s3875 + $0x30] sm:$0xff]
    %v3883 = vld [vmem:[%s3875 + $0x38] sm:$0xff]
    %v3884 = vld [vmem:[%s3875 + $0x40] sm:$0xff]
    %v3885 = vld [vmem:[%s3875 + $0x48] sm:$0xff]
    %v3886 = vld [vmem:[%s3875 + $0x50] sm:$0xff]
    %v3887 = vld [vmem:[%s3875 + $0x58] sm:$0xff]
    %v3888 = vld [vmem:[%s3875 + $0x60] sm:$0xff]
    %v3889 = vld [vmem:[%s3875 + $0x68] sm:$0xff]
    %v3891 = vsel %vm3814, %v3861, 0
    %v3894 = vsel %vm3814, %v3862, 0
    %v3897 = vsel %vm3814, %v3863, 0
    %v3900 = vsel %vm3814, %v3864, 0
    %v3903 = vsel %vm3814, %v3865, 0
    %v3906 = vsel %vm3814, %v3866, 0
    %v3909 = vsel %vm3814, %v3867, 0
    %v3912 = vsel %vm3814, %v3868, 0
    %v3915 = vsel %vm3814, %v3869, 0
    %v3918 = vsel %vm3814, %v3870, 0
    %v3921 = vsel %vm3814, %v3871, 0
    %v3924 = vsel %vm3814, %v3872, 0
    %v3927 = vsel %vm3814, %v3873, 0
    %v3930 = vsel %vm3814, %v3874, 0
    %3932 = vmatprep.subr.mxu0 0.0
    %3933 = vmatpush1.msra.mxu0 %v3876
    %3934 = vmatprep.subr.mxu0 0.0
    %3935 = vmatpush1.msra.mxu0 %v3877
    %3936 = vmatprep.subr.mxu0 0.0
    %3937 = vmatpush1.msra.mxu0 %v3878
    %3938 = vmatprep.subr.mxu0 0.0
    %3939 = vmatpush1.msra.mxu0 %v3879
    %3940 = vmatprep.subr.mxu0 0.0
    %3941 = vmatpush1.msra.mxu0 %v3880
    %3942 = vmatprep.subr.mxu0 0.0
    %3943 = vmatpush1.msra.mxu0 %v3881
    %3944 = vmatprep.subr.mxu0 0.0
    %3945 = vmatpush1.msra.mxu0 %v3882
    %3946 = vmatprep.subr.mxu0 0.0
    %3947 = vmatpush1.msra.mxu0 %v3883
    %3948 = vmatprep.subr.mxu0 0.0
    %3949 = vmatpush1.msra.mxu0 %v3884
    %3950 = vmatprep.subr.mxu0 0.0
    %3951 = vmatpush1.msra.mxu0 %v3885
    %3952 = vmatprep.subr.mxu0 0.0
    %3953 = vmatpush1.msra.mxu0 %v3886
    %3954 = vmatprep.subr.mxu0 0.0
    %3955 = vmatpush1.msra.mxu0 %v3887
    %3956 = vmatprep.subr.mxu0 0.0
    %3957 = vmatpush1.msra.mxu0 %v3888
    %3958 = vmatprep.subr.mxu0 0.0
    %3959 = vmatpush1.msra.mxu0 %v3889
    %3960 = vmatprep.subr.mxu0 0.0
    %3961 = vmatpush1.msra.mxu0 0.0
    %3962 = vmatprep.subr.mxu0 0.0
    %3963 = vmatpush1.msra.mxu0 0.0
    %3964 = vmatprep.subr.mxu0 0.0
    %3965 = vmatpush1.msra.mxu0 0.0
    %3966 = vmatprep.subr.mxu0 0.0
    %3967 = vmatpush1.msra.mxu0 0.0
    %3968 = vmatprep.subr.mxu0 0.0
    %3969 = vmatpush1.msra.mxu0 0.0
    %3970 = vmatprep.subr.mxu0 0.0
    %3971 = vmatpush1.msra.mxu0 0.0
    %3972 = vmatprep.subr.mxu0 0.0
    %3973 = vmatpush1.msra.mxu0 0.0
    %3974 = vmatprep.subr.mxu0 0.0
    %3975 = vmatpush1.msra.mxu0 0.0
    %3976 = vmatprep.subr.mxu0 0.0
    %3977 = vmatpush1.msra.mxu0 0.0
    %3978 = vmatprep.subr.mxu0 0.0
    %3979 = vmatpush1.msra.mxu0 0.0
    %3980 = vmatprep.subr.mxu0 0.0
    %3981 = vmatpush1.msra.mxu0 0.0
    %3982 = vmatprep.subr.mxu0 0.0
    %3983 = vmatpush1.msra.mxu0 0.0
    %3984 = vmatprep.subr.mxu0 0.0
    %3985 = vmatpush1.msra.mxu0 0.0
    %3986 = vmatprep.subr.mxu0 0.0
    %3987 = vmatpush1.msra.mxu0 0.0
    %3988 = vmatprep.subr.mxu0 0.0
    %3989 = vmatpush1.msra.mxu0 0.0
    %3990 = vmatprep.subr.mxu0 0.0
    %3991 = vmatpush1.msra.mxu0 0.0
    %3992 = vmatprep.subr.mxu0 0.0
    %3993 = vmatpush1.msra.mxu0 0.0
    %3994 = vmatprep.subr.mxu0 0.0
    %3995 = vmatpush1.msra.mxu0 0.0
    %3996 = vmatprep.mubr.f32.mxu0 0.0
    %3997 = vmatmul.mubr.f32.gmra.mrb[0].mxu0 %v3891
    %v3998 = vpop.f32.mrb[0].mxu0
    %v3999 = vadd.f32 0.0, %v3998
    %v4000 = vpop.f32.mrb[0].mxu0
    %4001 = vmatprep.mubr.f32.mxu0 0.0
    %4002 = vmatmul.mubr.f32.gmra.mrb[0].mxu0 %v3894
    %v4003 = vpop.f32.mrb[0].mxu0
    %v4004 = vadd.f32 0.0, %v4003
    %v4005 = vpop.f32.mrb[0].mxu0
    %4006 = vmatprep.mubr.f32.mxu0 0.0
    %4007 = vmatmul.mubr.f32.gmra.mrb[0].mxu0 %v3897
    %v4008 = vpop.f32.mrb[0].mxu0
    %v4009 = vadd.f32 0.0, %v4008
    %v4010 = vpop.f32.mrb[0].mxu0
    %4011 = vmatprep.mubr.f32.mxu0 0.0
    %4012 = vmatmul.mubr.f32.gmra.mrb[0].mxu0 %v3900
    %v4013 = vpop.f32.mrb[0].mxu0
    %v4014 = vadd.f32 0.0, %v4013
    %v4015 = vpop.f32.mrb[0].mxu0
    %4016 = vmatprep.mubr.f32.mxu0 0.0
    %4017 = vmatmul.mubr.f32.gmra.mrb[0].mxu0 %v3903
    %v4018 = vpop.f32.mrb[0].mxu0
    %v4019 = vadd.f32 0.0, %v4018
    %v4020 = vpop.f32.mrb[0].mxu0
    %4021 = vmatprep.mubr.f32.mxu0 0.0
    %4022 = vmatmul.mubr.f32.gmra.mrb[0].mxu0 %v3906
    %v4023 = vpop.f32.mrb[0].mxu0
    %v4024 = vadd.f32 0.0, %v4023
    %v4025 = vpop.f32.mrb[0].mxu0
    %4026 = vmatprep.mubr.f32.mxu0 0.0
    %4027 = vmatmul.mubr.f32.gmra.mrb[0].mxu0 %v3909
    %v4028 = vpop.f32.mrb[0].mxu0
    %v4029 = vadd.f32 0.0, %v4028
    %v4030 = vpop.f32.mrb[0].mxu0
    %4031 = vmatprep.mubr.f32.mxu0 0.0
    %4032 = vmatmul.mubr.f32.gmra.mrb[0].mxu0 %v3912
    %v4033 = vpop.f32.mrb[0].mxu0
    %v4034 = vadd.f32 0.0, %v4033
    %v4035 = vpop.f32.mrb[0].mxu0
    %4036 = vmatprep.mubr.f32.mxu0 0.0
    %4037 = vmatmul.mubr.f32.gmra.mrb[0].mxu0 %v3915
    %v4038 = vpop.f32.mrb[0].mxu0
    %v4039 = vadd.f32 0.0, %v4038
    %v4040 = vpop.f32.mrb[0].mxu0
    %4041 = vmatprep.mubr.f32.mxu0 0.0
    %4042 = vmatmul.mubr.f32.gmra.mrb[0].mxu0 %v3918
    %v4043 = vpop.f32.mrb[0].mxu0
    %v4044 = vadd.f32 0.0, %v4043
    %v4045 = vpop.f32.mrb[0].mxu0
    %4046 = vmatprep.mubr.f32.mxu0 0.0
    %4047 = vmatmul.mubr.f32.gmra.mrb[0].mxu0 %v3921
    %v4048 = vpop.f32.mrb[0].mxu0
    %v4049 = vadd.f32 0.0, %v4048
    %v4050 = vpop.f32.mrb[0].mxu0
    %4051 = vmatprep.mubr.f32.mxu0 0.0
    %4052 = vmatmul.mubr.f32.gmra.mrb[0].mxu0 %v3924
    %v4053 = vpop.f32.mrb[0].mxu0
    %v4054 = vadd.f32 0.0, %v4053
    %v4055 = vpop.f32.mrb[0].mxu0
    %4056 = vmatprep.mubr.f32.mxu0 0.0
    %4057 = vmatmul.mubr.f32.gmra.mrb[0].mxu0 %v3927
    %v4058 = vpop.f32.mrb[0].mxu0
    %v4059 = vadd.f32 0.0, %v4058
    %v4060 = vpop.f32.mrb[0].mxu0
    %4061 = vmatprep.mubr.f32.mxu0 0.0
    %4062 = vmatmul.mubr.f32.gmra.mrb[0].mxu0 %v3930
    %v4063 = vpop.f32.mrb[0].mxu0
    %v4064 = vadd.f32 0.0, %v4063
    %v4065 = vpop.f32.mrb[0].mxu0
    %4066 = vdwg.mxu0
    %v4068 = vsel %vm3814, %v3833, 0
    %v4071 = vsel %vm3814, %v3834, 0
    %v4074 = vsel %vm3814, %v3835, 0
    %v4077 = vsel %vm3814, %v3836, 0
    %v4080 = vsel %vm3814, %v3837, 0
    %v4083 = vsel %vm3814, %v3838, 0
    %v4086 = vsel %vm3814, %v3839, 0
    %v4089 = vsel %vm3814, %v3840, 0
    %v4092 = vsel %vm3814, %v3841, 0
    %v4095 = vsel %vm3814, %v3842, 0
    %v4098 = vsel %vm3814, %v3843, 0
    %v4101 = vsel %vm3814, %v3844, 0
    %v4104 = vsel %vm3814, %v3845, 0
    %v4107 = vsel %vm3814, %v3846, 0
    %4109 = vmatprep.subr.mxu0 0.0
    %4110 = vmatpush1.msra.mxu0 %v3847
    %4111 = vmatprep.subr.mxu0 0.0
    %4112 = vmatpush1.msra.mxu0 %v3848
    %4113 = vmatprep.subr.mxu0 0.0
    %4114 = vmatpush1.msra.mxu0 %v3849
    %4115 = vmatprep.subr.mxu0 0.0
    %4116 = vmatpush1.msra.mxu0 %v3850
    %4117 = vmatprep.subr.mxu0 0.0
    %4118 = vmatpush1.msra.mxu0 %v3851
    %4119 = vmatprep.subr.mxu0 0.0
    %4120 = vmatpush1.msra.mxu0 %v3852
    %4121 = vmatprep.subr.mxu0 0.0
    %4122 = vmatpush1.msra.mxu0 %v3853
    %4123 = vmatprep.subr.mxu0 0.0
    %4124 = vmatpush1.msra.mxu0 %v3854
    %4125 = vmatprep.subr.mxu0 0.0
    %4126 = vmatpush1.msra.mxu0 %v3855
    %4127 = vmatprep.subr.mxu0 0.0
    %4128 = vmatpush1.msra.mxu0 %v3856
    %4129 = vmatprep.subr.mxu0 0.0
    %4130 = vmatpush1.msra.mxu0 %v3857
    %4131 = vmatprep.subr.mxu0 0.0
    %4132 = vmatpush1.msra.mxu0 %v3858
    %4133 = vmatprep.subr.mxu0 0.0
    %4134 = vmatpush1.msra.mxu0 %v3859
    %4135 = vmatprep.subr.mxu0 0.0
    %4136 = vmatpush1.msra.mxu0 %v3860
    %4137 = vmatprep.subr.mxu0 0.0
    %4138 = vmatpush1.msra.mxu0 0.0
    %4139 = vmatprep.subr.mxu0 0.0
    %4140 = vmatpush1.msra.mxu0 0.0
    %4141 = vmatprep.subr.mxu0 0.0
    %4142 = vmatpush1.msra.mxu0 0.0
    %4143 = vmatprep.subr.mxu0 0.0
    %4144 = vmatpush1.msra.mxu0 0.0
    %4145 = vmatprep.subr.mxu0 0.0
    %4146 = vmatpush1.msra.mxu0 0.0
    %4147 = vmatprep.subr.mxu0 0.0
    %4148 = vmatpush1.msra.mxu0 0.0
    %4149 = vmatprep.subr.mxu0 0.0
    %4150 = vmatpush1.msra.mxu0 0.0
    %4151 = vmatprep.subr.mxu0 0.0
    %4152 = vmatpush1.msra.mxu0 0.0
    %4153 = vmatprep.subr.mxu0 0.0
    %4154 = vmatpush1.msra.mxu0 0.0
    %4155 = vmatprep.subr.mxu0 0.0
    %4156 = vmatpush1.msra.mxu0 0.0
    %4157 = vmatprep.subr.mxu0 0.0
    %4158 = vmatpush1.msra.mxu0 0.0
    %4159 = vmatprep.subr.mxu0 0.0
    %4160 = vmatpush1.msra.mxu0 0.0
    %4161 = vmatprep.subr.mxu0 0.0
    %4162 = vmatpush1.msra.mxu0 0.0
    %4163 = vmatprep.subr.mxu0 0.0
    %4164 = vmatpush1.msra.mxu0 0.0
    %4165 = vmatprep.subr.mxu0 0.0
    %4166 = vmatpush1.msra.mxu0 0.0
    %4167 = vmatprep.subr.mxu0 0.0
    %4168 = vmatpush1.msra.mxu0 0.0
    %4169 = vmatprep.subr.mxu0 0.0
    %4170 = vmatpush1.msra.mxu0 0.0
    %4171 = vmatprep.subr.mxu0 0.0
    %4172 = vmatpush1.msra.mxu0 0.0
    %4173 = vmatprep.mubr.f32.mxu0 0.0
    %4174 = vmatmul.mubr.f32.gmra.mrb[0].mxu0 %v4068
    %v4175 = vpop.f32.mrb[0].mxu0
    %v4176 = vadd.f32 %v3999, %v4175
    %v4177 = vpop.f32.mrb[0].mxu0
    %4178 = vmatprep.mubr.f32.mxu0 0.0
    %4179 = vmatmul.mubr.f32.gmra.mrb[0].mxu0 %v4071
    %v4180 = vpop.f32.mrb[0].mxu0
    %v4181 = vadd.f32 %v4004, %v4180
    %v4182 = vpop.f32.mrb[0].mxu0
    %4183 = vmatprep.mubr.f32.mxu0 0.0
    %4184 = vmatmul.mubr.f32.gmra.mrb[0].mxu0 %v4074
    %v4185 = vpop.f32.mrb[0].mxu0
    %v4186 = vadd.f32 %v4009, %v4185
    %v4187 = vpop.f32.mrb[0].mxu0
    %4188 = vmatprep.mubr.f32.mxu0 0.0
    %4189 = vmatmul.mubr.f32.gmra.mrb[0].mxu0 %v4077
    %v4190 = vpop.f32.mrb[0].mxu0
    %v4191 = vadd.f32 %v4014, %v4190
    %v4192 = vpop.f32.mrb[0].mxu0
    %4193 = vmatprep.mubr.f32.mxu0 0.0
    %4194 = vmatmul.mubr.f32.gmra.mrb[0].mxu0 %v4080
    %v4195 = vpop.f32.mrb[0].mxu0
    %v4196 = vadd.f32 %v4019, %v4195
    %v4197 = vpop.f32.mrb[0].mxu0
    %4198 = vmatprep.mubr.f32.mxu0 0.0
    %4199 = vmatmul.mubr.f32.gmra.mrb[0].mxu0 %v4083
    %v4200 = vpop.f32.mrb[0].mxu0
    %v4201 = vadd.f32 %v4024, %v4200
    %v4202 = vpop.f32.mrb[0].mxu0
    %4203 = vmatprep.mubr.f32.mxu0 0.0
    %4204 = vmatmul.mubr.f32.gmra.mrb[0].mxu0 %v4086
    %v4205 = vpop.f32.mrb[0].mxu0
    %v4206 = vadd.f32 %v4029, %v4205
    %v4207 = vpop.f32.mrb[0].mxu0
    %4208 = vmatprep.mubr.f32.mxu0 0.0
    %4209 = vmatmul.mubr.f32.gmra.mrb[0].mxu0 %v4089
    %v4210 = vpop.f32.mrb[0].mxu0
    %v4211 = vadd.f32 %v4034, %v4210
    %v4212 = vpop.f32.mrb[0].mxu0
    %4213 = vmatprep.mubr.f32.mxu0 0.0
    %4214 = vmatmul.mubr.f32.gmra.mrb[0].mxu0 %v4092
    %v4215 = vpop.f32.mrb[0].mxu0
    %v4216 = vadd.f32 %v4039, %v4215
    %v4217 = vpop.f32.mrb[0].mxu0
    %4218 = vmatprep.mubr.f32.mxu0 0.0
    %4219 = vmatmul.mubr.f32.gmra.mrb[0].mxu0 %v4095
    %v4220 = vpop.f32.mrb[0].mxu0
    %v4221 = vadd.f32 %v4044, %v4220
    %v4222 = vpop.f32.mrb[0].mxu0
    %4223 = vmatprep.mubr.f32.mxu0 0.0
    %4224 = vmatmul.mubr.f32.gmra.mrb[0].mxu0 %v4098
    %v4225 = vpop.f32.mrb[0].mxu0
    %v4226 = vadd.f32 %v4049, %v4225
    %v4227 = vpop.f32.mrb[0].mxu0
    %4228 = vmatprep.mubr.f32.mxu0 0.0
    %4229 = vmatmul.mubr.f32.gmra.mrb[0].mxu0 %v4101
    %v4230 = vpop.f32.mrb[0].mxu0
    %v4231 = vadd.f32 %v4054, %v4230
    %v4232 = vpop.f32.mrb[0].mxu0
    %4233 = vmatprep.mubr.f32.mxu0 0.0
    %4234 = vmatmul.mubr.f32.gmra.mrb[0].mxu0 %v4104
    %v4235 = vpop.f32.mrb[0].mxu0
    %v4236 = vadd.f32 %v4059, %v4235
    %v4237 = vpop.f32.mrb[0].mxu0
    %4238 = vmatprep.mubr.f32.mxu0 0.0
    %4239 = vmatmul.mubr.f32.gmra.mrb[0].mxu0 %v4107
    %v4240 = vpop.f32.mrb[0].mxu0
    %v4241 = vadd.f32 %v4064, %v4240
    %v4242 = vpop.f32.mrb[0].mxu0
    %4243 = vdwg.mxu0
    %s4244 = scalar_lea.vmem [#allocation4], 16
    %v4245 = vld [vmem:[%s4244] sm:$0xff]
    %v4246 = vld [vmem:[%s4244 + $0x8] sm:$0xff]
    %v4247 = vld [vmem:[%s4244 + $0x10] sm:$0xff]
    %v4248 = vld [vmem:[%s4244 + $0x18] sm:$0xff]
    %v4249 = vld [vmem:[%s4244 + $0x20] sm:$0xff]
    %v4250 = vld [vmem:[%s4244 + $0x28] sm:$0xff]
    %v4251 = vld [vmem:[%s4244 + $0x30] sm:$0xff]
    %v4252 = vld [vmem:[%s4244 + $0x38] sm:$0xff]
    %v4253 = vld [vmem:[%s4244 + $0x40] sm:$0xff]
    %v4254 = vld [vmem:[%s4244 + $0x48] sm:$0xff]
    %v4255 = vld [vmem:[%s4244 + $0x50] sm:$0xff]
    %v4256 = vld [vmem:[%s4244 + $0x58] sm:$0xff]
    %v4257 = vld [vmem:[%s4244 + $0x60] sm:$0xff]
    %v4258 = vld [vmem:[%s4244 + $0x68] sm:$0xff]
    %s4259 = scalar_lea.vmem %s7, 224
    %v4260 = vld [vmem:[%s4259] sm:$0xff]
    %v4261 = vld [vmem:[%s4259 + $0x8] sm:$0xff]
    %v4262 = vld [vmem:[%s4259 + $0x10] sm:$0xff]
    %v4263 = vld [vmem:[%s4259 + $0x18] sm:$0xff]
    %v4264 = vld [vmem:[%s4259 + $0x20] sm:$0xff]
    %v4265 = vld [vmem:[%s4259 + $0x28] sm:$0xff]
    %v4266 = vld [vmem:[%s4259 + $0x30] sm:$0xff]
    %v4267 = vld [vmem:[%s4259 + $0x38] sm:$0xff]
    %v4268 = vld [vmem:[%s4259 + $0x40] sm:$0xff]
    %v4269 = vld [vmem:[%s4259 + $0x48] sm:$0xff]
    %v4270 = vld [vmem:[%s4259 + $0x50] sm:$0xff]
    %v4271 = vld [vmem:[%s4259 + $0x58] sm:$0xff]
    %v4272 = vld [vmem:[%s4259 + $0x60] sm:$0xff]
    %v4273 = vld [vmem:[%s4259 + $0x68] sm:$0xff]
    %v4275 = vsel %vm3814, %v4245, 0
    %v4278 = vsel %vm3814, %v4246, 0
    %v4281 = vsel %vm3814, %v4247, 0
    %v4284 = vsel %vm3814, %v4248, 0
    %v4287 = vsel %vm3814, %v4249, 0
    %v4290 = vsel %vm3814, %v4250, 0
    %v4293 = vsel %vm3814, %v4251, 0
    %v4296 = vsel %vm3814, %v4252, 0
    %v4299 = vsel %vm3814, %v4253, 0
    %v4302 = vsel %vm3814, %v4254, 0
    %v4305 = vsel %vm3814, %v4255, 0
    %v4308 = vsel %vm3814, %v4256, 0
    %v4311 = vsel %vm3814, %v4257, 0
    %v4314 = vsel %vm3814, %v4258, 0
    %4316 = vmatprep.subr.mxu0 0.0
    %4317 = vmatpush1.msra.mxu0 %v4260
    %4318 = vmatprep.subr.mxu0 0.0
    %4319 = vmatpush1.msra.mxu0 %v4261
    %4320 = vmatprep.subr.mxu0 0.0
    %4321 = vmatpush1.msra.mxu0 %v4262
    %4322 = vmatprep.subr.mxu0 0.0
    %4323 = vmatpush1.msra.mxu0 %v4263
    %4324 = vmatprep.subr.mxu0 0.0
    %4325 = vmatpush1.msra.mxu0 %v4264
    %4326 = vmatprep.subr.mxu0 0.0
    %4327 = vmatpush1.msra.mxu0 %v4265
    %4328 = vmatprep.subr.mxu0 0.0
    %4329 = vmatpush1.msra.mxu0 %v4266
    %4330 = vmatprep.subr.mxu0 0.0
    %4331 = vmatpush1.msra.mxu0 %v4267
    %4332 = vmatprep.subr.mxu0 0.0
    %4333 = vmatpush1.msra.mxu0 %v4268
    %4334 = vmatprep.subr.mxu0 0.0
    %4335 = vmatpush1.msra.mxu0 %v4269
    %4336 = vmatprep.subr.mxu0 0.0
    %4337 = vmatpush1.msra.mxu0 %v4270
    %4338 = vmatprep.subr.mxu0 0.0
    %4339 = vmatpush1.msra.mxu0 %v4271
    %4340 = vmatprep.subr.mxu0 0.0
    %4341 = vmatpush1.msra.mxu0 %v4272
    %4342 = vmatprep.subr.mxu0 0.0
    %4343 = vmatpush1.msra.mxu0 %v4273
    %4344 = vmatprep.subr.mxu0 0.0
    %4345 = vmatpush1.msra.mxu0 0.0
    %4346 = vmatprep.subr.mxu0 0.0
    %4347 = vmatpush1.msra.mxu0 0.0
    %4348 = vmatprep.subr.mxu0 0.0
    %4349 = vmatpush1.msra.mxu0 0.0
    %4350 = vmatprep.subr.mxu0 0.0
    %4351 = vmatpush1.msra.mxu0 0.0
    %4352 = vmatprep.subr.mxu0 0.0
    %4353 = vmatpush1.msra.mxu0 0.0
    %4354 = vmatprep.subr.mxu0 0.0
    %4355 = vmatpush1.msra.mxu0 0.0
    %4356 = vmatprep.subr.mxu0 0.0
    %4357 = vmatpush1.msra.mxu0 0.0
    %4358 = vmatprep.subr.mxu0 0.0
    %4359 = vmatpush1.msra.mxu0 0.0
    %4360 = vmatprep.subr.mxu0 0.0
    %4361 = vmatpush1.msra.mxu0 0.0
    %4362 = vmatprep.subr.mxu0 0.0
    %4363 = vmatpush1.msra.mxu0 0.0
    %4364 = vmatprep.subr.mxu0 0.0
    %4365 = vmatpush1.msra.mxu0 0.0
    %4366 = vmatprep.subr.mxu0 0.0
    %4367 = vmatpush1.msra.mxu0 0.0
    %4368 = vmatprep.subr.mxu0 0.0
    %4369 = vmatpush1.msra.mxu0 0.0
    %4370 = vmatprep.subr.mxu0 0.0
    %4371 = vmatpush1.msra.mxu0 0.0
    %4372 = vmatprep.subr.mxu0 0.0
    %4373 = vmatpush1.msra.mxu0 0.0
    %4374 = vmatprep.subr.mxu0 0.0
    %4375 = vmatpush1.msra.mxu0 0.0
    %4376 = vmatprep.subr.mxu0 0.0
    %4377 = vmatpush1.msra.mxu0 0.0
    %4378 = vmatprep.subr.mxu0 0.0
    %4379 = vmatpush1.msra.mxu0 0.0
    %4380 = vmatprep.mubr.f32.mxu0 0.0
    %4381 = vmatmul.mubr.f32.gmra.mrb[0].mxu0 %v4275
    %v4382 = vpop.f32.mrb[0].mxu0
    %v4383 = vadd.f32 0.0, %v4382
    %v4384 = vpop.f32.mrb[0].mxu0
    %4385 = vmatprep.mubr.f32.mxu0 0.0
    %4386 = vmatmul.mubr.f32.gmra.mrb[0].mxu0 %v4278
    %v4387 = vpop.f32.mrb[0].mxu0
    %v4388 = vadd.f32 0.0, %v4387
    %v4389 = vpop.f32.mrb[0].mxu0
    %4390 = vmatprep.mubr.f32.mxu0 0.0
    %4391 = vmatmul.mubr.f32.gmra.mrb[0].mxu0 %v4281
    %v4392 = vpop.f32.mrb[0].mxu0
    %v4393 = vadd.f32 0.0, %v4392
    %v4394 = vpop.f32.mrb[0].mxu0
    %4395 = vmatprep.mubr.f32.mxu0 0.0
    %4396 = vmatmul.mubr.f32.gmra.mrb[0].mxu0 %v4284
    %v4397 = vpop.f32.mrb[0].mxu0
    %v4398 = vadd.f32 0.0, %v4397
    %v4399 = vpop.f32.mrb[0].mxu0
    %4400 = vmatprep.mubr.f32.mxu0 0.0
    %4401 = vmatmul.mubr.f32.gmra.mrb[0].mxu0 %v4287
    %v4402 = vpop.f32.mrb[0].mxu0
    %v4403 = vadd.f32 0.0, %v4402
    %v4404 = vpop.f32.mrb[0].mxu0
    %4405 = vmatprep.mubr.f32.mxu0 0.0
    %4406 = vmatmul.mubr.f32.gmra.mrb[0].mxu0 %v4290
    %v4407 = vpop.f32.mrb[0].mxu0
    %v4408 = vadd.f32 0.0, %v4407
    %v4409 = vpop.f32.mrb[0].mxu0
    %4410 = vmatprep.mubr.f32.mxu0 0.0
    %4411 = vmatmul.mubr.f32.gmra.mrb[0].mxu0 %v4293
    %v4412 = vpop.f32.mrb[0].mxu0
    %v4413 = vadd.f32 0.0, %v4412
    %v4414 = vpop.f32.mrb[0].mxu0
    %4415 = vmatprep.mubr.f32.mxu0 0.0
    %4416 = vmatmul.mubr.f32.gmra.mrb[0].mxu0 %v4296
    %v4417 = vpop.f32.mrb[0].mxu0
    %v4418 = vadd.f32 0.0, %v4417
    %v4419 = vpop.f32.mrb[0].mxu0
    %4420 = vmatprep.mubr.f32.mxu0 0.0
    %4421 = vmatmul.mubr.f32.gmra.mrb[0].mxu0 %v4299
    %v4422 = vpop.f32.mrb[0].mxu0
    %v4423 = vadd.f32 0.0, %v4422
    %v4424 = vpop.f32.mrb[0].mxu0
    %4425 = vmatprep.mubr.f32.mxu0 0.0
    %4426 = vmatmul.mubr.f32.gmra.mrb[0].mxu0 %v4302
    %v4427 = vpop.f32.mrb[0].mxu0
    %v4428 = vadd.f32 0.0, %v4427
    %v4429 = vpop.f32.mrb[0].mxu0
    %4430 = vmatprep.mubr.f32.mxu0 0.0
    %4431 = vmatmul.mubr.f32.gmra.mrb[0].mxu0 %v4305
    %v4432 = vpop.f32.mrb[0].mxu0
    %v4433 = vadd.f32 0.0, %v4432
    %v4434 = vpop.f32.mrb[0].mxu0
    %4435 = vmatprep.mubr.f32.mxu0 0.0
    %4436 = vmatmul.mubr.f32.gmra.mrb[0].mxu0 %v4308
    %v4437 = vpop.f32.mrb[0].mxu0
    %v4438 = vadd.f32 0.0, %v4437
    %v4439 = vpop.f32.mrb[0].mxu0
    %4440 = vmatprep.mubr.f32.mxu0 0.0
    %4441 = vmatmul.mubr.f32.gmra.mrb[0].mxu0 %v4311
    %v4442 = vpop.f32.mrb[0].mxu0
    %v4443 = vadd.f32 0.0, %v4442
    %v4444 = vpop.f32.mrb[0].mxu0
    %4445 = vmatprep.mubr.f32.mxu0 0.0
    %4446 = vmatmul.mubr.f32.gmra.mrb[0].mxu0 %v4314
    %v4447 = vpop.f32.mrb[0].mxu0
    %v4448 = vadd.f32 0.0, %v4447
    %v4449 = vpop.f32.mrb[0].mxu0
    %4450 = vdwg.mxu0
    %v4451 = vadd.f32 %v4176, %v4383
    %v4452 = vadd.f32 %v4181, %v4388
    %v4453 = vadd.f32 %v4186, %v4393
    %v4454 = vadd.f32 %v4191, %v4398
    %v4455 = vadd.f32 %v4196, %v4403
    %v4456 = vadd.f32 %v4201, %v4408
    %v4457 = vadd.f32 %v4206, %v4413
    %v4458 = vadd.f32 %v4211, %v4418
    %v4459 = vadd.f32 %v4216, %v4423
    %v4460 = vadd.f32 %v4221, %v4428
    %v4461 = vadd.f32 %v4226, %v4433
    %v4462 = vadd.f32 %v4231, %v4438
    %v4463 = vadd.f32 %v4236, %v4443
    %v4464 = vadd.f32 %v4241, %v4448
    %v4465 = vld [vmem:[%s8] sm:$0x1]
    %v4467 = vlaneseq
    %v4468 = vshrl.u32 %v4467, 7
    %v4469 = vsub.s32 0, %v4468
    %v4470 = vrot.slane %v4465, %v4469
    %v4472 = vadd.f32 %v4451, %v4470
    %v4473 = vadd.f32 %v4452, %v4470
    %v4474 = vadd.f32 %v4453, %v4470
    %v4475 = vadd.f32 %v4454, %v4470
    %v4476 = vadd.f32 %v4455, %v4470
    %v4477 = vadd.f32 %v4456, %v4470
    %v4478 = vadd.f32 %v4457, %v4470
    %v4479 = vadd.f32 %v4458, %v4470
    %v4480 = vadd.f32 %v4459, %v4470
    %v4481 = vadd.f32 %v4460, %v4470
    %v4482 = vadd.f32 %v4461, %v4470
    %v4483 = vadd.f32 %v4462, %v4470
    %v4484 = vadd.f32 %v4463, %v4470
    %v4485 = vadd.f32 %v4464, %v4470
    %v4486 = vmax.f32 %v4472, 0.0
    %v4487 = vmax.f32 %v4473, 0.0
    %v4488 = vmax.f32 %v4474, 0.0
    %v4489 = vmax.f32 %v4475, 0.0
    %v4490 = vmax.f32 %v4476, 0.0
    %v4491 = vmax.f32 %v4477, 0.0
    %v4492 = vmax.f32 %v4478, 0.0
    %v4493 = vmax.f32 %v4479, 0.0
    %v4494 = vmax.f32 %v4480, 0.0
    %v4495 = vmax.f32 %v4481, 0.0
    %v4496 = vmax.f32 %v4482, 0.0
    %v4497 = vmax.f32 %v4483, 0.0
    %v4498 = vmax.f32 %v4484, 0.0
    %v4499 = vmax.f32 %v4485, 0.0
    %v4500 = vmax.f32 %v4486, %v4487
    %v4501 = vmax.f32 %v4488, %v4489
    %v4502 = vmax.f32 %v4490, %v4491
    %v4503 = vmax.f32 %v4492, %v4493
    %v4504 = vmax.f32 %v4494, %v4495
    %v4505 = vmax.f32 %v4496, %v4497
    %v4506 = vmax.f32 %v4498, %v4499
    %4514 = vrot.lane.b32.xlu0 %v4500, 120
    %v4515 = vpop.permute.xlu0 %4514
    %4516 = vrot.lane.b32.xlu0 %v4501, 120
    %v4517 = vpop.permute.xlu0 %4516
    %4518 = vrot.lane.b32.xlu0 %v4502, 120
    %v4519 = vpop.permute.xlu0 %4518
    %4520 = vrot.lane.b32.xlu0 %v4503, 120
    %v4521 = vpop.permute.xlu0 %4520
    %4522 = vrot.lane.b32.xlu0 %v4504, 120
    %v4523 = vpop.permute.xlu0 %4522
    %4524 = vrot.lane.b32.xlu0 %v4505, 120
    %v4525 = vpop.permute.xlu0 %4524
    %4526 = vrot.lane.b32.xlu0 %v4506, 120
    %v4527 = vpop.permute.xlu0 %4526
    %v4535 = vmax.f32 %v4500, %v4515
    %v4536 = vmax.f32 %v4501, %v4517
    %v4537 = vmax.f32 %v4502, %v4519
    %v4538 = vmax.f32 %v4503, %v4521
    %v4539 = vmax.f32 %v4504, %v4523
    %v4540 = vmax.f32 %v4505, %v4525
    %v4541 = vmax.f32 %v4506, %v4527
    %v4542 = vld [vmem:[%s9] sm:$0xff]
    %v4543 = vld [vmem:[%s9 + $0x8] sm:$0xff]
    %v4544 = vld [vmem:[%s9 + $0x10] sm:$0xff]
    %v4545 = vld [vmem:[%s9 + $0x18] sm:$0xff]
    %v4546 = vld [vmem:[%s9 + $0x20] sm:$0xff]
    %v4547 = vld [vmem:[%s9 + $0x28] sm:$0xff]
    %v4548 = vld [vmem:[%s9 + $0x30] sm:$0xff]
    %v4549 = vld [vmem:[%s9 + $0x38] sm:$0xff]
    %v4550 = vld [vmem:[%s9 + $0x40] sm:$0xff]
    %v4551 = vld [vmem:[%s9 + $0x48] sm:$0xff]
    %v4552 = vld [vmem:[%s9 + $0x50] sm:$0xff]
    %v4553 = vld [vmem:[%s9 + $0x58] sm:$0xff]
    %v4554 = vld [vmem:[%s9 + $0x60] sm:$0xff]
    %s4555 = scalar_lea.vmem %s9, 104
    %v4556 = vld [vmem:[%s4555] sm:$0xff]
    %v4557 = vld [vmem:[%s4555 + $0x8] sm:$0xff]
    %v4558 = vld [vmem:[%s4555 + $0x10] sm:$0xff]
    %v4559 = vld [vmem:[%s4555 + $0x18] sm:$0xff]
    %v4560 = vld [vmem:[%s4555 + $0x20] sm:$0xff]
    %v4561 = vld [vmem:[%s4555 + $0x28] sm:$0xff]
    %v4562 = vld [vmem:[%s4555 + $0x30] sm:$0xff]
    %v4563 = vld [vmem:[%s4555 + $0x38] sm:$0xff]
    %v4564 = vld [vmem:[%s4555 + $0x40] sm:$0xff]
    %v4565 = vld [vmem:[%s4555 + $0x48] sm:$0xff]
    %v4566 = vld [vmem:[%s4555 + $0x50] sm:$0xff]
    %v4567 = vld [vmem:[%s4555 + $0x58] sm:$0xff]
    %v4568 = vld [vmem:[%s4555 + $0x60] sm:$0xff]
    %vm4569 = vcmask 850944
    %v4571 = vsel %vm4569, %v4536, 0
    %4573 = vmatprep.subr.mxu0 0.0
    %4574 = vmatpush1.msra.mxu0 %v4556
    %4575 = vmatprep.subr.mxu0 0.0
    %4576 = vmatpush1.msra.mxu0 %v4557
    %4577 = vmatprep.subr.mxu0 0.0
    %4578 = vmatpush1.msra.mxu0 %v4558
    %4579 = vmatprep.subr.mxu0 0.0
    %4580 = vmatpush1.msra.mxu0 %v4559
    %4581 = vmatprep.subr.mxu0 0.0
    %4582 = vmatpush1.msra.mxu0 %v4560
    %4583 = vmatprep.subr.mxu0 0.0
    %4584 = vmatpush1.msra.mxu0 %v4561
    %4585 = vmatprep.subr.mxu0 0.0
    %4586 = vmatpush1.msra.mxu0 %v4562
    %4587 = vmatprep.subr.mxu0 0.0
    %4588 = vmatpush1.msra.mxu0 %v4563
    %4589 = vmatprep.subr.mxu0 0.0
    %4590 = vmatpush1.msra.mxu0 %v4564
    %4591 = vmatprep.subr.mxu0 0.0
    %4592 = vmatpush1.msra.mxu0 %v4565
    %4593 = vmatprep.subr.mxu0 0.0
    %4594 = vmatpush1.msra.mxu0 %v4566
    %4595 = vmatprep.subr.mxu0 0.0
    %4596 = vmatpush1.msra.mxu0 %v4567
    %4597 = vmatprep.subr.mxu0 0.0
    %4598 = vmatpush1.msra.mxu0 %v4568
    %4599 = vmatprep.subr.mxu0 0.0
    %4600 = vmatpush1.msra.mxu0 0.0
    %4601 = vmatprep.subr.mxu0 0.0
    %4602 = vmatpush1.msra.mxu0 0.0
    %4603 = vmatprep.subr.mxu0 0.0
    %4604 = vmatpush1.msra.mxu0 0.0
    %4605 = vmatprep.subr.mxu0 0.0
    %4606 = vmatpush1.msra.mxu0 0.0
    %4607 = vmatprep.subr.mxu0 0.0
    %4608 = vmatpush1.msra.mxu0 0.0
    %4609 = vmatprep.subr.mxu0 0.0
    %4610 = vmatpush1.msra.mxu0 0.0
    %4611 = vmatprep.subr.mxu0 0.0
    %4612 = vmatpush1.msra.mxu0 0.0
    %4613 = vmatprep.subr.mxu0 0.0
    %4614 = vmatpush1.msra.mxu0 0.0
    %4615 = vmatprep.subr.mxu0 0.0
    %4616 = vmatpush1.msra.mxu0 0.0
    %4617 = vmatprep.subr.mxu0 0.0
    %4618 = vmatpush1.msra.mxu0 0.0
    %4619 = vmatprep.subr.mxu0 0.0
    %4620 = vmatpush1.msra.mxu0 0.0
    %4621 = vmatprep.subr.mxu0 0.0
    %4622 = vmatpush1.msra.mxu0 0.0
    %4623 = vmatprep.subr.mxu0 0.0
    %4624 = vmatpush1.msra.mxu0 0.0
    %4625 = vmatprep.subr.mxu0 0.0
    %4626 = vmatpush1.msra.mxu0 0.0
    %4627 = vmatprep.subr.mxu0 0.0
    %4628 = vmatpush1.msra.mxu0 0.0
    %4629 = vmatprep.subr.mxu0 0.0
    %4630 = vmatpush1.msra.mxu0 0.0
    %4631 = vmatprep.subr.mxu0 0.0
    %4632 = vmatpush1.msra.mxu0 0.0
    %4633 = vmatprep.subr.mxu0 0.0
    %4634 = vmatpush1.msra.mxu0 0.0
    %4635 = vmatprep.subr.mxu0 0.0
    %4636 = vmatpush1.msra.mxu0 0.0
    %4637 = vmatprep.mubr.f32.mxu0 0.0
    %4638 = vmatmul.mubr.f32.gmra.mrb[0].mxu0 %v4571
    %v4639 = vpop.f32.mrb[0].mxu0
    %v4640 = vadd.f32 0.0, %v4639
    %v4641 = vpop.f32.mrb[0].mxu0
    %4642 = vdwg.mxu0
    %v4644 = vsel %vm4569, %v4535, 0
    %4646 = vmatprep.subr.mxu0 0.0
    %4647 = vmatpush1.msra.mxu0 %v4542
    %4648 = vmatprep.subr.mxu0 0.0
    %4649 = vmatpush1.msra.mxu0 %v4543
    %4650 = vmatprep.subr.mxu0 0.0
    %4651 = vmatpush1.msra.mxu0 %v4544
    %4652 = vmatprep.subr.mxu0 0.0
    %4653 = vmatpush1.msra.mxu0 %v4545
    %4654 = vmatprep.subr.mxu0 0.0
    %4655 = vmatpush1.msra.mxu0 %v4546
    %4656 = vmatprep.subr.mxu0 0.0
    %4657 = vmatpush1.msra.mxu0 %v4547
    %4658 = vmatprep.subr.mxu0 0.0
    %4659 = vmatpush1.msra.mxu0 %v4548
    %4660 = vmatprep.subr.mxu0 0.0
    %4661 = vmatpush1.msra.mxu0 %v4549
    %4662 = vmatprep.subr.mxu0 0.0
    %4663 = vmatpush1.msra.mxu0 %v4550
    %4664 = vmatprep.subr.mxu0 0.0
    %4665 = vmatpush1.msra.mxu0 %v4551
    %4666 = vmatprep.subr.mxu0 0.0
    %4667 = vmatpush1.msra.mxu0 %v4552
    %4668 = vmatprep.subr.mxu0 0.0
    %4669 = vmatpush1.msra.mxu0 %v4553
    %4670 = vmatprep.subr.mxu0 0.0
    %4671 = vmatpush1.msra.mxu0 %v4554
    %4672 = vmatprep.subr.mxu0 0.0
    %4673 = vmatpush1.msra.mxu0 0.0
    %4674 = vmatprep.subr.mxu0 0.0
    %4675 = vmatpush1.msra.mxu0 0.0
    %4676 = vmatprep.subr.mxu0 0.0
    %4677 = vmatpush1.msra.mxu0 0.0
    %4678 = vmatprep.subr.mxu0 0.0
    %4679 = vmatpush1.msra.mxu0 0.0
    %4680 = vmatprep.subr.mxu0 0.0
    %4681 = vmatpush1.msra.mxu0 0.0
    %4682 = vmatprep.subr.mxu0 0.0
    %4683 = vmatpush1.msra.mxu0 0.0
    %4684 = vmatprep.subr.mxu0 0.0
    %4685 = vmatpush1.msra.mxu0 0.0
    %4686 = vmatprep.subr.mxu0 0.0
    %4687 = vmatpush1.msra.mxu0 0.0
    %4688 = vmatprep.subr.mxu0 0.0
    %4689 = vmatpush1.msra.mxu0 0.0
    %4690 = vmatprep.subr.mxu0 0.0
    %4691 = vmatpush1.msra.mxu0 0.0
    %4692 = vmatprep.subr.mxu0 0.0
    %4693 = vmatpush1.msra.mxu0 0.0
    %4694 = vmatprep.subr.mxu0 0.0
    %4695 = vmatpush1.msra.mxu0 0.0
    %4696 = vmatprep.subr.mxu0 0.0
    %4697 = vmatpush1.msra.mxu0 0.0
    %4698 = vmatprep.subr.mxu0 0.0
    %4699 = vmatpush1.msra.mxu0 0.0
    %4700 = vmatprep.subr.mxu0 0.0
    %4701 = vmatpush1.msra.mxu0 0.0
    %4702 = vmatprep.subr.mxu0 0.0
    %4703 = vmatpush1.msra.mxu0 0.0
    %4704 = vmatprep.subr.mxu0 0.0
    %4705 = vmatpush1.msra.mxu0 0.0
    %4706 = vmatprep.subr.mxu0 0.0
    %4707 = vmatpush1.msra.mxu0 0.0
    %4708 = vmatprep.subr.mxu0 0.0
    %4709 = vmatpush1.msra.mxu0 0.0
    %4710 = vmatprep.mubr.f32.mxu0 0.0
    %4711 = vmatmul.mubr.f32.gmra.mrb[0].mxu0 %v4644
    %v4712 = vpop.f32.mrb[0].mxu0
    %v4713 = vadd.f32 %v4640, %v4712
    %v4714 = vpop.f32.mrb[0].mxu0
    %4715 = vdwg.mxu0
    %s4716 = scalar_lea.vmem %s9, 208
    %v4717 = vld [vmem:[%s4716] sm:$0xff]
    %v4718 = vld [vmem:[%s4716 + $0x8] sm:$0xff]
    %v4719 = vld [vmem:[%s4716 + $0x10] sm:$0xff]
    %v4720 = vld [vmem:[%s4716 + $0x18] sm:$0xff]
    %v4721 = vld [vmem:[%s4716 + $0x20] sm:$0xff]
    %v4722 = vld [vmem:[%s4716 + $0x28] sm:$0xff]
    %v4723 = vld [vmem:[%s4716 + $0x30] sm:$0xff]
    %v4724 = vld [vmem:[%s4716 + $0x38] sm:$0xff]
    %v4725 = vld [vmem:[%s4716 + $0x40] sm:$0xff]
    %v4726 = vld [vmem:[%s4716 + $0x48] sm:$0xff]
    %v4727 = vld [vmem:[%s4716 + $0x50] sm:$0xff]
    %v4728 = vld [vmem:[%s4716 + $0x58] sm:$0xff]
    %v4729 = vld [vmem:[%s4716 + $0x60] sm:$0xff]
    %v4731 = vsel %vm4569, %v4537, 0
    %4733 = vmatprep.subr.mxu0 0.0
    %4734 = vmatpush1.msra.mxu0 %v4717
    %4735 = vmatprep.subr.mxu0 0.0
    %4736 = vmatpush1.msra.mxu0 %v4718
    %4737 = vmatprep.subr.mxu0 0.0
    %4738 = vmatpush1.msra.mxu0 %v4719
    %4739 = vmatprep.subr.mxu0 0.0
    %4740 = vmatpush1.msra.mxu0 %v4720
    %4741 = vmatprep.subr.mxu0 0.0
    %4742 = vmatpush1.msra.mxu0 %v4721
    %4743 = vmatprep.subr.mxu0 0.0
    %4744 = vmatpush1.msra.mxu0 %v4722
    %4745 = vmatprep.subr.mxu0 0.0
    %4746 = vmatpush1.msra.mxu0 %v4723
    %4747 = vmatprep.subr.mxu0 0.0
    %4748 = vmatpush1.msra.mxu0 %v4724
    %4749 = vmatprep.subr.mxu0 0.0
    %4750 = vmatpush1.msra.mxu0 %v4725
    %4751 = vmatprep.subr.mxu0 0.0
    %4752 = vmatpush1.msra.mxu0 %v4726
    %4753 = vmatprep.subr.mxu0 0.0
    %4754 = vmatpush1.msra.mxu0 %v4727
    %4755 = vmatprep.subr.mxu0 0.0
    %4756 = vmatpush1.msra.mxu0 %v4728
    %4757 = vmatprep.subr.mxu0 0.0
    %4758 = vmatpush1.msra.mxu0 %v4729
    %4759 = vmatprep.subr.mxu0 0.0
    %4760 = vmatpush1.msra.mxu0 0.0
    %4761 = vmatprep.subr.mxu0 0.0
    %4762 = vmatpush1.msra.mxu0 0.0
    %4763 = vmatprep.subr.mxu0 0.0
    %4764 = vmatpush1.msra.mxu0 0.0
    %4765 = vmatprep.subr.mxu0 0.0
    %4766 = vmatpush1.msra.mxu0 0.0
    %4767 = vmatprep.subr.mxu0 0.0
    %4768 = vmatpush1.msra.mxu0 0.0
    %4769 = vmatprep.subr.mxu0 0.0
    %4770 = vmatpush1.msra.mxu0 0.0
    %4771 = vmatprep.subr.mxu0 0.0
    %4772 = vmatpush1.msra.mxu0 0.0
    %4773 = vmatprep.subr.mxu0 0.0
    %4774 = vmatpush1.msra.mxu0 0.0
    %4775 = vmatprep.subr.mxu0 0.0
    %4776 = vmatpush1.msra.mxu0 0.0
    %4777 = vmatprep.subr.mxu0 0.0
    %4778 = vmatpush1.msra.mxu0 0.0
    %4779 = vmatprep.subr.mxu0 0.0
    %4780 = vmatpush1.msra.mxu0 0.0
    %4781 = vmatprep.subr.mxu0 0.0
    %4782 = vmatpush1.msra.mxu0 0.0
    %4783 = vmatprep.subr.mxu0 0.0
    %4784 = vmatpush1.msra.mxu0 0.0
    %4785 = vmatprep.subr.mxu0 0.0
    %4786 = vmatpush1.msra.mxu0 0.0
    %4787 = vmatprep.subr.mxu0 0.0
    %4788 = vmatpush1.msra.mxu0 0.0
    %4789 = vmatprep.subr.mxu0 0.0
    %4790 = vmatpush1.msra.mxu0 0.0
    %4791 = vmatprep.subr.mxu0 0.0
    %4792 = vmatpush1.msra.mxu0 0.0
    %4793 = vmatprep.subr.mxu0 0.0
    %4794 = vmatpush1.msra.mxu0 0.0
    %4795 = vmatprep.subr.mxu0 0.0
    %4796 = vmatpush1.msra.mxu0 0.0
    %4797 = vmatprep.mubr.f32.mxu0 0.0
    %4798 = vmatmul.mubr.f32.gmra.mrb[0].mxu0 %v4731
    %v4799 = vpop.f32.mrb[0].mxu0
    %v4800 = vadd.f32 0.0, %v4799
    %v4801 = vpop.f32.mrb[0].mxu0
    %4802 = vdwg.mxu0
    %v4803 = vadd.f32 %v4713, %v4800
    %s4804 = scalar_lea.vmem %s9, 312
    %v4805 = vld [vmem:[%s4804] sm:$0xff]
    %v4806 = vld [vmem:[%s4804 + $0x8] sm:$0xff]
    %v4807 = vld [vmem:[%s4804 + $0x10] sm:$0xff]
    %v4808 = vld [vmem:[%s4804 + $0x18] sm:$0xff]
    %v4809 = vld [vmem:[%s4804 + $0x20] sm:$0xff]
    %v4810 = vld [vmem:[%s4804 + $0x28] sm:$0xff]
    %v4811 = vld [vmem:[%s4804 + $0x30] sm:$0xff]
    %v4812 = vld [vmem:[%s4804 + $0x38] sm:$0xff]
    %v4813 = vld [vmem:[%s4804 + $0x40] sm:$0xff]
    %v4814 = vld [vmem:[%s4804 + $0x48] sm:$0xff]
    %v4815 = vld [vmem:[%s4804 + $0x50] sm:$0xff]
    %v4816 = vld [vmem:[%s4804 + $0x58] sm:$0xff]
    %v4817 = vld [vmem:[%s4804 + $0x60] sm:$0xff]
    %v4819 = vsel %vm4569, %v4538, 0
    %4821 = vmatprep.subr.mxu0 0.0
    %4822 = vmatpush1.msra.mxu0 %v4805
    %4823 = vmatprep.subr.mxu0 0.0
    %4824 = vmatpush1.msra.mxu0 %v4806
    %4825 = vmatprep.subr.mxu0 0.0
    %4826 = vmatpush1.msra.mxu0 %v4807
    %4827 = vmatprep.subr.mxu0 0.0
    %4828 = vmatpush1.msra.mxu0 %v4808
    %4829 = vmatprep.subr.mxu0 0.0
    %4830 = vmatpush1.msra.mxu0 %v4809
    %4831 = vmatprep.subr.mxu0 0.0
    %4832 = vmatpush1.msra.mxu0 %v4810
    %4833 = vmatprep.subr.mxu0 0.0
    %4834 = vmatpush1.msra.mxu0 %v4811
    %4835 = vmatprep.subr.mxu0 0.0
    %4836 = vmatpush1.msra.mxu0 %v4812
    %4837 = vmatprep.subr.mxu0 0.0
    %4838 = vmatpush1.msra.mxu0 %v4813
    %4839 = vmatprep.subr.mxu0 0.0
    %4840 = vmatpush1.msra.mxu0 %v4814
    %4841 = vmatprep.subr.mxu0 0.0
    %4842 = vmatpush1.msra.mxu0 %v4815
    %4843 = vmatprep.subr.mxu0 0.0
    %4844 = vmatpush1.msra.mxu0 %v4816
    %4845 = vmatprep.subr.mxu0 0.0
    %4846 = vmatpush1.msra.mxu0 %v4817
    %4847 = vmatprep.subr.mxu0 0.0
    %4848 = vmatpush1.msra.mxu0 0.0
    %4849 = vmatprep.subr.mxu0 0.0
    %4850 = vmatpush1.msra.mxu0 0.0
    %4851 = vmatprep.subr.mxu0 0.0
    %4852 = vmatpush1.msra.mxu0 0.0
    %4853 = vmatprep.subr.mxu0 0.0
    %4854 = vmatpush1.msra.mxu0 0.0
    %4855 = vmatprep.subr.mxu0 0.0
    %4856 = vmatpush1.msra.mxu0 0.0
    %4857 = vmatprep.subr.mxu0 0.0
    %4858 = vmatpush1.msra.mxu0 0.0
    %4859 = vmatprep.subr.mxu0 0.0
    %4860 = vmatpush1.msra.mxu0 0.0
    %4861 = vmatprep.subr.mxu0 0.0
    %4862 = vmatpush1.msra.mxu0 0.0
    %4863 = vmatprep.subr.mxu0 0.0
    %4864 = vmatpush1.msra.mxu0 0.0
    %4865 = vmatprep.subr.mxu0 0.0
    %4866 = vmatpush1.msra.mxu0 0.0
    %4867 = vmatprep.subr.mxu0 0.0
    %4868 = vmatpush1.msra.mxu0 0.0
    %4869 = vmatprep.subr.mxu0 0.0
    %4870 = vmatpush1.msra.mxu0 0.0
    %4871 = vmatprep.subr.mxu0 0.0
    %4872 = vmatpush1.msra.mxu0 0.0
    %4873 = vmatprep.subr.mxu0 0.0
    %4874 = vmatpush1.msra.mxu0 0.0
    %4875 = vmatprep.subr.mxu0 0.0
    %4876 = vmatpush1.msra.mxu0 0.0
    %4877 = vmatprep.subr.mxu0 0.0
    %4878 = vmatpush1.msra.mxu0 0.0
    %4879 = vmatprep.subr.mxu0 0.0
    %4880 = vmatpush1.msra.mxu0 0.0
    %4881 = vmatprep.subr.mxu0 0.0
    %4882 = vmatpush1.msra.mxu0 0.0
    %4883 = vmatprep.subr.mxu0 0.0
    %4884 = vmatpush1.msra.mxu0 0.0
    %4885 = vmatprep.mubr.f32.mxu0 0.0
    %4886 = vmatmul.mubr.f32.gmra.mrb[0].mxu0 %v4819
    %v4887 = vpop.f32.mrb[0].mxu0
    %v4888 = vadd.f32 0.0, %v4887
    %v4889 = vpop.f32.mrb[0].mxu0
    %4890 = vdwg.mxu0
    %v4891 = vadd.f32 %v4803, %v4888
    %s4892 = scalar_lea.vmem %s9, 416
    %v4893 = vld [vmem:[%s4892] sm:$0xff]
    %v4894 = vld [vmem:[%s4892 + $0x8] sm:$0xff]
    %v4895 = vld [vmem:[%s4892 + $0x10] sm:$0xff]
    %v4896 = vld [vmem:[%s4892 + $0x18] sm:$0xff]
    %v4897 = vld [vmem:[%s4892 + $0x20] sm:$0xff]
    %v4898 = vld [vmem:[%s4892 + $0x28] sm:$0xff]
    %v4899 = vld [vmem:[%s4892 + $0x30] sm:$0xff]
    %v4900 = vld [vmem:[%s4892 + $0x38] sm:$0xff]
    %v4901 = vld [vmem:[%s4892 + $0x40] sm:$0xff]
    %v4902 = vld [vmem:[%s4892 + $0x48] sm:$0xff]
    %v4903 = vld [vmem:[%s4892 + $0x50] sm:$0xff]
    %v4904 = vld [vmem:[%s4892 + $0x58] sm:$0xff]
    %v4905 = vld [vmem:[%s4892 + $0x60] sm:$0xff]
    %v4907 = vsel %vm4569, %v4539, 0
    %4909 = vmatprep.subr.mxu0 0.0
    %4910 = vmatpush1.msra.mxu0 %v4893
    %4911 = vmatprep.subr.mxu0 0.0
    %4912 = vmatpush1.msra.mxu0 %v4894
    %4913 = vmatprep.subr.mxu0 0.0
    %4914 = vmatpush1.msra.mxu0 %v4895
    %4915 = vmatprep.subr.mxu0 0.0
    %4916 = vmatpush1.msra.mxu0 %v4896
    %4917 = vmatprep.subr.mxu0 0.0
    %4918 = vmatpush1.msra.mxu0 %v4897
    %4919 = vmatprep.subr.mxu0 0.0
    %4920 = vmatpush1.msra.mxu0 %v4898
    %4921 = vmatprep.subr.mxu0 0.0
    %4922 = vmatpush1.msra.mxu0 %v4899
    %4923 = vmatprep.subr.mxu0 0.0
    %4924 = vmatpush1.msra.mxu0 %v4900
    %4925 = vmatprep.subr.mxu0 0.0
    %4926 = vmatpush1.msra.mxu0 %v4901
    %4927 = vmatprep.subr.mxu0 0.0
    %4928 = vmatpush1.msra.mxu0 %v4902
    %4929 = vmatprep.subr.mxu0 0.0
    %4930 = vmatpush1.msra.mxu0 %v4903
    %4931 = vmatprep.subr.mxu0 0.0
    %4932 = vmatpush1.msra.mxu0 %v4904
    %4933 = vmatprep.subr.mxu0 0.0
    %4934 = vmatpush1.msra.mxu0 %v4905
    %4935 = vmatprep.subr.mxu0 0.0
    %4936 = vmatpush1.msra.mxu0 0.0
    %4937 = vmatprep.subr.mxu0 0.0
    %4938 = vmatpush1.msra.mxu0 0.0
    %4939 = vmatprep.subr.mxu0 0.0
    %4940 = vmatpush1.msra.mxu0 0.0
    %4941 = vmatprep.subr.mxu0 0.0
    %4942 = vmatpush1.msra.mxu0 0.0
    %4943 = vmatprep.subr.mxu0 0.0
    %4944 = vmatpush1.msra.mxu0 0.0
    %4945 = vmatprep.subr.mxu0 0.0
    %4946 = vmatpush1.msra.mxu0 0.0
    %4947 = vmatprep.subr.mxu0 0.0
    %4948 = vmatpush1.msra.mxu0 0.0
    %4949 = vmatprep.subr.mxu0 0.0
    %4950 = vmatpush1.msra.mxu0 0.0
    %4951 = vmatprep.subr.mxu0 0.0
    %4952 = vmatpush1.msra.mxu0 0.0
    %4953 = vmatprep.subr.mxu0 0.0
    %4954 = vmatpush1.msra.mxu0 0.0
    %4955 = vmatprep.subr.mxu0 0.0
    %4956 = vmatpush1.msra.mxu0 0.0
    %4957 = vmatprep.subr.mxu0 0.0
    %4958 = vmatpush1.msra.mxu0 0.0
    %4959 = vmatprep.subr.mxu0 0.0
    %4960 = vmatpush1.msra.mxu0 0.0
    %4961 = vmatprep.subr.mxu0 0.0
    %4962 = vmatpush1.msra.mxu0 0.0
    %4963 = vmatprep.subr.mxu0 0.0
    %4964 = vmatpush1.msra.mxu0 0.0
    %4965 = vmatprep.subr.mxu0 0.0
    %4966 = vmatpush1.msra.mxu0 0.0
    %4967 = vmatprep.subr.mxu0 0.0
    %4968 = vmatpush1.msra.mxu0 0.0
    %4969 = vmatprep.subr.mxu0 0.0
    %4970 = vmatpush1.msra.mxu0 0.0
    %4971 = vmatprep.subr.mxu0 0.0
    %4972 = vmatpush1.msra.mxu0 0.0
    %4973 = vmatprep.mubr.f32.mxu0 0.0
    %4974 = vmatmul.mubr.f32.gmra.mrb[0].mxu0 %v4907
    %v4975 = vpop.f32.mrb[0].mxu0
    %v4976 = vadd.f32 0.0, %v4975
    %v4977 = vpop.f32.mrb[0].mxu0
    %4978 = vdwg.mxu0
    %v4979 = vadd.f32 %v4891, %v4976
    %s4980 = scalar_lea.vmem %s9, 520
    %v4981 = vld [vmem:[%s4980] sm:$0xff]
    %v4982 = vld [vmem:[%s4980 + $0x8] sm:$0xff]
    %v4983 = vld [vmem:[%s4980 + $0x10] sm:$0xff]
    %v4984 = vld [vmem:[%s4980 + $0x18] sm:$0xff]
    %v4985 = vld [vmem:[%s4980 + $0x20] sm:$0xff]
    %v4986 = vld [vmem:[%s4980 + $0x28] sm:$0xff]
    %v4987 = vld [vmem:[%s4980 + $0x30] sm:$0xff]
    %v4988 = vld [vmem:[%s4980 + $0x38] sm:$0xff]
    %v4989 = vld [vmem:[%s4980 + $0x40] sm:$0xff]
    %v4990 = vld [vmem:[%s4980 + $0x48] sm:$0xff]
    %v4991 = vld [vmem:[%s4980 + $0x50] sm:$0xff]
    %v4992 = vld [vmem:[%s4980 + $0x58] sm:$0xff]
    %v4993 = vld [vmem:[%s4980 + $0x60] sm:$0xff]
    %v4995 = vsel %vm4569, %v4540, 0
    %4997 = vmatprep.subr.mxu0 0.0
    %4998 = vmatpush1.msra.mxu0 %v4981
    %4999 = vmatprep.subr.mxu0 0.0
    %5000 = vmatpush1.msra.mxu0 %v4982
    %5001 = vmatprep.subr.mxu0 0.0
    %5002 = vmatpush1.msra.mxu0 %v4983
    %5003 = vmatprep.subr.mxu0 0.0
    %5004 = vmatpush1.msra.mxu0 %v4984
    %5005 = vmatprep.subr.mxu0 0.0
    %5006 = vmatpush1.msra.mxu0 %v4985
    %5007 = vmatprep.subr.mxu0 0.0
    %5008 = vmatpush1.msra.mxu0 %v4986
    %5009 = vmatprep.subr.mxu0 0.0
    %5010 = vmatpush1.msra.mxu0 %v4987
    %5011 = vmatprep.subr.mxu0 0.0
    %5012 = vmatpush1.msra.mxu0 %v4988
    %5013 = vmatprep.subr.mxu0 0.0
    %5014 = vmatpush1.msra.mxu0 %v4989
    %5015 = vmatprep.subr.mxu0 0.0
    %5016 = vmatpush1.msra.mxu0 %v4990
    %5017 = vmatprep.subr.mxu0 0.0
    %5018 = vmatpush1.msra.mxu0 %v4991
    %5019 = vmatprep.subr.mxu0 0.0
    %5020 = vmatpush1.msra.mxu0 %v4992
    %5021 = vmatprep.subr.mxu0 0.0
    %5022 = vmatpush1.msra.mxu0 %v4993
    %5023 = vmatprep.subr.mxu0 0.0
    %5024 = vmatpush1.msra.mxu0 0.0
    %5025 = vmatprep.subr.mxu0 0.0
    %5026 = vmatpush1.msra.mxu0 0.0
    %5027 = vmatprep.subr.mxu0 0.0
    %5028 = vmatpush1.msra.mxu0 0.0
    %5029 = vmatprep.subr.mxu0 0.0
    %5030 = vmatpush1.msra.mxu0 0.0
    %5031 = vmatprep.subr.mxu0 0.0
    %5032 = vmatpush1.msra.mxu0 0.0
    %5033 = vmatprep.subr.mxu0 0.0
    %5034 = vmatpush1.msra.mxu0 0.0
    %5035 = vmatprep.subr.mxu0 0.0
    %5036 = vmatpush1.msra.mxu0 0.0
    %5037 = vmatprep.subr.mxu0 0.0
    %5038 = vmatpush1.msra.mxu0 0.0
    %5039 = vmatprep.subr.mxu0 0.0
    %5040 = vmatpush1.msra.mxu0 0.0
    %5041 = vmatprep.subr.mxu0 0.0
    %5042 = vmatpush1.msra.mxu0 0.0
    %5043 = vmatprep.subr.mxu0 0.0
    %5044 = vmatpush1.msra.mxu0 0.0
    %5045 = vmatprep.subr.mxu0 0.0
    %5046 = vmatpush1.msra.mxu0 0.0
    %5047 = vmatprep.subr.mxu0 0.0
    %5048 = vmatpush1.msra.mxu0 0.0
    %5049 = vmatprep.subr.mxu0 0.0
    %5050 = vmatpush1.msra.mxu0 0.0
    %5051 = vmatprep.subr.mxu0 0.0
    %5052 = vmatpush1.msra.mxu0 0.0
    %5053 = vmatprep.subr.mxu0 0.0
    %5054 = vmatpush1.msra.mxu0 0.0
    %5055 = vmatprep.subr.mxu0 0.0
    %5056 = vmatpush1.msra.mxu0 0.0
    %5057 = vmatprep.subr.mxu0 0.0
    %5058 = vmatpush1.msra.mxu0 0.0
    %5059 = vmatprep.subr.mxu0 0.0
    %5060 = vmatpush1.msra.mxu0 0.0
    %5061 = vmatprep.mubr.f32.mxu0 0.0
    %5062 = vmatmul.mubr.f32.gmra.mrb[0].mxu0 %v4995
    %v5063 = vpop.f32.mrb[0].mxu0
    %v5064 = vadd.f32 0.0, %v5063
    %v5065 = vpop.f32.mrb[0].mxu0
    %5066 = vdwg.mxu0
    %v5067 = vadd.f32 %v4979, %v5064
    %s5068 = scalar_lea.vmem %s9, 624
    %v5069 = vld [vmem:[%s5068] sm:$0xff]
    %v5070 = vld [vmem:[%s5068 + $0x8] sm:$0xff]
    %v5071 = vld [vmem:[%s5068 + $0x10] sm:$0xff]
    %v5072 = vld [vmem:[%s5068 + $0x18] sm:$0xff]
    %v5073 = vld [vmem:[%s5068 + $0x20] sm:$0xff]
    %v5074 = vld [vmem:[%s5068 + $0x28] sm:$0xff]
    %v5075 = vld [vmem:[%s5068 + $0x30] sm:$0xff]
    %v5076 = vld [vmem:[%s5068 + $0x38] sm:$0xff]
    %v5077 = vld [vmem:[%s5068 + $0x40] sm:$0xff]
    %v5078 = vld [vmem:[%s5068 + $0x48] sm:$0xff]
    %v5079 = vld [vmem:[%s5068 + $0x50] sm:$0xff]
    %v5080 = vld [vmem:[%s5068 + $0x58] sm:$0xff]
    %v5081 = vld [vmem:[%s5068 + $0x60] sm:$0xff]
    %v5083 = vsel %vm4569, %v4541, 0
    %5085 = vmatprep.subr.mxu0 0.0
    %5086 = vmatpush1.msra.mxu0 %v5069
    %5087 = vmatprep.subr.mxu0 0.0
    %5088 = vmatpush1.msra.mxu0 %v5070
    %5089 = vmatprep.subr.mxu0 0.0
    %5090 = vmatpush1.msra.mxu0 %v5071
    %5091 = vmatprep.subr.mxu0 0.0
    %5092 = vmatpush1.msra.mxu0 %v5072
    %5093 = vmatprep.subr.mxu0 0.0
    %5094 = vmatpush1.msra.mxu0 %v5073
    %5095 = vmatprep.subr.mxu0 0.0
    %5096 = vmatpush1.msra.mxu0 %v5074
    %5097 = vmatprep.subr.mxu0 0.0
    %5098 = vmatpush1.msra.mxu0 %v5075
    %5099 = vmatprep.subr.mxu0 0.0
    %5100 = vmatpush1.msra.mxu0 %v5076
    %5101 = vmatprep.subr.mxu0 0.0
    %5102 = vmatpush1.msra.mxu0 %v5077
    %5103 = vmatprep.subr.mxu0 0.0
    %5104 = vmatpush1.msra.mxu0 %v5078
    %5105 = vmatprep.subr.mxu0 0.0
    %5106 = vmatpush1.msra.mxu0 %v5079
    %5107 = vmatprep.subr.mxu0 0.0
    %5108 = vmatpush1.msra.mxu0 %v5080
    %5109 = vmatprep.subr.mxu0 0.0
    %5110 = vmatpush1.msra.mxu0 %v5081
    %5111 = vmatprep.subr.mxu0 0.0
    %5112 = vmatpush1.msra.mxu0 0.0
    %5113 = vmatprep.subr.mxu0 0.0
    %5114 = vmatpush1.msra.mxu0 0.0
    %5115 = vmatprep.subr.mxu0 0.0
    %5116 = vmatpush1.msra.mxu0 0.0
    %5117 = vmatprep.subr.mxu0 0.0
    %5118 = vmatpush1.msra.mxu0 0.0
    %5119 = vmatprep.subr.mxu0 0.0
    %5120 = vmatpush1.msra.mxu0 0.0
    %5121 = vmatprep.subr.mxu0 0.0
    %5122 = vmatpush1.msra.mxu0 0.0
    %5123 = vmatprep.subr.mxu0 0.0
    %5124 = vmatpush1.msra.mxu0 0.0
    %5125 = vmatprep.subr.mxu0 0.0
    %5126 = vmatpush1.msra.mxu0 0.0
    %5127 = vmatprep.subr.mxu0 0.0
    %5128 = vmatpush1.msra.mxu0 0.0
    %5129 = vmatprep.subr.mxu0 0.0
    %5130 = vmatpush1.msra.mxu0 0.0
    %5131 = vmatprep.subr.mxu0 0.0
    %5132 = vmatpush1.msra.mxu0 0.0
    %5133 = vmatprep.subr.mxu0 0.0
    %5134 = vmatpush1.msra.mxu0 0.0
    %5135 = vmatprep.subr.mxu0 0.0
    %5136 = vmatpush1.msra.mxu0 0.0
    %5137 = vmatprep.subr.mxu0 0.0
    %5138 = vmatpush1.msra.mxu0 0.0
    %5139 = vmatprep.subr.mxu0 0.0
    %5140 = vmatpush1.msra.mxu0 0.0
    %5141 = vmatprep.subr.mxu0 0.0
    %5142 = vmatpush1.msra.mxu0 0.0
    %5143 = vmatprep.subr.mxu0 0.0
    %5144 = vmatpush1.msra.mxu0 0.0
    %5145 = vmatprep.subr.mxu0 0.0
    %5146 = vmatpush1.msra.mxu0 0.0
    %5147 = vmatprep.subr.mxu0 0.0
    %5148 = vmatpush1.msra.mxu0 0.0
    %5149 = vmatprep.mubr.f32.mxu0 0.0
    %5150 = vmatmul.mubr.f32.gmra.mrb[0].mxu0 %v5083
    %v5151 = vpop.f32.mrb[0].mxu0
    %v5152 = vadd.f32 0.0, %v5151
    %v5153 = vpop.f32.mrb[0].mxu0
    %5154 = vdwg.mxu0
    %v5155 = vadd.f32 %v5067, %v5152
    %v5156 = vld [vmem:[%s10] sm:$0x1]
    %v5158 = vlaneseq
    %v5159 = vshrl.u32 %v5158, 7
    %v5160 = vsub.s32 0, %v5159
    %v5161 = vrot.slane %v5156, %v5160
    %v5163 = vadd.f32 %v5155, %v5161
    %vm5164 = vcmask 80896
    %5165 = vst.msk [vmem:[%s11] sm:$0xff] %vm5164, %v5163
    // Predicated region
    $region50: #{forward.1} parent=1 // pred_check
      _
    $region51: #{forward.1} parent=1 // pred_check_branch
      %5167 = sbr.rel (0) target = $region53
    $region52: #{forward.1} parent=1 // pred_region
      _
    $region53: #{forward.1} parent=1 // pred_fallthru
      _
    // Predicated region
    $region54: #{forward.1} parent=1 // pred_check
      _
    $region55: #{forward.1} parent=1 // pred_check_branch
      %5169 = sbr.rel (0) target = $region57
    $region56: #{forward.1} parent=1 // pred_region
      _
    $region57: #{forward.1} parent=1 // pred_fallthru
      _
    %5170 = vsyncpa [#allocation6], 1

</llo_original>
